<compile_context>
chip_gen: v6e
topology: v6e:2x2x1
jax: 0.10.0
libtpu: 0.0.40
codegen_flags: <defaults>
</compile_context>

<pallas_src>
import functools
import math

import jax
import jax.numpy as jnp
from jax import lax
from jax.experimental import pallas as pl
from jax.experimental.pallas import tpu as pltpu

PI = math.pi
LOG2 = math.log(2.0)


# ----------------------------- helpers -----------------------------

def _round_up(x, m):
    return ((x + m - 1) // m) * m


def _device_kind():
    try:
        return jax.devices()[0].device_kind.lower()
    except Exception:
        return ""


def _pick_edge_tile(n_pad, n_edges):
    """Edge-block size: keep the bf16 one-hot tiles + f32 [tE, Fp] temps bounded."""
    budget = 8 << 20                                   # bytes for per-edge temporaries
    per_edge = 4 * n_pad + 4 * 4 * 128                 # 2 bf16 one-hots + ~4 f32 rows
    t = budget // max(1, per_edge)
    t = max(128, min(2048, (t // 128) * 128))
    if "v7" in _device_kind():
        t = min(t, 512)                                # v7x: 64 MiB VMEM, keep headroom
    return min(t, _round_up(n_edges, 128))
    # TODO(synk): for very large N also block the node axis of the one-hot tiles
    # (tE x tN with an extra reduction axis) instead of using full padded N.


def _compiler_params():
    kind = _device_kind()
    if "v7" in kind:
        vmem = 48 << 20                                # 64 MiB physical -> headroom
    elif "v5" in kind or "v6" in kind:
        vmem = 96 << 20                                # 128 MiB physical
    else:
        vmem = None                                    # unknown part: keep default
    return pltpu.CompilerParams(
        dimension_semantics=("arbitrary",),            # edge axis is a reduction
        vmem_limit_bytes=vmem)


def _pad2(a, rows, cols):
    return jnp.pad(a.astype(jnp.float32),
                   ((0, rows - a.shape[0]), (0, cols - a.shape[1])))


def _pad_idx_col(idx, e_pad):
    e = idx.shape[0]
    out = jnp.full((e_pad, 1), -1, jnp.int32)          # -1 => all-zero one-hot row
    return out.at[:e, 0].set(idx.astype(jnp.int32))


def _pad_idx_row(idx, e_pad):
    e = idx.shape[0]
    out = jnp.full((1, e_pad), -1, jnp.int32)          # -1 => all-zero one-hot column
    return out.at[0, :e].set(idx.astype(jnp.int32))


def _shifted_softplus(x):
    # softplus(x) - log(2), numerically stable
    return jnp.maximum(x, 0.0) + jnp.log1p(jnp.exp(-jnp.abs(x))) - LOG2


# ----------------------------- kernel -----------------------------

def _interaction_kernel(cutoff,
                        x_ref, src_ref, dst_ref, ew_ref, ea_ref,
                        w_mlp1_ref, b_mlp1_ref, w_mlp2_ref, b_mlp2_ref,
                        w_lin1_ref, w_lin2_ref, b_lin2_ref,
                        w_lin_ref, b_lin_ref,
                        out_ref,
                        h_scr, acc_scr):
    k = pl.program_id(0)
    n_k = pl.num_programs(0)
    tE = ea_ref.shape[0]
    Np = x_ref.shape[0]

    # ---- step 0: hoisted node-side lin1 + accumulator init ----
    @pl.when(k == 0)
    def _init():
        h = jnp.dot(x_ref[...], w_lin1_ref[...],
                    preferred_element_type=jnp.float32)          # [Np, Fp]
        h_scr[...] = h.astype(h_scr.dtype)                        # bf16 (MXU operand only)
        acc_scr[...] = jnp.zeros_like(acc_scr)

    # ---- per-edge-block filter network: W = mlp(edge_attr) * C (f32, tiny) ----
    h1 = jnp.dot(ea_ref[...], w_mlp1_ref[...],
                 preferred_element_type=jnp.float32) + b_mlp1_ref[...]
    h1 = _shifted_softplus(h1)
    W = jnp.dot(h1, w_mlp2_ref[...],
                preferred_element_type=jnp.float32) + b_mlp2_ref[...]
    C = 0.5 * (jnp.cos(ew_ref[...] * (PI / cutoff)) + 1.0)        # [tE, 1]
    W = W * C                                                     # [tE, Fp] f32

    # ---- gather x_j = h[src] as a bf16 one-hot matmul ----
    # Padded edges (src = -1) give all-zero one-hot rows -> no contribution.
    gather_oh = (lax.broadcasted_iota(jnp.int32, (tE, Np), 1)
                 == src_ref[...]).astype(jnp.bfloat16)            # [tE, Np], exact 0/1
    x_j = jnp.dot(gather_oh, h_scr[...],
                  preferred_element_type=jnp.float32)             # [tE, Fp]
    msg = (x_j * W).astype(jnp.bfloat16)                          # f32 VPU mul, bf16 to MXU

    # ---- scatter-add: acc[n, :] += sum_{e: dst[e]==n} msg[e, :] ----
    # One-hot built directly transposed ([Np, tE], dst is a [1, tE] row) so the
    # MXU matmul is in natural [M,K]@[K,N] orientation (no big-tile transpose).
    scatter_oh_t = (lax.broadcasted_iota(jnp.int32, (Np, tE), 0)
                    == dst_ref[...]).astype(jnp.bfloat16)         # [Np, tE]
    acc_scr[...] += jnp.dot(scatter_oh_t, msg,
                            preferred_element_type=jnp.float32)   # [Np, Fp]

    # ---- last step: lin2 -> shifted softplus -> lin, lane-dense store ----
    @pl.when(k == n_k - 1)
    def _finalize():
        out = jnp.dot(acc_scr[...], w_lin2_ref[...],
                      preferred_element_type=jnp.float32) + b_lin2_ref[...]
        out = _shifted_softplus(out)
        out = jnp.dot(out, w_lin_ref[...],
                      preferred_element_type=jnp.float32) + b_lin_ref[...]
        out_ref[...] = out.astype(out_ref.dtype)


# ----------------------------- wrapper -----------------------------

def interaction_block(x, edge_index, edge_weight, edge_attr, params, cutoff,
                      *, edge_tile=None):
    """x:[N,H] f32, edge_index:[2,E] int, edge_weight:[E] f32, edge_attr:[E,G] f32."""
    N, H = x.shape
    E = int(edge_weight.shape[0])
    G = edge_attr.shape[1]
    F = params["w_lin1"].shape[1]

    Hp = _round_up(H, 128)
    Fp = _round_up(F, 128)
    Gp = _round_up(G, 128)
    Np = _round_up(N, 8)

    tE = int(edge_tile) if edge_tile is not None else _pick_edge_tile(Np, E)
    tE = max(128, _round_up(tE, 128))
    Ep = _round_up(E, tE)
    n_blocks = Ep // tE

    # ---- pad data (zeros; padded edges get src/dst = -1) ----
    xp = _pad2(x, Np, Hp)
    src = _pad_idx_col(edge_index[0], Ep)              # [Ep, 1]
    dst = _pad_idx_row(edge_index[1], Ep)              # [1, Ep]  (lane-dense row)
    ewp = _pad2(edge_weight.reshape(E, 1), Ep, 1)
    eap = _pad2(edge_attr, Ep, Gp)

    w_mlp1 = _pad2(params["w_mlp1"], Gp, Fp)
    b_mlp1 = _pad2(params["b_mlp1"], 1, Fp)
    w_mlp2 = _pad2(params["w_mlp2"], Fp, Fp)
    b_mlp2 = _pad2(params["b_mlp2"], 1, Fp)
    w_lin1 = _pad2(params["w_lin1"], Hp, Fp)
    w_lin2 = _pad2(params["w_lin2"], Fp, Hp)
    b_lin2 = _pad2(params["b_lin2"], 1, Hp)
    w_lin = _pad2(params["w_lin"], Hp, Hp)
    b_lin = _pad2(params["b_lin"], 1, Hp)

    def _resident(shape):           # full block, stays resident across edge axis
        return pl.BlockSpec(shape, lambda k: (0, 0))

    in_specs = [
        _resident((Np, Hp)),                               # x
        pl.BlockSpec((tE, 1), lambda k: (k, 0)),           # src (column)
        pl.BlockSpec((1, tE), lambda k: (0, k)),           # dst (row, lane-dense)
        pl.BlockSpec((tE, 1), lambda k: (k, 0)),           # edge_weight
        pl.BlockSpec((tE, Gp), lambda k: (k, 0)),          # edge_attr
        _resident((Gp, Fp)), _resident((1, Fp)),           # mlp layer 1
        _resident((Fp, Fp)), _resident((1, Fp)),           # mlp layer 2
        _resident((Hp, Fp)),                               # lin1
        _resident((Fp, Hp)), _resident((1, Hp)),           # lin2
        _resident((Hp, Hp)), _resident((1, Hp)),           # lin
    ]

    grid_spec = pltpu.PrefetchScalarGridSpec(
        num_scalar_prefetch=0,
        grid=(n_blocks,),
        in_specs=in_specs,
        out_specs=_resident((Np, Hp)),
        scratch_shapes=[
            pltpu.VMEM((Np, Fp), jnp.bfloat16),    # h = x @ w_lin1 (resident)
            pltpu.VMEM((Np, Fp), jnp.float32),     # agg accumulator
        ],
    )

    out = pl.pallas_call(
        functools.partial(_interaction_kernel, float(cutoff)),
        out_shape=jax.ShapeDtypeStruct((Np, Hp), jnp.float32),
        grid_spec=grid_spec,
        compiler_params=_compiler_params(),
    )(xp, src, dst, ewp, eap,
      w_mlp1, b_mlp1, w_mlp2, b_mlp2,
      w_lin1, w_lin2, b_lin2, w_lin, b_lin)

    return out[:N, :H]


# --------------- parameter init (xavier_uniform, zero biases) ---------------

def _xavier_uniform(key, fan_in, fan_out):
    bound = math.sqrt(6.0 / (fan_in + fan_out))
    return jax.random.uniform(key, (fan_in, fan_out), jnp.float32, -bound, bound)


def make_params(key, hidden_channels, num_gaussians, num_filters):
    ks = jax.random.split(key, 5)
    return {
        "w_mlp1": _xavier_uniform(ks[0], num_gaussians, num_filters),
        "b_mlp1": jnp.zeros((1, num_filters), jnp.float32),
        "w_mlp2": _xavier_uniform(ks[1], num_filters, num_filters),
        "b_mlp2": jnp.zeros((1, num_filters), jnp.float32),
        "w_lin1": _xavier_uniform(ks[2], hidden_channels, num_filters),
        "w_lin2": _xavier_uniform(ks[3], num_filters, hidden_channels),
        "b_lin2": jnp.zeros((1, hidden_channels), jnp.float32),
        "w_lin": _xavier_uniform(ks[4], hidden_channels, hidden_channels),
        "b_lin": jnp.zeros((1, hidden_channels), jnp.float32),
    }


# --------------------- pure-JAX reference (f32) ---------------------

def interaction_block_ref(x, edge_index, edge_weight, edge_attr, params, cutoff):
    src, dst = edge_index[0], edge_index[1]
    C = 0.5 * (jnp.cos(edge_weight * PI / cutoff) + 1.0)
    h1 = edge_attr @ params["w_mlp1"] + params["b_mlp1"]
    h1 = jax.nn.softplus(h1) - LOG2
    W = (h1 @ params["w_mlp2"] + params["b_mlp2"]) * C[:, None]
    h = x @ params["w_lin1"]
    msg = h[src] * W
    agg = jnp.zeros((x.shape[0], msg.shape[1]), jnp.float32).at[dst].add(msg)
    out = agg @ params["w_lin2"] + params["b_lin2"]
    out = jax.nn.softplus(out) - LOG2
    out = out @ params["w_lin"] + params["b_lin"]
    return out


def _run_case(key, N, E, hidden_channels, num_gaussians, num_filters, cutoff,
              edge_tile=None):
    k_x, k_ei, k_ew, k_ea, k_p = jax.random.split(key, 5)
    x = jax.random.normal(k_x, (N, hidden_channels), jnp.float32)
    edge_index = jax.random.randint(k_ei, (2, E), 0, N, jnp.int32)
    edge_weight = jax.random.uniform(k_ew, (E,), jnp.float32, 0.0, cutoff)
    edge_attr = jax.random.normal(k_ea, (E, num_gaussians), jnp.float32)
    params = make_params(k_p, hidden_channels, num_gaussians, num_filters)

    out = interaction_block(x, edge_index, edge_weight, edge_attr, params, cutoff,
                            edge_tile=edge_tile)
    out = jax.block_until_ready(out)
    ref = interaction_block_ref(x, edge_index, edge_weight, edge_attr, params, cutoff)

    assert out.shape == (N, hidden_channels)
    # bf16 MXU path for the gather/scatter dots -> ~1e-2 relative tolerance.
    assert jnp.allclose(out, ref, atol=5e-2, rtol=5e-2), (
        "mismatch vs reference, max abs err = %e"
        % float(jnp.max(jnp.abs(out - ref))))


if __name__ == "__main__":
    key = jax.random.PRNGKey(0)
    k1, k2 = jax.random.split(key, 2)

    # Small config matching the module defaults (single edge block).
    _run_case(k1, N=8, E=16, hidden_channels=32, num_gaussians=16,
              num_filters=32, cutoff=10.0)

    # Slightly larger config with a forced small edge tile to exercise the
    # multi-block grid / accumulator path (3 edge blocks).
    _run_case(k2, N=24, E=300, hidden_channels=64, num_gaussians=50,
              num_filters=64, cutoff=10.0, edge_tile=128)

    print("KERNEL_OK")
</pallas_src>

<mosaic_0001>
module attributes {stable_mosaic.version = 11 : i64} {
  func.func @_interaction_kernel(%arg0: i32, %arg1: memref<8x128xf32, #tpu.memory_space<vmem>>, %arg2: memref<128x1xi32, #tpu.memory_space<vmem>>, %arg3: memref<1x128xi32, #tpu.memory_space<vmem>>, %arg4: memref<128x1xf32, #tpu.memory_space<vmem>>, %arg5: memref<128x128xf32, #tpu.memory_space<vmem>>, %arg6: memref<128x128xf32, #tpu.memory_space<vmem>>, %arg7: memref<1x128xf32, #tpu.memory_space<vmem>>, %arg8: memref<128x128xf32, #tpu.memory_space<vmem>>, %arg9: memref<1x128xf32, #tpu.memory_space<vmem>>, %arg10: memref<128x128xf32, #tpu.memory_space<vmem>>, %arg11: memref<128x128xf32, #tpu.memory_space<vmem>>, %arg12: memref<1x128xf32, #tpu.memory_space<vmem>>, %arg13: memref<128x128xf32, #tpu.memory_space<vmem>>, %arg14: memref<1x128xf32, #tpu.memory_space<vmem>>, %arg15: memref<8x128xf32, #tpu.memory_space<vmem>>, %arg16: memref<8x128xbf16, #tpu.memory_space<vmem>>, %arg17: memref<8x128xf32, #tpu.memory_space<vmem>>) attributes {dimension_semantics = [#tpu.dimension_semantics<arbitrary>], iteration_bounds = array<i64: 1>, scalar_prefetch = 0 : i64, scratch_operands = 2 : i64, tpu.core_type = #tpu.core_type<tc>, window_params = [{pipeline_mode = #tpu.pipeline_mode<synchronous>, transform_indices = @transform_0, window_bounds = array<i64: 8, 128>}, {transform_indices = @transform_1, window_bounds = array<i64: 128, 1>}, {transform_indices = @transform_2, window_bounds = array<i64: 1, 128>}, {transform_indices = @transform_3, window_bounds = array<i64: 128, 1>}, {transform_indices = @transform_4, window_bounds = array<i64: 128, 128>}, {pipeline_mode = #tpu.pipeline_mode<synchronous>, transform_indices = @transform_5, window_bounds = array<i64: 128, 128>}, {pipeline_mode = #tpu.pipeline_mode<synchronous>, transform_indices = @transform_6, window_bounds = array<i64: 1, 128>}, {pipeline_mode = #tpu.pipeline_mode<synchronous>, transform_indices = @transform_7, window_bounds = array<i64: 128, 128>}, {pipeline_mode = #tpu.pipeline_mode<synchronous>, transform_indices = @transform_8, window_bounds = array<i64: 1, 128>}, {pipeline_mode = #tpu.pipeline_mode<synchronous>, transform_indices = @transform_9, window_bounds = array<i64: 128, 128>}, {pipeline_mode = #tpu.pipeline_mode<synchronous>, transform_indices = @transform_10, window_bounds = array<i64: 128, 128>}, {pipeline_mode = #tpu.pipeline_mode<synchronous>, transform_indices = @transform_11, window_bounds = array<i64: 1, 128>}, {pipeline_mode = #tpu.pipeline_mode<synchronous>, transform_indices = @transform_12, window_bounds = array<i64: 128, 128>}, {pipeline_mode = #tpu.pipeline_mode<synchronous>, transform_indices = @transform_13, window_bounds = array<i64: 1, 128>}, {pipeline_mode = #tpu.pipeline_mode<synchronous>, transform_indices = @transform_14, window_bounds = array<i64: 8, 128>}]} {
    %c0_i32 = arith.constant 0 : i32
    %0 = arith.cmpi eq, %arg0, %c0_i32 : i32
    %1 = arith.extui %0 : i1 to i32
    %c0_i32_0 = arith.constant 0 : i32
    %2 = arith.cmpi ne, %1, %c0_i32_0 : i32
    scf.if %2 {
      %c0_33 = arith.constant 0 : index
      %c0_34 = arith.constant 0 : index
      %59 = vector.load %arg1[%c0_33, %c0_34] : memref<8x128xf32, #tpu.memory_space<vmem>>, vector<8x128xf32>
      %c0_35 = arith.constant 0 : index
      %c0_36 = arith.constant 0 : index
      %60 = vector.load %arg10[%c0_35, %c0_36] : memref<128x128xf32, #tpu.memory_space<vmem>>, vector<128x128xf32>
      %cst_37 = arith.constant dense<0.000000e+00> : vector<8x128xf32>
      %61 = tpu.matmul %59, %60, %cst_37 {dimension_numbers = #tpu.dot_dimension_numbers<[1], [0], [0], [1], [0, 0, 1, 1], [], []>} : vector<8x128xf32>, vector<128x128xf32>, vector<8x128xf32> -> vector<8x128xf32>
      %62 = arith.truncf %61 : vector<8x128xf32> to vector<8x128xbf16>
      %c0_38 = arith.constant 0 : index
      %c0_39 = arith.constant 0 : index
      %63 = vector.load %arg16[%c0_38, %c0_39] : memref<8x128xbf16, #tpu.memory_space<vmem>>, vector<8x128xbf16>
      tpu.vector_store %arg16[%c0_38, %c0_39], %62 {strides = array<i32>} : memref<8x128xbf16, #tpu.memory_space<vmem>>, vector<8x128xbf16>,
      %cst_40 = arith.constant 0.000000e+00 : f32
      %64 = vector.broadcast %cst_40 : f32 to vector<8x128xf32>
      %c0_41 = arith.constant 0 : index
      %c0_42 = arith.constant 0 : index
      %65 = vector.load %arg17[%c0_41, %c0_42] : memref<8x128xf32, #tpu.memory_space<vmem>>, vector<8x128xf32>
      tpu.vector_store %arg17[%c0_41, %c0_42], %64 {strides = array<i32>} : memref<8x128xf32, #tpu.memory_space<vmem>>, vector<8x128xf32>,
    } else {
    }
    %c0 = arith.constant 0 : index
    %c0_1 = arith.constant 0 : index
    %3 = vector.load %arg5[%c0, %c0_1] : memref<128x128xf32, #tpu.memory_space<vmem>>, vector<128x128xf32>
    %c0_2 = arith.constant 0 : index
    %c0_3 = arith.constant 0 : index
    %4 = vector.load %arg6[%c0_2, %c0_3] : memref<128x128xf32, #tpu.memory_space<vmem>>, vector<128x128xf32>
    %cst = arith.constant dense<0.000000e+00> : vector<128x128xf32>
    %5 = tpu.matmul %3, %4, %cst {dimension_numbers = #tpu.dot_dimension_numbers<[1], [0], [0], [1], [0, 0, 1, 1], [], []>} : vector<128x128xf32>, vector<128x128xf32>, vector<128x128xf32> -> vector<128x128xf32>
    %c0_4 = arith.constant 0 : index
    %c0_5 = arith.constant 0 : index
    %6 = vector.load %arg7[%c0_4, %c0_5] : memref<1x128xf32, #tpu.memory_space<vmem>>, vector<1x128xf32>
    %7 = vector.broadcast %6 : vector<1x128xf32> to vector<128x128xf32>
    %8 = arith.addf %5, %7 : vector<128x128xf32>
    %cst_6 = arith.constant 0.000000e+00 : f32
    %9 = vector.broadcast %cst_6 : f32 to vector<128x128xf32>
    %10 = arith.maximumf %8, %9 : vector<128x128xf32>
    %11 = math.absf %8 : vector<128x128xf32>
    %cst_7 = arith.constant 0.000000e+00 : f32
    %12 = vector.broadcast %cst_7 : f32 to vector<128x128xf32>
    %13 = arith.subf %12, %11 : vector<128x128xf32>
    %14 = math.exp %13 : vector<128x128xf32>
    %15 = math.log1p %14 : vector<128x128xf32>
    %16 = arith.addf %10, %15 : vector<128x128xf32>
    %cst_8 = arith.constant 0.693147182 : f32
    %17 = vector.broadcast %cst_8 : f32 to vector<128x128xf32>
    %18 = arith.subf %16, %17 : vector<128x128xf32>
    %c0_9 = arith.constant 0 : index
    %c0_10 = arith.constant 0 : index
    %19 = vector.load %arg8[%c0_9, %c0_10] : memref<128x128xf32, #tpu.memory_space<vmem>>, vector<128x128xf32>
    %cst_11 = arith.constant dense<0.000000e+00> : vector<128x128xf32>
    %20 = tpu.matmul %18, %19, %cst_11 {dimension_numbers = #tpu.dot_dimension_numbers<[1], [0], [0], [1], [0, 0, 1, 1], [], []>} : vector<128x128xf32>, vector<128x128xf32>, vector<128x128xf32> -> vector<128x128xf32>
    %c0_12 = arith.constant 0 : index
    %c0_13 = arith.constant 0 : index
    %21 = vector.load %arg9[%c0_12, %c0_13] : memref<1x128xf32, #tpu.memory_space<vmem>>, vector<1x128xf32>
    %22 = vector.broadcast %21 : vector<1x128xf32> to vector<128x128xf32>
    %23 = arith.addf %20, %22 : vector<128x128xf32>
    %c0_14 = arith.constant 0 : index
    %c0_15 = arith.constant 0 : index
    %24 = vector.load %arg4[%c0_14, %c0_15] : memref<128x1xf32, #tpu.memory_space<vmem>>, vector<128x1xf32>
    %cst_16 = arith.constant 0.314159274 : f32
    %25 = vector.broadcast %cst_16 : f32 to vector<128x1xf32>
    %26 = arith.mulf %24, %25 : vector<128x1xf32>
    %27 = math.cos %26 : vector<128x1xf32>
    %cst_17 = arith.constant 1.000000e+00 : f32
    %28 = vector.broadcast %cst_17 : f32 to vector<128x1xf32>
    %29 = arith.addf %27, %28 : vector<128x1xf32>
    %cst_18 = arith.constant 5.000000e-01 : f32
    %30 = vector.broadcast %cst_18 : f32 to vector<128x1xf32>
    %31 = arith.mulf %30, %29 : vector<128x1xf32>
    %32 = vector.broadcast %31 : vector<128x1xf32> to vector<128x128xf32>
    %33 = arith.mulf %23, %32 : vector<128x128xf32>
    %34 = tpu.iota {dimensions = array<i32: 1>} : vector<128x8xi32>
    %c0_19 = arith.constant 0 : index
    %c0_20 = arith.constant 0 : index
    %35 = vector.load %arg2[%c0_19, %c0_20] : memref<128x1xi32, #tpu.memory_space<vmem>>, vector<128x1xi32>
    %36 = vector.broadcast %35 : vector<128x1xi32> to vector<128x8xi32>
    %37 = arith.cmpi eq, %34, %36 : vector<128x8xi32>
    %38 = arith.extui %37 : vector<128x8xi1> to vector<128x8xi32>
    %39 = arith.sitofp %38 : vector<128x8xi32> to vector<128x8xf32>
    %40 = arith.truncf %39 : vector<128x8xf32> to vector<128x8xbf16>
    %c0_21 = arith.constant 0 : index
    %c0_22 = arith.constant 0 : index
    %41 = vector.load %arg16[%c0_21, %c0_22] : memref<8x128xbf16, #tpu.memory_space<vmem>>, vector<8x128xbf16>
    %cst_23 = arith.constant dense<0.000000e+00> : vector<128x128xf32>
    %42 = tpu.matmul %40, %41, %cst_23 {dimension_numbers = #tpu.dot_dimension_numbers<[1], [0], [0], [1], [0, 0, 1, 1], [], []>} : vector<128x8xbf16>, vector<8x128xbf16>, vector<128x128xf32> -> vector<128x128xf32>
    %43 = arith.mulf %42, %33 : vector<128x128xf32>
    %44 = arith.truncf %43 : vector<128x128xf32> to vector<128x128xbf16>
    %45 = tpu.iota {dimensions = array<i32: 0>} : vector<8x128xi32>
    %c0_24 = arith.constant 0 : index
    %c0_25 = arith.constant 0 : index
    %46 = vector.load %arg3[%c0_24, %c0_25] : memref<1x128xi32, #tpu.memory_space<vmem>>, vector<1x128xi32>
    %47 = vector.broadcast %46 : vector<1x128xi32> to vector<8x128xi32>
    %48 = arith.cmpi eq, %45, %47 : vector<8x128xi32>
    %49 = arith.extui %48 : vector<8x128xi1> to vector<8x128xi32>
    %50 = arith.sitofp %49 : vector<8x128xi32> to vector<8x128xf32>
    %51 = arith.truncf %50 : vector<8x128xf32> to vector<8x128xbf16>
    %c0_26 = arith.constant 0 : index
    %c0_27 = arith.constant 0 : index
    %52 = vector.load %arg17[%c0_26, %c0_27] : memref<8x128xf32, #tpu.memory_space<vmem>>, vector<8x128xf32>
    %cst_28 = arith.constant dense<0.000000e+00> : vector<8x128xf32>
    %53 = tpu.matmul %51, %44, %cst_28 {dimension_numbers = #tpu.dot_dimension_numbers<[1], [0], [0], [1], [0, 0, 1, 1], [], []>} : vector<8x128xbf16>, vector<128x128xbf16>, vector<8x128xf32> -> vector<8x128xf32>
    %54 = arith.addf %52, %53 : vector<8x128xf32>
    %c0_29 = arith.constant 0 : index
    %c0_30 = arith.constant 0 : index
    %55 = vector.load %arg17[%c0_29, %c0_30] : memref<8x128xf32, #tpu.memory_space<vmem>>, vector<8x128xf32>
    tpu.vector_store %arg17[%c0_29, %c0_30], %54 {strides = array<i32>} : memref<8x128xf32, #tpu.memory_space<vmem>>, vector<8x128xf32>,
    %c0_i32_31 = arith.constant 0 : i32
    %56 = arith.cmpi eq, %arg0, %c0_i32_31 : i32
    %57 = arith.extui %56 : i1 to i32
    %c0_i32_32 = arith.constant 0 : i32
    %58 = arith.cmpi ne, %57, %c0_i32_32 : i32
    scf.if %58 {
      %c0_33 = arith.constant 0 : index
      %c0_34 = arith.constant 0 : index
      %59 = vector.load %arg17[%c0_33, %c0_34] : memref<8x128xf32, #tpu.memory_space<vmem>>, vector<8x128xf32>
      %c0_35 = arith.constant 0 : index
      %c0_36 = arith.constant 0 : index
      %60 = vector.load %arg11[%c0_35, %c0_36] : memref<128x128xf32, #tpu.memory_space<vmem>>, vector<128x128xf32>
      %cst_37 = arith.constant dense<0.000000e+00> : vector<8x128xf32>
      %61 = tpu.matmul %59, %60, %cst_37 {dimension_numbers = #tpu.dot_dimension_numbers<[1], [0], [0], [1], [0, 0, 1, 1], [], []>} : vector<8x128xf32>, vector<128x128xf32>, vector<8x128xf32> -> vector<8x128xf32>
      %c0_38 = arith.constant 0 : index
      %c0_39 = arith.constant 0 : index
      %62 = vector.load %arg12[%c0_38, %c0_39] : memref<1x128xf32, #tpu.memory_space<vmem>>, vector<1x128xf32>
      %63 = vector.broadcast %62 : vector<1x128xf32> to vector<8x128xf32>
      %64 = arith.addf %61, %63 : vector<8x128xf32>
      %cst_40 = arith.constant 0.000000e+00 : f32
      %65 = vector.broadcast %cst_40 : f32 to vector<8x128xf32>
      %66 = arith.maximumf %64, %65 : vector<8x128xf32>
      %67 = math.absf %64 : vector<8x128xf32>
      %cst_41 = arith.constant 0.000000e+00 : f32
      %68 = vector.broadcast %cst_41 : f32 to vector<8x128xf32>
      %69 = arith.subf %68, %67 : vector<8x128xf32>
      %70 = math.exp %69 : vector<8x128xf32>
      %71 = math.log1p %70 : vector<8x128xf32>
      %72 = arith.addf %66, %71 : vector<8x128xf32>
      %cst_42 = arith.constant 0.693147182 : f32
      %73 = vector.broadcast %cst_42 : f32 to vector<8x128xf32>
      %74 = arith.subf %72, %73 : vector<8x128xf32>
      %c0_43 = arith.constant 0 : index
      %c0_44 = arith.constant 0 : index
      %75 = vector.load %arg13[%c0_43, %c0_44] : memref<128x128xf32, #tpu.memory_space<vmem>>, vector<128x128xf32>
      %cst_45 = arith.constant dense<0.000000e+00> : vector<8x128xf32>
      %76 = tpu.matmul %74, %75, %cst_45 {dimension_numbers = #tpu.dot_dimension_numbers<[1], [0], [0], [1], [0, 0, 1, 1], [], []>} : vector<8x128xf32>, vector<128x128xf32>, vector<8x128xf32> -> vector<8x128xf32>
      %c0_46 = arith.constant 0 : index
      %c0_47 = arith.constant 0 : index
      %77 = vector.load %arg14[%c0_46, %c0_47] : memref<1x128xf32, #tpu.memory_space<vmem>>, vector<1x128xf32>
      %78 = vector.broadcast %77 : vector<1x128xf32> to vector<8x128xf32>
      %79 = arith.addf %76, %78 : vector<8x128xf32>
      %c0_48 = arith.constant 0 : index
      %c0_49 = arith.constant 0 : index
      %80 = vector.load %arg15[%c0_48, %c0_49] : memref<8x128xf32, #tpu.memory_space<vmem>>, vector<8x128xf32>
      tpu.vector_store %arg15[%c0_48, %c0_49], %79 {strides = array<i32>} : memref<8x128xf32, #tpu.memory_space<vmem>>, vector<8x128xf32>,
    } else {
    }
    return
  }
  func.func @transform_0(%arg0: i32) -> (i32, i32) {
    %c0_i32 = arith.constant 0 : i32
    %c0_i32_0 = arith.constant 0 : i32
    %c0_i32_1 = arith.constant 0 : i32
    return %c0_i32, %c0_i32_0 : i32, i32
  }
  func.func @transform_1(%arg0: i32) -> (i32, i32) {
    %c0_i32 = arith.constant 0 : i32
    %c0_i32_0 = arith.constant 0 : i32
    return %arg0, %c0_i32 : i32, i32
  }
  func.func @transform_2(%arg0: i32) -> (i32, i32) {
    %c0_i32 = arith.constant 0 : i32
    %c0_i32_0 = arith.constant 0 : i32
    return %c0_i32, %arg0 : i32, i32
  }
  func.func @transform_3(%arg0: i32) -> (i32, i32) {
    %c0_i32 = arith.constant 0 : i32
    %c0_i32_0 = arith.constant 0 : i32
    return %arg0, %c0_i32 : i32, i32
  }
  func.func @transform_4(%arg0: i32) -> (i32, i32) {
    %c0_i32 = arith.constant 0 : i32
    %c0_i32_0 = arith.constant 0 : i32
    return %arg0, %c0_i32 : i32, i32
  }
  func.func @transform_5(%arg0: i32) -> (i32, i32) {
    %c0_i32 = arith.constant 0 : i32
    %c0_i32_0 = arith.constant 0 : i32
    %c0_i32_1 = arith.constant 0 : i32
    return %c0_i32, %c0_i32_0 : i32, i32
  }
  func.func @transform_6(%arg0: i32) -> (i32, i32) {
    %c0_i32 = arith.constant 0 : i32
    %c0_i32_0 = arith.constant 0 : i32
    %c0_i32_1 = arith.constant 0 : i32
    return %c0_i32, %c0_i32_0 : i32, i32
  }
  func.func @transform_7(%arg0: i32) -> (i32, i32) {
    %c0_i32 = arith.constant 0 : i32
    %c0_i32_0 = arith.constant 0 : i32
    %c0_i32_1 = arith.constant 0 : i32
    return %c0_i32, %c0_i32_0 : i32, i32
  }
  func.func @transform_8(%arg0: i32) -> (i32, i32) {
    %c0_i32 = arith.constant 0 : i32
    %c0_i32_0 = arith.constant 0 : i32
    %c0_i32_1 = arith.constant 0 : i32
    return %c0_i32, %c0_i32_0 : i32, i32
  }
  func.func @transform_9(%arg0: i32) -> (i32, i32) {
    %c0_i32 = arith.constant 0 : i32
    %c0_i32_0 = arith.constant 0 : i32
    %c0_i32_1 = arith.constant 0 : i32
    return %c0_i32, %c0_i32_0 : i32, i32
  }
  func.func @transform_10(%arg0: i32) -> (i32, i32) {
    %c0_i32 = arith.constant 0 : i32
    %c0_i32_0 = arith.constant 0 : i32
    %c0_i32_1 = arith.constant 0 : i32
    return %c0_i32, %c0_i32_0 : i32, i32
  }
  func.func @transform_11(%arg0: i32) -> (i32, i32) {
    %c0_i32 = arith.constant 0 : i32
    %c0_i32_0 = arith.constant 0 : i32
    %c0_i32_1 = arith.constant 0 : i32
    return %c0_i32, %c0_i32_0 : i32, i32
  }
  func.func @transform_12(%arg0: i32) -> (i32, i32) {
    %c0_i32 = arith.constant 0 : i32
    %c0_i32_0 = arith.constant 0 : i32
    %c0_i32_1 = arith.constant 0 : i32
    return %c0_i32, %c0_i32_0 : i32, i32
  }
  func.func @transform_13(%arg0: i32) -> (i32, i32) {
    %c0_i32 = arith.constant 0 : i32
    %c0_i32_0 = arith.constant 0 : i32
    %c0_i32_1 = arith.constant 0 : i32
    return %c0_i32, %c0_i32_0 : i32, i32
  }
  func.func @transform_14(%arg0: i32) -> (i32, i32) {
    %c0_i32 = arith.constant 0 : i32
    %c0_i32_0 = arith.constant 0 : i32
    %c0_i32_1 = arith.constant 0 : i32
    return %c0_i32, %c0_i32_0 : i32, i32
  }
}

</mosaic_0001>

<llo_original>
// kernel: tpu_custom_call.1
$region0: #{tpu_custom_call.1}
  #allocation0 [shape = 'u32[]', space=smem, size = 0x4, offset = 0x4, fixed_abs, tag = 'smem constant byte address 0x4 - core index']
  #allocation1 [shape = 'u32[144,128]{1,0:T(1,128)}', space=vmem, size = 0x12000, scoped, tag = 'internal scratch']
  #allocation2 [shape = 'bf16[8,128]{1,0:T(8,128)(2,1)}', space=vmem, size = 0x800, scoped, tag = 'scratch operand']
  #allocation3 [shape = 'f32[8,128]{1,0:T(8,128)}', space=vmem, size = 0x1000, scoped, tag = 'scratch operand']
  %s0 = inlined_call_operand.hbm [shape: f32[8,128], index: 0, kind: input, shape index: {}]
  %s1 = inlined_call_operand.vmem [shape: s32[128,1], index: 1, kind: input, shape index: {}]
  %s2 = inlined_call_operand.vmem [shape: s32[1,128], index: 2, kind: input, shape index: {}]
  %s3 = inlined_call_operand.vmem [shape: f32[128,1], index: 3, kind: input, shape index: {}]
  %s4 = inlined_call_operand.vmem [shape: f32[128,128], index: 4, kind: input, shape index: {}]
  %s5 = inlined_call_operand.vmem [shape: f32[128,128], index: 5, kind: input, shape index: {}]
  %s6 = inlined_call_operand.vmem [shape: f32[1,128], index: 6, kind: input, shape index: {}]
  %s7 = inlined_call_operand.hbm [shape: f32[128,128], index: 7, kind: input, shape index: {}]
  %s8 = inlined_call_operand.vmem [shape: f32[1,128], index: 8, kind: input, shape index: {}]
  %s9 = inlined_call_operand.hbm [shape: f32[128,128], index: 9, kind: input, shape index: {}]
  %s10 = inlined_call_operand.hbm [shape: f32[128,128], index: 10, kind: input, shape index: {}]
  %s11 = inlined_call_operand.vmem [shape: f32[1,128], index: 11, kind: input, shape index: {}]
  %s12 = inlined_call_operand.hbm [shape: f32[128,128], index: 12, kind: input, shape index: {}]
  %s13 = inlined_call_operand.vmem [shape: f32[1,128], index: 13, kind: input, shape index: {}]
  %s14 = inlined_call_operand.hbm [shape: f32[8,128], index: 14, kind: output, shape index: {}]
  %s15 = sld [smem:[#allocation0]]
  $region94: #{tpu_custom_call.1} parent=0
    _
  %s17 = ssub.s32 1, %s15
  %s18 = scalar_select 0, %s17, %s15
  $region1: #{tpu_custom_call.1} parent=0
    #allocation4 [shape = 'u8[4096]{0}', space=vmem, size = 0x1000, scoped, tag = 'input window, operand 0, single buffered']
    #allocation5 [shape = 's32[1]{0}', space=sflag, size = 0x4, scoped, tag = 'scoped memory for tpu_custom_call.1']
    #allocation6 [shape = 's32[1]{0}', space=sflag, size = 0x4, scoped, tag = 'scoped memory for tpu_custom_call.1']
    #allocation7 [shape = 'u8[65536]{0}', space=vmem, size = 0x10000, scoped, tag = 'input window, operand 7, single buffered']
    #allocation8 [shape = 's32[1]{0}', space=sflag, size = 0x4, scoped, tag = 'scoped memory for tpu_custom_call.1']
    #allocation9 [shape = 'u8[65536]{0}', space=vmem, size = 0x10000, scoped, tag = 'input window, operand 9, single buffered']
    #allocation10 [shape = 'u8[65536]{0}', space=vmem, size = 0x10000, scoped, tag = 'input window, operand 10, single buffered']
    #allocation11 [shape = 's32[1]{0}', space=sflag, size = 0x4, scoped, tag = 'scoped memory for tpu_custom_call.1']
    #allocation12 [shape = 'u8[65536]{0}', space=vmem, size = 0x10000, scoped, tag = 'input window, operand 12, single buffered']
    #allocation13 [shape = 'u8[4096]{0}', space=vmem, size = 0x1000, scoped, tag = 'output window, operand 0, single buffered']
    %19 = vsyncpa [#allocation5], 0
    %20 = vsyncpa [#allocation8], 0
    %21 = vsyncpa [#allocation11], 0
    %22 = vsyncpa [#allocation6], 0
    // Predicated region
    $region2: #{tpu_custom_call.1} parent=1 // pred_check
      _
    $region3: #{tpu_custom_call.1} parent=1 // pred_check_branch
      %24 = sbr.rel (0) target = $region5
    $region4: #{tpu_custom_call.1} parent=1 // pred_region
      %s26 = ssub.s32 128, 128
      %27 = vsyncadd [#allocation5], %s26
      %s29 = sshll.u32 [#allocation4], 4
      %s30 = int_to_ptr.vmem [resolvable:$true] %s29
      %32 = dma.hbm_to_vmem [thread:$0]  %s0, 128, %s30, [#allocation5]
    $region5: #{tpu_custom_call.1} parent=1 // pred_fallthru
      _
    // Predicated region
    $region6: #{tpu_custom_call.1} parent=1 // pred_check
      _
    $region7: #{tpu_custom_call.1} parent=1 // pred_check_branch
      %34 = sbr.rel (0) target = $region9
    $region8: #{tpu_custom_call.1} parent=1 // pred_region
      _
    $region9: #{tpu_custom_call.1} parent=1 // pred_fallthru
      _
    // Predicated region
    $region10: #{tpu_custom_call.1} parent=1 // pred_check
      _
    $region11: #{tpu_custom_call.1} parent=1 // pred_check_branch
      %36 = sbr.rel (0) target = $region13
    $region12: #{tpu_custom_call.1} parent=1 // pred_region
      _
    $region13: #{tpu_custom_call.1} parent=1 // pred_fallthru
      _
    // Predicated region
    $region14: #{tpu_custom_call.1} parent=1 // pred_check
      _
    $region15: #{tpu_custom_call.1} parent=1 // pred_check_branch
      %38 = sbr.rel (0) target = $region17
    $region16: #{tpu_custom_call.1} parent=1 // pred_region
      _
    $region17: #{tpu_custom_call.1} parent=1 // pred_fallthru
      _
    // Predicated region
    $region18: #{tpu_custom_call.1} parent=1 // pred_check
      _
    $region19: #{tpu_custom_call.1} parent=1 // pred_check_branch
      %40 = sbr.rel (0) target = $region21
    $region20: #{tpu_custom_call.1} parent=1 // pred_region
      _
    $region21: #{tpu_custom_call.1} parent=1 // pred_fallthru
      _
    // Predicated region
    $region22: #{tpu_custom_call.1} parent=1 // pred_check
      _
    $region23: #{tpu_custom_call.1} parent=1 // pred_check_branch
      %42 = sbr.rel (0) target = $region25
    $region24: #{tpu_custom_call.1} parent=1 // pred_region
      _
    $region25: #{tpu_custom_call.1} parent=1 // pred_fallthru
      _
    // Predicated region
    $region26: #{tpu_custom_call.1} parent=1 // pred_check
      _
    $region27: #{tpu_custom_call.1} parent=1 // pred_check_branch
      %44 = sbr.rel (0) target = $region29
    $region28: #{tpu_custom_call.1} parent=1 // pred_region
      _
    $region29: #{tpu_custom_call.1} parent=1 // pred_fallthru
      _
    // Predicated region
    $region30: #{tpu_custom_call.1} parent=1 // pred_check
      _
    $region31: #{tpu_custom_call.1} parent=1 // pred_check_branch
      %46 = sbr.rel (0) target = $region33
    $region32: #{tpu_custom_call.1} parent=1 // pred_region
      %s48 = ssub.s32 2048, 2048
      %49 = vsyncadd [#allocation8], %s48
      %s50 = sshll.u32 [#allocation7], 4
      %s51 = int_to_ptr.vmem [resolvable:$true] %s50
      %56 = dma.hbm_to_vmem [thread:$0]  %s7, 2048, %s51, [#allocation8], 128, 128, 8
    $region33: #{tpu_custom_call.1} parent=1 // pred_fallthru
      _
    // Predicated region
    $region34: #{tpu_custom_call.1} parent=1 // pred_check
      _
    $region35: #{tpu_custom_call.1} parent=1 // pred_check_branch
      %58 = sbr.rel (0) target = $region37
    $region36: #{tpu_custom_call.1} parent=1 // pred_region
      _
    $region37: #{tpu_custom_call.1} parent=1 // pred_fallthru
      _
    // Predicated region
    $region38: #{tpu_custom_call.1} parent=1 // pred_check
      _
    $region39: #{tpu_custom_call.1} parent=1 // pred_check_branch
      %60 = sbr.rel (0) target = $region41
    $region40: #{tpu_custom_call.1} parent=1 // pred_region
      %s62 = ssub.s32 2048, 2048
      %63 = vsyncadd [#allocation8], %s62
      %s64 = sshll.u32 [#allocation9], 4
      %s65 = int_to_ptr.vmem [resolvable:$true] %s64
      %70 = dma.hbm_to_vmem [thread:$0]  %s9, 2048, %s65, [#allocation8], 128, 128, 8
    $region41: #{tpu_custom_call.1} parent=1 // pred_fallthru
      _
    // Predicated region
    $region42: #{tpu_custom_call.1} parent=1 // pred_check
      _
    $region43: #{tpu_custom_call.1} parent=1 // pred_check_branch
      %72 = sbr.rel (0) target = $region45
    $region44: #{tpu_custom_call.1} parent=1 // pred_region
      %s74 = ssub.s32 2048, 2048
      %75 = vsyncadd [#allocation11], %s74
      %s76 = sshll.u32 [#allocation10], 4
      %s77 = int_to_ptr.vmem [resolvable:$true] %s76
      %82 = dma.hbm_to_vmem [thread:$0]  %s10, 2048, %s77, [#allocation11], 128, 128, 8
    $region45: #{tpu_custom_call.1} parent=1 // pred_fallthru
      _
    // Predicated region
    $region46: #{tpu_custom_call.1} parent=1 // pred_check
      _
    $region47: #{tpu_custom_call.1} parent=1 // pred_check_branch
      %84 = sbr.rel (0) target = $region49
    $region48: #{tpu_custom_call.1} parent=1 // pred_region
      _
    $region49: #{tpu_custom_call.1} parent=1 // pred_fallthru
      _
    // Predicated region
    $region50: #{tpu_custom_call.1} parent=1 // pred_check
      _
    $region51: #{tpu_custom_call.1} parent=1 // pred_check_branch
      %86 = sbr.rel (0) target = $region53
    $region52: #{tpu_custom_call.1} parent=1 // pred_region
      %s88 = ssub.s32 2048, 2048
      %89 = vsyncadd [#allocation11], %s88
      %s90 = sshll.u32 [#allocation12], 4
      %s91 = int_to_ptr.vmem [resolvable:$true] %s90
      %96 = dma.hbm_to_vmem [thread:$0]  %s12, 2048, %s91, [#allocation11], 128, 128, 8
    $region53: #{tpu_custom_call.1} parent=1 // pred_fallthru
      _
    // Predicated region
    $region54: #{tpu_custom_call.1} parent=1 // pred_check
      _
    $region55: #{tpu_custom_call.1} parent=1 // pred_check_branch
      %98 = sbr.rel (0) target = $region57
    $region56: #{tpu_custom_call.1} parent=1 // pred_region
      _
    $region57: #{tpu_custom_call.1} parent=1 // pred_fallthru
      _
    // Predicated region
    $region58: #{tpu_custom_call.1} parent=1 // pred_check
      _
    $region59: #{tpu_custom_call.1} parent=1 // pred_check_branch
      %100 = sbr.rel (0) target = $region61
    $region60: #{tpu_custom_call.1} parent=1 // pred_region
      %101 = dma.done [#allocation5], 128
    $region61: #{tpu_custom_call.1} parent=1 // pred_fallthru
      _
    // Predicated region
    $region62: #{tpu_custom_call.1} parent=1 // pred_check
      _
    $region63: #{tpu_custom_call.1} parent=1 // pred_check_branch
      %103 = sbr.rel (0) target = $region65
    $region64: #{tpu_custom_call.1} parent=1 // pred_region
      %104 = dma.done [#allocation8], 2048
    $region65: #{tpu_custom_call.1} parent=1 // pred_fallthru
      _
    // Predicated region
    $region66: #{tpu_custom_call.1} parent=1 // pred_check
      _
    $region67: #{tpu_custom_call.1} parent=1 // pred_check_branch
      %106 = sbr.rel (0) target = $region69
    $region68: #{tpu_custom_call.1} parent=1 // pred_region
      %107 = dma.done [#allocation8], 2048
    $region69: #{tpu_custom_call.1} parent=1 // pred_fallthru
      _
    // Predicated region
    $region70: #{tpu_custom_call.1} parent=1 // pred_check
      _
    $region71: #{tpu_custom_call.1} parent=1 // pred_check_branch
      %109 = sbr.rel (0) target = $region73
    $region72: #{tpu_custom_call.1} parent=1 // pred_region
      %110 = dma.done [#allocation11], 2048
    $region73: #{tpu_custom_call.1} parent=1 // pred_fallthru
      _
    // Predicated region
    $region74: #{tpu_custom_call.1} parent=1 // pred_check
      _
    $region75: #{tpu_custom_call.1} parent=1 // pred_check_branch
      %112 = sbr.rel (0) target = $region77
    $region76: #{tpu_custom_call.1} parent=1 // pred_region
      %113 = dma.done [#allocation11], 2048
    $region77: #{tpu_custom_call.1} parent=1 // pred_fallthru
      _
    %p115 = scmp.eq.s32.totalorder 0, 0
    // Predicated region
    $region78: #{tpu_custom_call.1} parent=1 // pred_check
      %p116 = pneg %p115
    $region79: #{tpu_custom_call.1} parent=1 // pred_check_branch
      %118 = sbr.rel (%p116) target = $region81
    $region80: #{tpu_custom_call.1} parent=1 // pred_region
      %v119 = vld [vmem:[#allocation4] sm:$0xff]
      %v120 = vld [vmem:[#allocation9] sm:$0xff]
      %v121 = vld [vmem:[#allocation9 + $0x8] sm:$0xff]
      %v122 = vld [vmem:[#allocation9 + $0x10] sm:$0xff]
      %v123 = vld [vmem:[#allocation9 + $0x18] sm:$0xff]
      %v124 = vld [vmem:[#allocation9 + $0x20] sm:$0xff]
      %v125 = vld [vmem:[#allocation9 + $0x28] sm:$0xff]
      %v126 = vld [vmem:[#allocation9 + $0x30] sm:$0xff]
      %v127 = vld [vmem:[#allocation9 + $0x38] sm:$0xff]
      %v128 = vld [vmem:[#allocation9 + $0x40] sm:$0xff]
      %v129 = vld [vmem:[#allocation9 + $0x48] sm:$0xff]
      %v130 = vld [vmem:[#allocation9 + $0x50] sm:$0xff]
      %v131 = vld [vmem:[#allocation9 + $0x58] sm:$0xff]
      %v132 = vld [vmem:[#allocation9 + $0x60] sm:$0xff]
      %v133 = vld [vmem:[#allocation9 + $0x68] sm:$0xff]
      %v134 = vld [vmem:[#allocation9 + $0x70] sm:$0xff]
      %v135 = vld [vmem:[#allocation9 + $0x78] sm:$0xff]
      %136 = vmatprep.subr.mxu0 0.0
      %137 = vmatpush1.msra.mxu0 %v135
      %138 = vmatprep.subr.mxu0 0.0
      %139 = vmatpush1.msra.mxu0 %v134
      %140 = vmatprep.subr.mxu0 0.0
      %141 = vmatpush1.msra.mxu0 %v133
      %142 = vmatprep.subr.mxu0 0.0
      %143 = vmatpush1.msra.mxu0 %v132
      %144 = vmatprep.subr.mxu0 0.0
      %145 = vmatpush1.msra.mxu0 %v131
      %146 = vmatprep.subr.mxu0 0.0
      %147 = vmatpush1.msra.mxu0 %v130
      %148 = vmatprep.subr.mxu0 0.0
      %149 = vmatpush1.msra.mxu0 %v129
      %150 = vmatprep.subr.mxu0 0.0
      %151 = vmatpush1.msra.mxu0 %v128
      %152 = vmatprep.subr.mxu0 0.0
      %153 = vmatpush1.msra.mxu0 %v127
      %154 = vmatprep.subr.mxu0 0.0
      %155 = vmatpush1.msra.mxu0 %v126
      %156 = vmatprep.subr.mxu0 0.0
      %157 = vmatpush1.msra.mxu0 %v125
      %158 = vmatprep.subr.mxu0 0.0
      %159 = vmatpush1.msra.mxu0 %v124
      %160 = vmatprep.subr.mxu0 0.0
      %161 = vmatpush1.msra.mxu0 %v123
      %162 = vmatprep.subr.mxu0 0.0
      %163 = vmatpush1.msra.mxu0 %v122
      %164 = vmatprep.subr.mxu0 0.0
      %165 = vmatpush1.msra.mxu0 %v121
      %166 = vmatprep.subr.mxu0 0.0
      %167 = vmatpush1.msra.mxu0 %v120
      %168 = vmatprep.subr.mxu0 0.0
      %169 = vmatpush2.msra.mxu0 0.0
      %170 = vmatprep.subr.mxu0 0.0
      %171 = vmatpush2.msra.mxu0 0.0
      %172 = vmatprep.subr.mxu0 0.0
      %173 = vmatpush2.msra.mxu0 0.0
      %174 = vmatprep.subr.mxu0 0.0
      %175 = vmatpush2.msra.mxu0 0.0
      %176 = vmatprep.subr.mxu0 0.0
      %177 = vmatpush2.msra.mxu0 0.0
      %178 = vmatprep.subr.mxu0 0.0
      %179 = vmatpush2.msra.mxu0 0.0
      %180 = vmatprep.subr.mxu0 0.0
      %181 = vmatpush2.msra.mxu0 0.0
      %182 = vmatprep.subr.mxu0 0.0
      %183 = vmatpush2.msra.mxu0 0.0
      %184 = vmatprep.subr.mxu0 0.0
      %185 = vmatpush2.msra.mxu0 0.0
      %186 = vmatprep.subr.mxu0 0.0
      %187 = vmatpush2.msra.mxu0 0.0
      %188 = vmatprep.subr.mxu0 0.0
      %189 = vmatpush2.msra.mxu0 0.0
      %190 = vmatprep.subr.mxu0 0.0
      %191 = vmatpush2.msra.mxu0 0.0
      %192 = vmatprep.subr.mxu0 0.0
      %193 = vmatpush2.msra.mxu0 0.0
      %194 = vmatprep.subr.mxu0 0.0
      %195 = vmatpush2.msra.mxu0 0.0
      %196 = vmatprep.subr.mxu0 0.0
      %197 = vmatpush2.msra.mxu0 0.0
      %198 = vmatprep.subr.mxu0 0.0
      %199 = vmatpush2.msra.mxu0 0.0
      %200 = vmatprep.mubr.f32.mxu0 0.0
      %201 = vmatmul.mubr.f32.gmra.mxu0 %v119
      %v202 = vpop.f32.mrf.mxu0
      %v203 = vadd.f32 0.0, %v202
      %v204 = vpop.f32.mrf.mxu0
      %205 = vdwg.mxu0
      %v206 = vpack.c.bf16 %v203, %v203
      %207 = vst [vmem:[#allocation2] sm:$0xf] %v206
      %208 = vst [vmem:[#allocation3] sm:$0xff] 0.0
    $region81: #{tpu_custom_call.1} parent=1 // pred_fallthru
      _
    %v209 = vld [vmem:[%s4] sm:$0xff]
    %v210 = vld [vmem:[%s4 + $0x8] sm:$0xff]
    %v211 = vld [vmem:[%s4 + $0x10] sm:$0xff]
    %v212 = vld [vmem:[%s4 + $0x18] sm:$0xff]
    %v213 = vld [vmem:[%s4 + $0x20] sm:$0xff]
    %v214 = vld [vmem:[%s4 + $0x28] sm:$0xff]
    %v215 = vld [vmem:[%s4 + $0x30] sm:$0xff]
    %v216 = vld [vmem:[%s4 + $0x38] sm:$0xff]
    %v217 = vld [vmem:[%s4 + $0x40] sm:$0xff]
    %v218 = vld [vmem:[%s4 + $0x48] sm:$0xff]
    %v219 = vld [vmem:[%s4 + $0x50] sm:$0xff]
    %v220 = vld [vmem:[%s4 + $0x58] sm:$0xff]
    %v221 = vld [vmem:[%s4 + $0x60] sm:$0xff]
    %v222 = vld [vmem:[%s4 + $0x68] sm:$0xff]
    %v223 = vld [vmem:[%s4 + $0x70] sm:$0xff]
    %v224 = vld [vmem:[%s4 + $0x78] sm:$0xff]
    %v225 = vld [vmem:[%s5] sm:$0xff]
    %v226 = vld [vmem:[%s5 + $0x8] sm:$0xff]
    %v227 = vld [vmem:[%s5 + $0x10] sm:$0xff]
    %v228 = vld [vmem:[%s5 + $0x18] sm:$0xff]
    %v229 = vld [vmem:[%s5 + $0x20] sm:$0xff]
    %v230 = vld [vmem:[%s5 + $0x28] sm:$0xff]
    %v231 = vld [vmem:[%s5 + $0x30] sm:$0xff]
    %v232 = vld [vmem:[%s5 + $0x38] sm:$0xff]
    %v233 = vld [vmem:[%s5 + $0x40] sm:$0xff]
    %v234 = vld [vmem:[%s5 + $0x48] sm:$0xff]
    %v235 = vld [vmem:[%s5 + $0x50] sm:$0xff]
    %v236 = vld [vmem:[%s5 + $0x58] sm:$0xff]
    %v237 = vld [vmem:[%s5 + $0x60] sm:$0xff]
    %v238 = vld [vmem:[%s5 + $0x68] sm:$0xff]
    %v239 = vld [vmem:[%s5 + $0x70] sm:$0xff]
    %v240 = vld [vmem:[%s5 + $0x78] sm:$0xff]
    %v241 = vld [vmem:[%s6] sm:$0x1]
    %v243 = vlaneseq
    %v244 = vshrl.u32 %v243, 7
    %v245 = vsub.s32 0, %v244
    %v246 = vrot.slane %v241, %v245
    %248 = vmatprep.subr.mxu0 0.0
    %249 = vmatpush1.msra.mxu0 %v240
    %250 = vmatprep.subr.mxu0 0.0
    %251 = vmatpush1.msra.mxu0 %v239
    %252 = vmatprep.subr.mxu0 0.0
    %253 = vmatpush1.msra.mxu0 %v238
    %254 = vmatprep.subr.mxu0 0.0
    %255 = vmatpush1.msra.mxu0 %v237
    %256 = vmatprep.subr.mxu0 0.0
    %257 = vmatpush1.msra.mxu0 %v236
    %258 = vmatprep.subr.mxu0 0.0
    %259 = vmatpush1.msra.mxu0 %v235
    %260 = vmatprep.subr.mxu0 0.0
    %261 = vmatpush1.msra.mxu0 %v234
    %262 = vmatprep.subr.mxu0 0.0
    %263 = vmatpush1.msra.mxu0 %v233
    %264 = vmatprep.subr.mxu0 0.0
    %265 = vmatpush1.msra.mxu0 %v232
    %266 = vmatprep.subr.mxu0 0.0
    %267 = vmatpush1.msra.mxu0 %v231
    %268 = vmatprep.subr.mxu0 0.0
    %269 = vmatpush1.msra.mxu0 %v230
    %270 = vmatprep.subr.mxu0 0.0
    %271 = vmatpush1.msra.mxu0 %v229
    %272 = vmatprep.subr.mxu0 0.0
    %273 = vmatpush1.msra.mxu0 %v228
    %274 = vmatprep.subr.mxu0 0.0
    %275 = vmatpush1.msra.mxu0 %v227
    %276 = vmatprep.subr.mxu0 0.0
    %277 = vmatpush1.msra.mxu0 %v226
    %278 = vmatprep.subr.mxu0 0.0
    %279 = vmatpush1.msra.mxu0 %v225
    %280 = vmatprep.subr.mxu0 0.0
    %281 = vmatpush2.msra.mxu0 0.0
    %282 = vmatprep.subr.mxu0 0.0
    %283 = vmatpush2.msra.mxu0 0.0
    %284 = vmatprep.subr.mxu0 0.0
    %285 = vmatpush2.msra.mxu0 0.0
    %286 = vmatprep.subr.mxu0 0.0
    %287 = vmatpush2.msra.mxu0 0.0
    %288 = vmatprep.subr.mxu0 0.0
    %289 = vmatpush2.msra.mxu0 0.0
    %290 = vmatprep.subr.mxu0 0.0
    %291 = vmatpush2.msra.mxu0 0.0
    %292 = vmatprep.subr.mxu0 0.0
    %293 = vmatpush2.msra.mxu0 0.0
    %294 = vmatprep.subr.mxu0 0.0
    %295 = vmatpush2.msra.mxu0 0.0
    %296 = vmatprep.subr.mxu0 0.0
    %297 = vmatpush2.msra.mxu0 0.0
    %298 = vmatprep.subr.mxu0 0.0
    %299 = vmatpush2.msra.mxu0 0.0
    %300 = vmatprep.subr.mxu0 0.0
    %301 = vmatpush2.msra.mxu0 0.0
    %302 = vmatprep.subr.mxu0 0.0
    %303 = vmatpush2.msra.mxu0 0.0
    %304 = vmatprep.subr.mxu0 0.0
    %305 = vmatpush2.msra.mxu0 0.0
    %306 = vmatprep.subr.mxu0 0.0
    %307 = vmatpush2.msra.mxu0 0.0
    %308 = vmatprep.subr.mxu0 0.0
    %309 = vmatpush2.msra.mxu0 0.0
    %310 = vmatprep.subr.mxu0 0.0
    %311 = vmatpush2.msra.mxu0 0.0
    %312 = vmatprep.mubr.f32.mxu0 0.0
    %313 = vmatmul.mubr.f32.gmra.mxu0 %v209
    %v314 = vpop.f32.mrf.mxu0
    %v315 = vadd.f32 %v246, %v314
    %v316 = vpop.f32.mrf.mxu0
    %317 = vmatprep.mubr.f32.mxu0 0.0
    %318 = vmatmul.mubr.f32.gmra.mxu0 %v210
    %v319 = vpop.f32.mrf.mxu0
    %v320 = vadd.f32 %v246, %v319
    %v321 = vpop.f32.mrf.mxu0
    %322 = vmatprep.mubr.f32.mxu0 0.0
    %323 = vmatmul.mubr.f32.gmra.mxu0 %v211
    %v324 = vpop.f32.mrf.mxu0
    %v325 = vadd.f32 %v246, %v324
    %v326 = vpop.f32.mrf.mxu0
    %327 = vmatprep.mubr.f32.mxu0 0.0
    %328 = vmatmul.mubr.f32.gmra.mxu0 %v212
    %v329 = vpop.f32.mrf.mxu0
    %v330 = vadd.f32 %v246, %v329
    %v331 = vpop.f32.mrf.mxu0
    %332 = vmatprep.mubr.f32.mxu0 0.0
    %333 = vmatmul.mubr.f32.gmra.mxu0 %v213
    %v334 = vpop.f32.mrf.mxu0
    %v335 = vadd.f32 %v246, %v334
    %v336 = vpop.f32.mrf.mxu0
    %337 = vmatprep.mubr.f32.mxu0 0.0
    %338 = vmatmul.mubr.f32.gmra.mxu0 %v214
    %v339 = vpop.f32.mrf.mxu0
    %v340 = vadd.f32 %v246, %v339
    %v341 = vpop.f32.mrf.mxu0
    %342 = vmatprep.mubr.f32.mxu0 0.0
    %343 = vmatmul.mubr.f32.gmra.mxu0 %v215
    %v344 = vpop.f32.mrf.mxu0
    %v345 = vadd.f32 %v246, %v344
    %v346 = vpop.f32.mrf.mxu0
    %347 = vmatprep.mubr.f32.mxu0 0.0
    %348 = vmatmul.mubr.f32.gmra.mxu0 %v216
    %v349 = vpop.f32.mrf.mxu0
    %v350 = vadd.f32 %v246, %v349
    %v351 = vpop.f32.mrf.mxu0
    %352 = vmatprep.mubr.f32.mxu0 0.0
    %353 = vmatmul.mubr.f32.gmra.mxu0 %v217
    %v354 = vpop.f32.mrf.mxu0
    %v355 = vadd.f32 %v246, %v354
    %v356 = vpop.f32.mrf.mxu0
    %357 = vmatprep.mubr.f32.mxu0 0.0
    %358 = vmatmul.mubr.f32.gmra.mxu0 %v218
    %v359 = vpop.f32.mrf.mxu0
    %v360 = vadd.f32 %v246, %v359
    %v361 = vpop.f32.mrf.mxu0
    %362 = vmatprep.mubr.f32.mxu0 0.0
    %363 = vmatmul.mubr.f32.gmra.mxu0 %v219
    %v364 = vpop.f32.mrf.mxu0
    %v365 = vadd.f32 %v246, %v364
    %v366 = vpop.f32.mrf.mxu0
    %367 = vmatprep.mubr.f32.mxu0 0.0
    %368 = vmatmul.mubr.f32.gmra.mxu0 %v220
    %v369 = vpop.f32.mrf.mxu0
    %v370 = vadd.f32 %v246, %v369
    %v371 = vpop.f32.mrf.mxu0
    %372 = vmatprep.mubr.f32.mxu0 0.0
    %373 = vmatmul.mubr.f32.gmra.mxu0 %v221
    %v374 = vpop.f32.mrf.mxu0
    %v375 = vadd.f32 %v246, %v374
    %v376 = vpop.f32.mrf.mxu0
    %377 = vmatprep.mubr.f32.mxu0 0.0
    %378 = vmatmul.mubr.f32.gmra.mxu0 %v222
    %v379 = vpop.f32.mrf.mxu0
    %v380 = vadd.f32 %v246, %v379
    %v381 = vpop.f32.mrf.mxu0
    %382 = vmatprep.mubr.f32.mxu0 0.0
    %383 = vmatmul.mubr.f32.gmra.mxu0 %v223
    %v384 = vpop.f32.mrf.mxu0
    %v385 = vadd.f32 %v246, %v384
    %v386 = vpop.f32.mrf.mxu0
    %387 = vmatprep.mubr.f32.mxu0 0.0
    %388 = vmatmul.mubr.f32.gmra.mxu0 %v224
    %v389 = vpop.f32.mrf.mxu0
    %v390 = vadd.f32 %v246, %v389
    %v391 = vpop.f32.mrf.mxu0
    %392 = vdwg.mxu0
    %v393 = vmax.f32 %v315, 0.0
    %v394 = vmax.f32 %v320, 0.0
    %v395 = vmax.f32 %v325, 0.0
    %v396 = vmax.f32 %v330, 0.0
    %v397 = vmax.f32 %v335, 0.0
    %v398 = vmax.f32 %v340, 0.0
    %v399 = vmax.f32 %v345, 0.0
    %v400 = vmax.f32 %v350, 0.0
    %v401 = vmax.f32 %v355, 0.0
    %v402 = vmax.f32 %v360, 0.0
    %v403 = vmax.f32 %v365, 0.0
    %v404 = vmax.f32 %v370, 0.0
    %v405 = vmax.f32 %v375, 0.0
    %v406 = vmax.f32 %v380, 0.0
    %v407 = vmax.f32 %v385, 0.0
    %v408 = vmax.f32 %v390, 0.0
    %v409 = vand.u32 2147483647, %v315
    %v410 = vand.u32 2147483647, %v320
    %v411 = vand.u32 2147483647, %v325
    %v412 = vand.u32 2147483647, %v330
    %v413 = vand.u32 2147483647, %v335
    %v414 = vand.u32 2147483647, %v340
    %v415 = vand.u32 2147483647, %v345
    %v416 = vand.u32 2147483647, %v350
    %v417 = vand.u32 2147483647, %v355
    %v418 = vand.u32 2147483647, %v360
    %v419 = vand.u32 2147483647, %v365
    %v420 = vand.u32 2147483647, %v370
    %v421 = vand.u32 2147483647, %v375
    %v422 = vand.u32 2147483647, %v380
    %v423 = vand.u32 2147483647, %v385
    %v424 = vand.u32 2147483647, %v390
    %v425 = vsub.f32 0.0, %v409
    %v426 = vsub.f32 0.0, %v410
    %v427 = vsub.f32 0.0, %v411
    %v428 = vsub.f32 0.0, %v412
    %v429 = vsub.f32 0.0, %v413
    %v430 = vsub.f32 0.0, %v414
    %v431 = vsub.f32 0.0, %v415
    %v432 = vsub.f32 0.0, %v416
    %v433 = vsub.f32 0.0, %v417
    %v434 = vsub.f32 0.0, %v418
    %v435 = vsub.f32 0.0, %v419
    %v436 = vsub.f32 0.0, %v420
    %v437 = vsub.f32 0.0, %v421
    %v438 = vsub.f32 0.0, %v422
    %v439 = vsub.f32 0.0, %v423
    %v440 = vsub.f32 0.0, %v424
    %v441 = vmul.f32 %v425, 1.442695
    %v442 = vpow.pop %v441
    %v443 = vmul.f32 %v426, 1.442695
    %v444 = vpow.pop %v443
    %v445 = vmul.f32 %v427, 1.442695
    %v446 = vpow.pop %v445
    %v447 = vmul.f32 %v428, 1.442695
    %v448 = vpow.pop %v447
    %v449 = vmul.f32 %v429, 1.442695
    %v450 = vpow.pop %v449
    %v451 = vmul.f32 %v430, 1.442695
    %v452 = vpow.pop %v451
    %v453 = vmul.f32 %v431, 1.442695
    %v454 = vpow.pop %v453
    %v455 = vmul.f32 %v432, 1.442695
    %v456 = vpow.pop %v455
    %v457 = vmul.f32 %v433, 1.442695
    %v458 = vpow.pop %v457
    %v459 = vmul.f32 %v434, 1.442695
    %v460 = vpow.pop %v459
    %v461 = vmul.f32 %v435, 1.442695
    %v462 = vpow.pop %v461
    %v463 = vmul.f32 %v436, 1.442695
    %v464 = vpow.pop %v463
    %v465 = vmul.f32 %v437, 1.442695
    %v466 = vpow.pop %v465
    %v467 = vmul.f32 %v438, 1.442695
    %v468 = vpow.pop %v467
    %v469 = vmul.f32 %v439, 1.442695
    %v470 = vpow.pop %v469
    %v471 = vmul.f32 %v440, 1.442695
    %v472 = vpow.pop %v471
    %v473 = vadd.f32 %v442, 1.0
    %v474 = vlog2.pop %v473
    %v475 = vmul.f32 %v474, 0.6931472
    %v476 = vmul.f32 -0.5, %v442
    %v477 = vadd.f32 %v476, 1.0
    %v478 = vmul.f32 %v477, %v442
    %v479 = vand.u32 2147483647, %v442
    %vm480 = vcmp.lt.f32.partialorder %v479, 0.0004427343
    %v481 = vsel %vm480, %v478, %v475
    %v482 = vadd.f32 %v444, 1.0
    %v483 = vlog2.pop %v482
    %v484 = vmul.f32 %v483, 0.6931472
    %v485 = vmul.f32 -0.5, %v444
    %v486 = vadd.f32 %v485, 1.0
    %v487 = vmul.f32 %v486, %v444
    %v488 = vand.u32 2147483647, %v444
    %vm489 = vcmp.lt.f32.partialorder %v488, 0.0004427343
    %v490 = vsel %vm489, %v487, %v484
    %v491 = vadd.f32 %v446, 1.0
    %v492 = vlog2.pop %v491
    %v493 = vmul.f32 %v492, 0.6931472
    %v494 = vmul.f32 -0.5, %v446
    %v495 = vadd.f32 %v494, 1.0
    %v496 = vmul.f32 %v495, %v446
    %v497 = vand.u32 2147483647, %v446
    %vm498 = vcmp.lt.f32.partialorder %v497, 0.0004427343
    %v499 = vsel %vm498, %v496, %v493
    %v500 = vadd.f32 %v448, 1.0
    %v501 = vlog2.pop %v500
    %v502 = vmul.f32 %v501, 0.6931472
    %v503 = vmul.f32 -0.5, %v448
    %v504 = vadd.f32 %v503, 1.0
    %v505 = vmul.f32 %v504, %v448
    %v506 = vand.u32 2147483647, %v448
    %vm507 = vcmp.lt.f32.partialorder %v506, 0.0004427343
    %v508 = vsel %vm507, %v505, %v502
    %v509 = vadd.f32 %v450, 1.0
    %v510 = vlog2.pop %v509
    %v511 = vmul.f32 %v510, 0.6931472
    %v512 = vmul.f32 -0.5, %v450
    %v513 = vadd.f32 %v512, 1.0
    %v514 = vmul.f32 %v513, %v450
    %v515 = vand.u32 2147483647, %v450
    %vm516 = vcmp.lt.f32.partialorder %v515, 0.0004427343
    %v517 = vsel %vm516, %v514, %v511
    %v518 = vadd.f32 %v452, 1.0
    %v519 = vlog2.pop %v518
    %v520 = vmul.f32 %v519, 0.6931472
    %v521 = vmul.f32 -0.5, %v452
    %v522 = vadd.f32 %v521, 1.0
    %v523 = vmul.f32 %v522, %v452
    %v524 = vand.u32 2147483647, %v452
    %vm525 = vcmp.lt.f32.partialorder %v524, 0.0004427343
    %v526 = vsel %vm525, %v523, %v520
    %v527 = vadd.f32 %v454, 1.0
    %v528 = vlog2.pop %v527
    %v529 = vmul.f32 %v528, 0.6931472
    %v530 = vmul.f32 -0.5, %v454
    %v531 = vadd.f32 %v530, 1.0
    %v532 = vmul.f32 %v531, %v454
    %v533 = vand.u32 2147483647, %v454
    %vm534 = vcmp.lt.f32.partialorder %v533, 0.0004427343
    %v535 = vsel %vm534, %v532, %v529
    %v536 = vadd.f32 %v456, 1.0
    %v537 = vlog2.pop %v536
    %v538 = vmul.f32 %v537, 0.6931472
    %v539 = vmul.f32 -0.5, %v456
    %v540 = vadd.f32 %v539, 1.0
    %v541 = vmul.f32 %v540, %v456
    %v542 = vand.u32 2147483647, %v456
    %vm543 = vcmp.lt.f32.partialorder %v542, 0.0004427343
    %v544 = vsel %vm543, %v541, %v538
    %v545 = vadd.f32 %v458, 1.0
    %v546 = vlog2.pop %v545
    %v547 = vmul.f32 %v546, 0.6931472
    %v548 = vmul.f32 -0.5, %v458
    %v549 = vadd.f32 %v548, 1.0
    %v550 = vmul.f32 %v549, %v458
    %v551 = vand.u32 2147483647, %v458
    %vm552 = vcmp.lt.f32.partialorder %v551, 0.0004427343
    %v553 = vsel %vm552, %v550, %v547
    %v554 = vadd.f32 %v460, 1.0
    %v555 = vlog2.pop %v554
    %v556 = vmul.f32 %v555, 0.6931472
    %v557 = vmul.f32 -0.5, %v460
    %v558 = vadd.f32 %v557, 1.0
    %v559 = vmul.f32 %v558, %v460
    %v560 = vand.u32 2147483647, %v460
    %vm561 = vcmp.lt.f32.partialorder %v560, 0.0004427343
    %v562 = vsel %vm561, %v559, %v556
    %v563 = vadd.f32 %v462, 1.0
    %v564 = vlog2.pop %v563
    %v565 = vmul.f32 %v564, 0.6931472
    %v566 = vmul.f32 -0.5, %v462
    %v567 = vadd.f32 %v566, 1.0
    %v568 = vmul.f32 %v567, %v462
    %v569 = vand.u32 2147483647, %v462
    %vm570 = vcmp.lt.f32.partialorder %v569, 0.0004427343
    %v571 = vsel %vm570, %v568, %v565
    %v572 = vadd.f32 %v464, 1.0
    %v573 = vlog2.pop %v572
    %v574 = vmul.f32 %v573, 0.6931472
    %v575 = vmul.f32 -0.5, %v464
    %v576 = vadd.f32 %v575, 1.0
    %v577 = vmul.f32 %v576, %v464
    %v578 = vand.u32 2147483647, %v464
    %vm579 = vcmp.lt.f32.partialorder %v578, 0.0004427343
    %v580 = vsel %vm579, %v577, %v574
    %v581 = vadd.f32 %v466, 1.0
    %v582 = vlog2.pop %v581
    %v583 = vmul.f32 %v582, 0.6931472
    %v584 = vmul.f32 -0.5, %v466
    %v585 = vadd.f32 %v584, 1.0
    %v586 = vmul.f32 %v585, %v466
    %v587 = vand.u32 2147483647, %v466
    %vm588 = vcmp.lt.f32.partialorder %v587, 0.0004427343
    %v589 = vsel %vm588, %v586, %v583
    %v590 = vadd.f32 %v468, 1.0
    %v591 = vlog2.pop %v590
    %v592 = vmul.f32 %v591, 0.6931472
    %v593 = vmul.f32 -0.5, %v468
    %v594 = vadd.f32 %v593, 1.0
    %v595 = vmul.f32 %v594, %v468
    %v596 = vand.u32 2147483647, %v468
    %vm597 = vcmp.lt.f32.partialorder %v596, 0.0004427343
    %v598 = vsel %vm597, %v595, %v592
    %v599 = vadd.f32 %v470, 1.0
    %v600 = vlog2.pop %v599
    %v601 = vmul.f32 %v600, 0.6931472
    %v602 = vmul.f32 -0.5, %v470
    %v603 = vadd.f32 %v602, 1.0
    %v604 = vmul.f32 %v603, %v470
    %v605 = vand.u32 2147483647, %v470
    %vm606 = vcmp.lt.f32.partialorder %v605, 0.0004427343
    %v607 = vsel %vm606, %v604, %v601
    %v608 = vadd.f32 %v472, 1.0
    %v609 = vlog2.pop %v608
    %v610 = vmul.f32 %v609, 0.6931472
    %v611 = vmul.f32 -0.5, %v472
    %v612 = vadd.f32 %v611, 1.0
    %v613 = vmul.f32 %v612, %v472
    %v614 = vand.u32 2147483647, %v472
    %vm615 = vcmp.lt.f32.partialorder %v614, 0.0004427343
    %v616 = vsel %vm615, %v613, %v610
    %v617 = vadd.f32 %v393, %v481
    %v618 = vadd.f32 %v394, %v490
    %v619 = vadd.f32 %v395, %v499
    %v620 = vadd.f32 %v396, %v508
    %v621 = vadd.f32 %v397, %v517
    %v622 = vadd.f32 %v398, %v526
    %v623 = vadd.f32 %v399, %v535
    %v624 = vadd.f32 %v400, %v544
    %v625 = vadd.f32 %v401, %v553
    %v626 = vadd.f32 %v402, %v562
    %v627 = vadd.f32 %v403, %v571
    %v628 = vadd.f32 %v404, %v580
    %v629 = vadd.f32 %v405, %v589
    %v630 = vadd.f32 %v406, %v598
    %v631 = vadd.f32 %v407, %v607
    %v632 = vadd.f32 %v408, %v616
    %v633 = vsub.f32 %v617, 0.6931472
    %v634 = vsub.f32 %v618, 0.6931472
    %v635 = vsub.f32 %v619, 0.6931472
    %v636 = vsub.f32 %v620, 0.6931472
    %v637 = vsub.f32 %v621, 0.6931472
    %v638 = vsub.f32 %v622, 0.6931472
    %v639 = vsub.f32 %v623, 0.6931472
    %v640 = vsub.f32 %v624, 0.6931472
    %v641 = vsub.f32 %v625, 0.6931472
    %v642 = vsub.f32 %v626, 0.6931472
    %v643 = vsub.f32 %v627, 0.6931472
    %v644 = vsub.f32 %v628, 0.6931472
    %v645 = vsub.f32 %v629, 0.6931472
    %v646 = vsub.f32 %v630, 0.6931472
    %v647 = vsub.f32 %v631, 0.6931472
    %v648 = vsub.f32 %v632, 0.6931472
    %v649 = vld [vmem:[#allocation7] sm:$0xff]
    %v650 = vld [vmem:[#allocation7 + $0x8] sm:$0xff]
    %v651 = vld [vmem:[#allocation7 + $0x10] sm:$0xff]
    %v652 = vld [vmem:[#allocation7 + $0x18] sm:$0xff]
    %v653 = vld [vmem:[#allocation7 + $0x20] sm:$0xff]
    %v654 = vld [vmem:[#allocation7 + $0x28] sm:$0xff]
    %v655 = vld [vmem:[#allocation7 + $0x30] sm:$0xff]
    %v656 = vld [vmem:[#allocation7 + $0x38] sm:$0xff]
    %v657 = vld [vmem:[#allocation7 + $0x40] sm:$0xff]
    %v658 = vld [vmem:[#allocation7 + $0x48] sm:$0xff]
    %v659 = vld [vmem:[#allocation7 + $0x50] sm:$0xff]
    %v660 = vld [vmem:[#allocation7 + $0x58] sm:$0xff]
    %v661 = vld [vmem:[#allocation7 + $0x60] sm:$0xff]
    %v662 = vld [vmem:[#allocation7 + $0x68] sm:$0xff]
    %v663 = vld [vmem:[#allocation7 + $0x70] sm:$0xff]
    %v664 = vld [vmem:[#allocation7 + $0x78] sm:$0xff]
    %v665 = vld [vmem:[%s8] sm:$0x1]
    %v667 = vlaneseq
    %v668 = vshrl.u32 %v667, 7
    %v669 = vsub.s32 0, %v668
    %v670 = vrot.slane %v665, %v669
    %672 = vmatprep.subr.mxu0 0.0
    %673 = vmatpush1.msra.mxu0 %v664
    %674 = vmatprep.subr.mxu0 0.0
    %675 = vmatpush1.msra.mxu0 %v663
    %676 = vmatprep.subr.mxu0 0.0
    %677 = vmatpush1.msra.mxu0 %v662
    %678 = vmatprep.subr.mxu0 0.0
    %679 = vmatpush1.msra.mxu0 %v661
    %680 = vmatprep.subr.mxu0 0.0
    %681 = vmatpush1.msra.mxu0 %v660
    %682 = vmatprep.subr.mxu0 0.0
    %683 = vmatpush1.msra.mxu0 %v659
    %684 = vmatprep.subr.mxu0 0.0
    %685 = vmatpush1.msra.mxu0 %v658
    %686 = vmatprep.subr.mxu0 0.0
    %687 = vmatpush1.msra.mxu0 %v657
    %688 = vmatprep.subr.mxu0 0.0
    %689 = vmatpush1.msra.mxu0 %v656
    %690 = vmatprep.subr.mxu0 0.0
    %691 = vmatpush1.msra.mxu0 %v655
    %692 = vmatprep.subr.mxu0 0.0
    %693 = vmatpush1.msra.mxu0 %v654
    %694 = vmatprep.subr.mxu0 0.0
    %695 = vmatpush1.msra.mxu0 %v653
    %696 = vmatprep.subr.mxu0 0.0
    %697 = vmatpush1.msra.mxu0 %v652
    %698 = vmatprep.subr.mxu0 0.0
    %699 = vmatpush1.msra.mxu0 %v651
    %700 = vmatprep.subr.mxu0 0.0
    %701 = vmatpush1.msra.mxu0 %v650
    %702 = vmatprep.subr.mxu0 0.0
    %703 = vmatpush1.msra.mxu0 %v649
    %704 = vmatprep.subr.mxu0 0.0
    %705 = vmatpush2.msra.mxu0 0.0
    %706 = vmatprep.subr.mxu0 0.0
    %707 = vmatpush2.msra.mxu0 0.0
    %708 = vmatprep.subr.mxu0 0.0
    %709 = vmatpush2.msra.mxu0 0.0
    %710 = vmatprep.subr.mxu0 0.0
    %711 = vmatpush2.msra.mxu0 0.0
    %712 = vmatprep.subr.mxu0 0.0
    %713 = vmatpush2.msra.mxu0 0.0
    %714 = vmatprep.subr.mxu0 0.0
    %715 = vmatpush2.msra.mxu0 0.0
    %716 = vmatprep.subr.mxu0 0.0
    %717 = vmatpush2.msra.mxu0 0.0
    %718 = vmatprep.subr.mxu0 0.0
    %719 = vmatpush2.msra.mxu0 0.0
    %720 = vmatprep.subr.mxu0 0.0
    %721 = vmatpush2.msra.mxu0 0.0
    %722 = vmatprep.subr.mxu0 0.0
    %723 = vmatpush2.msra.mxu0 0.0
    %724 = vmatprep.subr.mxu0 0.0
    %725 = vmatpush2.msra.mxu0 0.0
    %726 = vmatprep.subr.mxu0 0.0
    %727 = vmatpush2.msra.mxu0 0.0
    %728 = vmatprep.subr.mxu0 0.0
    %729 = vmatpush2.msra.mxu0 0.0
    %730 = vmatprep.subr.mxu0 0.0
    %731 = vmatpush2.msra.mxu0 0.0
    %732 = vmatprep.subr.mxu0 0.0
    %733 = vmatpush2.msra.mxu0 0.0
    %734 = vmatprep.subr.mxu0 0.0
    %735 = vmatpush2.msra.mxu0 0.0
    %736 = vmatprep.mubr.f32.mxu0 0.0
    %737 = vmatmul.mubr.f32.gmra.mxu0 %v633
    %v738 = vpop.f32.mrf.mxu0
    %v739 = vadd.f32 %v670, %v738
    %v740 = vpop.f32.mrf.mxu0
    %741 = vmatprep.mubr.f32.mxu0 0.0
    %742 = vmatmul.mubr.f32.gmra.mxu0 %v634
    %v743 = vpop.f32.mrf.mxu0
    %v744 = vadd.f32 %v670, %v743
    %v745 = vpop.f32.mrf.mxu0
    %746 = vmatprep.mubr.f32.mxu0 0.0
    %747 = vmatmul.mubr.f32.gmra.mxu0 %v635
    %v748 = vpop.f32.mrf.mxu0
    %v749 = vadd.f32 %v670, %v748
    %v750 = vpop.f32.mrf.mxu0
    %751 = vmatprep.mubr.f32.mxu0 0.0
    %752 = vmatmul.mubr.f32.gmra.mxu0 %v636
    %v753 = vpop.f32.mrf.mxu0
    %v754 = vadd.f32 %v670, %v753
    %v755 = vpop.f32.mrf.mxu0
    %756 = vmatprep.mubr.f32.mxu0 0.0
    %757 = vmatmul.mubr.f32.gmra.mxu0 %v637
    %v758 = vpop.f32.mrf.mxu0
    %v759 = vadd.f32 %v670, %v758
    %v760 = vpop.f32.mrf.mxu0
    %761 = vmatprep.mubr.f32.mxu0 0.0
    %762 = vmatmul.mubr.f32.gmra.mxu0 %v638
    %v763 = vpop.f32.mrf.mxu0
    %v764 = vadd.f32 %v670, %v763
    %v765 = vpop.f32.mrf.mxu0
    %766 = vmatprep.mubr.f32.mxu0 0.0
    %767 = vmatmul.mubr.f32.gmra.mxu0 %v639
    %v768 = vpop.f32.mrf.mxu0
    %v769 = vadd.f32 %v670, %v768
    %v770 = vpop.f32.mrf.mxu0
    %771 = vmatprep.mubr.f32.mxu0 0.0
    %772 = vmatmul.mubr.f32.gmra.mxu0 %v640
    %v773 = vpop.f32.mrf.mxu0
    %v774 = vadd.f32 %v670, %v773
    %v775 = vpop.f32.mrf.mxu0
    %776 = vmatprep.mubr.f32.mxu0 0.0
    %777 = vmatmul.mubr.f32.gmra.mxu0 %v641
    %v778 = vpop.f32.mrf.mxu0
    %v779 = vadd.f32 %v670, %v778
    %v780 = vpop.f32.mrf.mxu0
    %781 = vmatprep.mubr.f32.mxu0 0.0
    %782 = vmatmul.mubr.f32.gmra.mxu0 %v642
    %v783 = vpop.f32.mrf.mxu0
    %v784 = vadd.f32 %v670, %v783
    %v785 = vpop.f32.mrf.mxu0
    %786 = vmatprep.mubr.f32.mxu0 0.0
    %787 = vmatmul.mubr.f32.gmra.mxu0 %v643
    %v788 = vpop.f32.mrf.mxu0
    %v789 = vadd.f32 %v670, %v788
    %v790 = vpop.f32.mrf.mxu0
    %791 = vmatprep.mubr.f32.mxu0 0.0
    %792 = vmatmul.mubr.f32.gmra.mxu0 %v644
    %v793 = vpop.f32.mrf.mxu0
    %v794 = vadd.f32 %v670, %v793
    %v795 = vpop.f32.mrf.mxu0
    %796 = vmatprep.mubr.f32.mxu0 0.0
    %797 = vmatmul.mubr.f32.gmra.mxu0 %v645
    %v798 = vpop.f32.mrf.mxu0
    %v799 = vadd.f32 %v670, %v798
    %v800 = vpop.f32.mrf.mxu0
    %801 = vmatprep.mubr.f32.mxu0 0.0
    %802 = vmatmul.mubr.f32.gmra.mxu0 %v646
    %v803 = vpop.f32.mrf.mxu0
    %v804 = vadd.f32 %v670, %v803
    %v805 = vpop.f32.mrf.mxu0
    %806 = vmatprep.mubr.f32.mxu0 0.0
    %807 = vmatmul.mubr.f32.gmra.mxu0 %v647
    %v808 = vpop.f32.mrf.mxu0
    %v809 = vadd.f32 %v670, %v808
    %v810 = vpop.f32.mrf.mxu0
    %811 = vmatprep.mubr.f32.mxu0 0.0
    %812 = vmatmul.mubr.f32.gmra.mxu0 %v648
    %v813 = vpop.f32.mrf.mxu0
    %v814 = vadd.f32 %v670, %v813
    %v815 = vpop.f32.mrf.mxu0
    %816 = vdwg.mxu0
    %v817 = vld [vmem:[%s3] sm:$0xff]
    %v818 = vld [vmem:[%s3 + $0x8] sm:$0xff]
    %v819 = vld [vmem:[%s3 + $0x10] sm:$0xff]
    %v820 = vld [vmem:[%s3 + $0x18] sm:$0xff]
    %v821 = vld [vmem:[%s3 + $0x20] sm:$0xff]
    %v822 = vld [vmem:[%s3 + $0x28] sm:$0xff]
    %v823 = vld [vmem:[%s3 + $0x30] sm:$0xff]
    %v824 = vld [vmem:[%s3 + $0x38] sm:$0xff]
    %v825 = vld [vmem:[%s3 + $0x40] sm:$0xff]
    %v826 = vld [vmem:[%s3 + $0x48] sm:$0xff]
    %v827 = vld [vmem:[%s3 + $0x50] sm:$0xff]
    %v828 = vld [vmem:[%s3 + $0x58] sm:$0xff]
    %v829 = vld [vmem:[%s3 + $0x60] sm:$0xff]
    %v830 = vld [vmem:[%s3 + $0x68] sm:$0xff]
    %v831 = vld [vmem:[%s3 + $0x70] sm:$0xff]
    %v832 = vld [vmem:[%s3 + $0x78] sm:$0xff]
    %v833 = vmul.f32 %v817, 0.31415927
    %v834 = vmul.f32 %v818, 0.31415927
    %v835 = vmul.f32 %v819, 0.31415927
    %v836 = vmul.f32 %v820, 0.31415927
    %v837 = vmul.f32 %v821, 0.31415927
    %v838 = vmul.f32 %v822, 0.31415927
    %v839 = vmul.f32 %v823, 0.31415927
    %v840 = vmul.f32 %v824, 0.31415927
    %v841 = vmul.f32 %v825, 0.31415927
    %v842 = vmul.f32 %v826, 0.31415927
    %v843 = vmul.f32 %v827, 0.31415927
    %v844 = vmul.f32 %v828, 0.31415927
    %v845 = vmul.f32 %v829, 0.31415927
    %v846 = vmul.f32 %v830, 0.31415927
    %v847 = vmul.f32 %v831, 0.31415927
    %v848 = vmul.f32 %v832, 0.31415927
    %v849 = vand.u32 2147483647, %v833
    %vm850 = vcmp.le.f32.partialorder %v849, 0.7853982
    %vm851 = vcmp.lt.s32.totalorder %v833, 0
    %v852 = vand.u32 %v833, 2139095040
    %v853 = vshrl.u32 %v852, 23
    %v854 = vsub.s32 %v853, 127
    %v855 = vand.u32 2147483647, %v833
    %v856 = vand.u32 %v855, 8388607
    %v857 = vor.u32 %v856, 8388608
    %v858 = vsub.s32 0, %v857
    %v859 = vadd.s32 %v854, 1
    %vm860 = vcmp.gt.s32.totalorder %v859, 0
    %v861 = vsel %vm860, %v859, 0
    %v862 = vshrl.u32 %v861, 5
    %v863 = vand.u32 %v861, 31
    %v864 = vsub.s32 32, %v863
    %v865 = vshrl.u32 683565275, %v864
    %v866 = vshll.u32 683565275, %v863
    %v867 = vshrl.u32 2475754826, %v864
    %v868 = vor.u32 %v866, %v867
    %v869 = vshll.u32 2475754826, %v863
    %v870 = vshrl.u32 2131351028, %v864
    %v871 = vor.u32 %v869, %v870
    %v872 = vshll.u32 2131351028, %v863
    %v873 = vshrl.u32 2102212464, %v864
    %v874 = vor.u32 %v872, %v873
    %v875 = vshll.u32 2102212464, %v863
    %v876 = vshrl.u32 920167782, %v864
    %v877 = vor.u32 %v875, %v876
    %v878 = vshll.u32 920167782, %v863
    %v879 = vshrl.u32 1326507024, %v864
    %v880 = vor.u32 %v878, %v879
    %vm881 = vcmp.lt.s32.totalorder %v862, 1
    %vm882 = vcmp.lt.s32.totalorder %v862, 2
    %vm883 = vcmp.lt.s32.totalorder %v862, 3
    %vm884 = vcmp.lt.s32.totalorder %v862, 4
    %v885 = vsel %vm881, %v865, %v868
    %v886 = vsel %vm884, %v874, 2102212464
    %v887 = vsel %vm883, %v871, %v886
    %v888 = vsel %vm882, %v885, %v887
    %v889 = vsel %vm881, %v868, %v871
    %v890 = vsel %vm884, %v877, 920167782
    %v891 = vsel %vm883, %v874, %v890
    %v892 = vsel %vm882, %v889, %v891
    %v893 = vsel %vm881, %v871, %v874
    %v894 = vsel %vm884, %v880, 1326507024
    %v895 = vsel %vm883, %v877, %v894
    %v896 = vsel %vm882, %v893, %v895
    %v897 = vshll.u32 %v857, 8
    %v898 = vmul.u32.u64.compose %v897, %v896
    %v899 = vextract.low.u32 %v898
    %v900 = vextract.high.u32 %v898
    %v901 = vmul.u32.u64.compose %v897, %v892
    %v902 = vextract.low.u32 %v901
    %v903 = vextract.high.u32 %v901
    %v904 = vmul.u32 %v897, %v888
    %v905 = vadd.s32 %v900, %v902
    %vm906 = vc.u32 %v900, %v902
    %v907 = vadd.s32 %v903, 1
    %v908 = vsel %vm906, %v907, %v903
    %v909 = vadd.s32 %v904, %v908
    %v910 = vadd.s32 %v909, 536870912
    %v911 = vshrl.u32 %v910, 30
    %v912 = vshll.u32 %v911, 30
    %v913 = vsub.s32 %v909, %v912
    %vm914 = vcmp.lt.s32.totalorder %v913, 0
    %v915 = vsub.s32 0, %v913
    %v916 = vsel %vm914, %v915, %v913
    %v917 = vclz %v916
    %v918 = vsub.s32 %v917, 2
    %vm919 = vcmp.gt.s32.totalorder 0, %v918
    %v920 = vsel %vm919, 0, %v918
    %v921 = vsub.s32 32, %v920
    %v922 = vshll.u32 %v913, %v920
    %v923 = vshrl.u32 %v905, %v921
    %v924 = vor.u32 %v922, %v923
    %v925 = vsub.s32 4294967266, %v920
    %v926 = vadd.s32 %v925, 127
    %v927 = vshll.u32 %v926, 23
    %v928 = vor.u32 4788187, %v927
    %v929 = vand.u32 2147483647, %v928
    %v931 = vcvt.s32.f32 %v924
    %v932 = vmul.f32 %v931, %v929
    %v933 = vxor.u32 %v932, 2147483648
    %v934 = vsel %vm851, %v933, %v932
    %v935 = vsub.s32 4, %v911
    %v936 = vsel %vm851, %v935, %v911
    %v937 = vsel %vm850, %v833, %v934
    %v938 = vsel %vm850, 0, %v936
    %v939 = vcosq.f32.pop %v937
    %v940 = vsinq.f32.pop %v937
    %vm941 = vweird.f32 %v833
    %v942 = vand.u32 %v938, 3
    %vm943 = vcmp.lt.s32.totalorder %v942, 2
    %vm944 = vcmp.eq.s32.totalorder %v942, 0
    %v945 = vxor.u32 %v940, 2147483648
    %v946 = vsel %vm944, %v939, %v945
    %vm947 = vcmp.eq.s32.totalorder %v942, 2
    %v948 = vxor.u32 %v939, 2147483648
    %v949 = vsel %vm947, %v948, %v940
    %v950 = vsel %vm943, %v946, %v949
    %v951 = vsel %vm941, nan, %v950
    %v952 = vand.u32 2147483647, %v834
    %vm953 = vcmp.le.f32.partialorder %v952, 0.7853982
    %vm954 = vcmp.lt.s32.totalorder %v834, 0
    %v955 = vand.u32 %v834, 2139095040
    %v956 = vshrl.u32 %v955, 23
    %v957 = vsub.s32 %v956, 127
    %v958 = vand.u32 2147483647, %v834
    %v959 = vand.u32 %v958, 8388607
    %v960 = vor.u32 %v959, 8388608
    %v961 = vsub.s32 0, %v960
    %v962 = vadd.s32 %v957, 1
    %vm963 = vcmp.gt.s32.totalorder %v962, 0
    %v964 = vsel %vm963, %v962, 0
    %v965 = vshrl.u32 %v964, 5
    %v966 = vand.u32 %v964, 31
    %v967 = vsub.s32 32, %v966
    %v968 = vshrl.u32 683565275, %v967
    %v969 = vshll.u32 683565275, %v966
    %v970 = vshrl.u32 2475754826, %v967
    %v971 = vor.u32 %v969, %v970
    %v972 = vshll.u32 2475754826, %v966
    %v973 = vshrl.u32 2131351028, %v967
    %v974 = vor.u32 %v972, %v973
    %v975 = vshll.u32 2131351028, %v966
    %v976 = vshrl.u32 2102212464, %v967
    %v977 = vor.u32 %v975, %v976
    %v978 = vshll.u32 2102212464, %v966
    %v979 = vshrl.u32 920167782, %v967
    %v980 = vor.u32 %v978, %v979
    %v981 = vshll.u32 920167782, %v966
    %v982 = vshrl.u32 1326507024, %v967
    %v983 = vor.u32 %v981, %v982
    %vm984 = vcmp.lt.s32.totalorder %v965, 1
    %vm985 = vcmp.lt.s32.totalorder %v965, 2
    %vm986 = vcmp.lt.s32.totalorder %v965, 3
    %vm987 = vcmp.lt.s32.totalorder %v965, 4
    %v988 = vsel %vm984, %v968, %v971
    %v989 = vsel %vm987, %v977, 2102212464
    %v990 = vsel %vm986, %v974, %v989
    %v991 = vsel %vm985, %v988, %v990
    %v992 = vsel %vm984, %v971, %v974
    %v993 = vsel %vm987, %v980, 920167782
    %v994 = vsel %vm986, %v977, %v993
    %v995 = vsel %vm985, %v992, %v994
    %v996 = vsel %vm984, %v974, %v977
    %v997 = vsel %vm987, %v983, 1326507024
    %v998 = vsel %vm986, %v980, %v997
    %v999 = vsel %vm985, %v996, %v998
    %v1000 = vshll.u32 %v960, 8
    %v1001 = vmul.u32.u64.compose %v1000, %v999
    %v1002 = vextract.low.u32 %v1001
    %v1003 = vextract.high.u32 %v1001
    %v1004 = vmul.u32.u64.compose %v1000, %v995
    %v1005 = vextract.low.u32 %v1004
    %v1006 = vextract.high.u32 %v1004
    %v1007 = vmul.u32 %v1000, %v991
    %v1008 = vadd.s32 %v1003, %v1005
    %vm1009 = vc.u32 %v1003, %v1005
    %v1010 = vadd.s32 %v1006, 1
    %v1011 = vsel %vm1009, %v1010, %v1006
    %v1012 = vadd.s32 %v1007, %v1011
    %v1013 = vadd.s32 %v1012, 536870912
    %v1014 = vshrl.u32 %v1013, 30
    %v1015 = vshll.u32 %v1014, 30
    %v1016 = vsub.s32 %v1012, %v1015
    %vm1017 = vcmp.lt.s32.totalorder %v1016, 0
    %v1018 = vsub.s32 0, %v1016
    %v1019 = vsel %vm1017, %v1018, %v1016
    %v1020 = vclz %v1019
    %v1021 = vsub.s32 %v1020, 2
    %vm1022 = vcmp.gt.s32.totalorder 0, %v1021
    %v1023 = vsel %vm1022, 0, %v1021
    %v1024 = vsub.s32 32, %v1023
    %v1025 = vshll.u32 %v1016, %v1023
    %v1026 = vshrl.u32 %v1008, %v1024
    %v1027 = vor.u32 %v1025, %v1026
    %v1028 = vsub.s32 4294967266, %v1023
    %v1029 = vadd.s32 %v1028, 127
    %v1030 = vshll.u32 %v1029, 23
    %v1031 = vor.u32 4788187, %v1030
    %v1032 = vand.u32 2147483647, %v1031
    %v1034 = vcvt.s32.f32 %v1027
    %v1035 = vmul.f32 %v1034, %v1032
    %v1036 = vxor.u32 %v1035, 2147483648
    %v1037 = vsel %vm954, %v1036, %v1035
    %v1038 = vsub.s32 4, %v1014
    %v1039 = vsel %vm954, %v1038, %v1014
    %v1040 = vsel %vm953, %v834, %v1037
    %v1041 = vsel %vm953, 0, %v1039
    %v1042 = vcosq.f32.pop %v1040
    %v1043 = vsinq.f32.pop %v1040
    %vm1044 = vweird.f32 %v834
    %v1045 = vand.u32 %v1041, 3
    %vm1046 = vcmp.lt.s32.totalorder %v1045, 2
    %vm1047 = vcmp.eq.s32.totalorder %v1045, 0
    %v1048 = vxor.u32 %v1043, 2147483648
    %v1049 = vsel %vm1047, %v1042, %v1048
    %vm1050 = vcmp.eq.s32.totalorder %v1045, 2
    %v1051 = vxor.u32 %v1042, 2147483648
    %v1052 = vsel %vm1050, %v1051, %v1043
    %v1053 = vsel %vm1046, %v1049, %v1052
    %v1054 = vsel %vm1044, nan, %v1053
    %v1055 = vand.u32 2147483647, %v835
    %vm1056 = vcmp.le.f32.partialorder %v1055, 0.7853982
    %vm1057 = vcmp.lt.s32.totalorder %v835, 0
    %v1058 = vand.u32 %v835, 2139095040
    %v1059 = vshrl.u32 %v1058, 23
    %v1060 = vsub.s32 %v1059, 127
    %v1061 = vand.u32 2147483647, %v835
    %v1062 = vand.u32 %v1061, 8388607
    %v1063 = vor.u32 %v1062, 8388608
    %v1064 = vsub.s32 0, %v1063
    %v1065 = vadd.s32 %v1060, 1
    %vm1066 = vcmp.gt.s32.totalorder %v1065, 0
    %v1067 = vsel %vm1066, %v1065, 0
    %v1068 = vshrl.u32 %v1067, 5
    %v1069 = vand.u32 %v1067, 31
    %v1070 = vsub.s32 32, %v1069
    %v1071 = vshrl.u32 683565275, %v1070
    %v1072 = vshll.u32 683565275, %v1069
    %v1073 = vshrl.u32 2475754826, %v1070
    %v1074 = vor.u32 %v1072, %v1073
    %v1075 = vshll.u32 2475754826, %v1069
    %v1076 = vshrl.u32 2131351028, %v1070
    %v1077 = vor.u32 %v1075, %v1076
    %v1078 = vshll.u32 2131351028, %v1069
    %v1079 = vshrl.u32 2102212464, %v1070
    %v1080 = vor.u32 %v1078, %v1079
    %v1081 = vshll.u32 2102212464, %v1069
    %v1082 = vshrl.u32 920167782, %v1070
    %v1083 = vor.u32 %v1081, %v1082
    %v1084 = vshll.u32 920167782, %v1069
    %v1085 = vshrl.u32 1326507024, %v1070
    %v1086 = vor.u32 %v1084, %v1085
    %vm1087 = vcmp.lt.s32.totalorder %v1068, 1
    %vm1088 = vcmp.lt.s32.totalorder %v1068, 2
    %vm1089 = vcmp.lt.s32.totalorder %v1068, 3
    %vm1090 = vcmp.lt.s32.totalorder %v1068, 4
    %v1091 = vsel %vm1087, %v1071, %v1074
    %v1092 = vsel %vm1090, %v1080, 2102212464
    %v1093 = vsel %vm1089, %v1077, %v1092
    %v1094 = vsel %vm1088, %v1091, %v1093
    %v1095 = vsel %vm1087, %v1074, %v1077
    %v1096 = vsel %vm1090, %v1083, 920167782
    %v1097 = vsel %vm1089, %v1080, %v1096
    %v1098 = vsel %vm1088, %v1095, %v1097
    %v1099 = vsel %vm1087, %v1077, %v1080
    %v1100 = vsel %vm1090, %v1086, 1326507024
    %v1101 = vsel %vm1089, %v1083, %v1100
    %v1102 = vsel %vm1088, %v1099, %v1101
    %v1103 = vshll.u32 %v1063, 8
    %v1104 = vmul.u32.u64.compose %v1103, %v1102
    %v1105 = vextract.low.u32 %v1104
    %v1106 = vextract.high.u32 %v1104
    %v1107 = vmul.u32.u64.compose %v1103, %v1098
    %v1108 = vextract.low.u32 %v1107
    %v1109 = vextract.high.u32 %v1107
    %v1110 = vmul.u32 %v1103, %v1094
    %v1111 = vadd.s32 %v1106, %v1108
    %vm1112 = vc.u32 %v1106, %v1108
    %v1113 = vadd.s32 %v1109, 1
    %v1114 = vsel %vm1112, %v1113, %v1109
    %v1115 = vadd.s32 %v1110, %v1114
    %v1116 = vadd.s32 %v1115, 536870912
    %v1117 = vshrl.u32 %v1116, 30
    %v1118 = vshll.u32 %v1117, 30
    %v1119 = vsub.s32 %v1115, %v1118
    %vm1120 = vcmp.lt.s32.totalorder %v1119, 0
    %v1121 = vsub.s32 0, %v1119
    %v1122 = vsel %vm1120, %v1121, %v1119
    %v1123 = vclz %v1122
    %v1124 = vsub.s32 %v1123, 2
    %vm1125 = vcmp.gt.s32.totalorder 0, %v1124
    %v1126 = vsel %vm1125, 0, %v1124
    %v1127 = vsub.s32 32, %v1126
    %v1128 = vshll.u32 %v1119, %v1126
    %v1129 = vshrl.u32 %v1111, %v1127
    %v1130 = vor.u32 %v1128, %v1129
    %v1131 = vsub.s32 4294967266, %v1126
    %v1132 = vadd.s32 %v1131, 127
    %v1133 = vshll.u32 %v1132, 23
    %v1134 = vor.u32 4788187, %v1133
    %v1135 = vand.u32 2147483647, %v1134
    %v1137 = vcvt.s32.f32 %v1130
    %v1138 = vmul.f32 %v1137, %v1135
    %v1139 = vxor.u32 %v1138, 2147483648
    %v1140 = vsel %vm1057, %v1139, %v1138
    %v1141 = vsub.s32 4, %v1117
    %v1142 = vsel %vm1057, %v1141, %v1117
    %v1143 = vsel %vm1056, %v835, %v1140
    %v1144 = vsel %vm1056, 0, %v1142
    %v1145 = vcosq.f32.pop %v1143
    %v1146 = vsinq.f32.pop %v1143
    %vm1147 = vweird.f32 %v835
    %v1148 = vand.u32 %v1144, 3
    %vm1149 = vcmp.lt.s32.totalorder %v1148, 2
    %vm1150 = vcmp.eq.s32.totalorder %v1148, 0
    %v1151 = vxor.u32 %v1146, 2147483648
    %v1152 = vsel %vm1150, %v1145, %v1151
    %vm1153 = vcmp.eq.s32.totalorder %v1148, 2
    %v1154 = vxor.u32 %v1145, 2147483648
    %v1155 = vsel %vm1153, %v1154, %v1146
    %v1156 = vsel %vm1149, %v1152, %v1155
    %v1157 = vsel %vm1147, nan, %v1156
    %v1158 = vand.u32 2147483647, %v836
    %vm1159 = vcmp.le.f32.partialorder %v1158, 0.7853982
    %vm1160 = vcmp.lt.s32.totalorder %v836, 0
    %v1161 = vand.u32 %v836, 2139095040
    %v1162 = vshrl.u32 %v1161, 23
    %v1163 = vsub.s32 %v1162, 127
    %v1164 = vand.u32 2147483647, %v836
    %v1165 = vand.u32 %v1164, 8388607
    %v1166 = vor.u32 %v1165, 8388608
    %v1167 = vsub.s32 0, %v1166
    %v1168 = vadd.s32 %v1163, 1
    %vm1169 = vcmp.gt.s32.totalorder %v1168, 0
    %v1170 = vsel %vm1169, %v1168, 0
    %v1171 = vshrl.u32 %v1170, 5
    %v1172 = vand.u32 %v1170, 31
    %v1173 = vsub.s32 32, %v1172
    %v1174 = vshrl.u32 683565275, %v1173
    %v1175 = vshll.u32 683565275, %v1172
    %v1176 = vshrl.u32 2475754826, %v1173
    %v1177 = vor.u32 %v1175, %v1176
    %v1178 = vshll.u32 2475754826, %v1172
    %v1179 = vshrl.u32 2131351028, %v1173
    %v1180 = vor.u32 %v1178, %v1179
    %v1181 = vshll.u32 2131351028, %v1172
    %v1182 = vshrl.u32 2102212464, %v1173
    %v1183 = vor.u32 %v1181, %v1182
    %v1184 = vshll.u32 2102212464, %v1172
    %v1185 = vshrl.u32 920167782, %v1173
    %v1186 = vor.u32 %v1184, %v1185
    %v1187 = vshll.u32 920167782, %v1172
    %v1188 = vshrl.u32 1326507024, %v1173
    %v1189 = vor.u32 %v1187, %v1188
    %vm1190 = vcmp.lt.s32.totalorder %v1171, 1
    %vm1191 = vcmp.lt.s32.totalorder %v1171, 2
    %vm1192 = vcmp.lt.s32.totalorder %v1171, 3
    %vm1193 = vcmp.lt.s32.totalorder %v1171, 4
    %v1194 = vsel %vm1190, %v1174, %v1177
    %v1195 = vsel %vm1193, %v1183, 2102212464
    %v1196 = vsel %vm1192, %v1180, %v1195
    %v1197 = vsel %vm1191, %v1194, %v1196
    %v1198 = vsel %vm1190, %v1177, %v1180
    %v1199 = vsel %vm1193, %v1186, 920167782
    %v1200 = vsel %vm1192, %v1183, %v1199
    %v1201 = vsel %vm1191, %v1198, %v1200
    %v1202 = vsel %vm1190, %v1180, %v1183
    %v1203 = vsel %vm1193, %v1189, 1326507024
    %v1204 = vsel %vm1192, %v1186, %v1203
    %v1205 = vsel %vm1191, %v1202, %v1204
    %v1206 = vshll.u32 %v1166, 8
    %v1207 = vmul.u32.u64.compose %v1206, %v1205
    %v1208 = vextract.low.u32 %v1207
    %v1209 = vextract.high.u32 %v1207
    %v1210 = vmul.u32.u64.compose %v1206, %v1201
    %v1211 = vextract.low.u32 %v1210
    %v1212 = vextract.high.u32 %v1210
    %v1213 = vmul.u32 %v1206, %v1197
    %v1214 = vadd.s32 %v1209, %v1211
    %vm1215 = vc.u32 %v1209, %v1211
    %v1216 = vadd.s32 %v1212, 1
    %v1217 = vsel %vm1215, %v1216, %v1212
    %v1218 = vadd.s32 %v1213, %v1217
    %v1219 = vadd.s32 %v1218, 536870912
    %v1220 = vshrl.u32 %v1219, 30
    %v1221 = vshll.u32 %v1220, 30
    %v1222 = vsub.s32 %v1218, %v1221
    %vm1223 = vcmp.lt.s32.totalorder %v1222, 0
    %v1224 = vsub.s32 0, %v1222
    %v1225 = vsel %vm1223, %v1224, %v1222
    %v1226 = vclz %v1225
    %v1227 = vsub.s32 %v1226, 2
    %vm1228 = vcmp.gt.s32.totalorder 0, %v1227
    %v1229 = vsel %vm1228, 0, %v1227
    %v1230 = vsub.s32 32, %v1229
    %v1231 = vshll.u32 %v1222, %v1229
    %v1232 = vshrl.u32 %v1214, %v1230
    %v1233 = vor.u32 %v1231, %v1232
    %v1234 = vsub.s32 4294967266, %v1229
    %v1235 = vadd.s32 %v1234, 127
    %v1236 = vshll.u32 %v1235, 23
    %v1237 = vor.u32 4788187, %v1236
    %v1238 = vand.u32 2147483647, %v1237
    %v1240 = vcvt.s32.f32 %v1233
    %v1241 = vmul.f32 %v1240, %v1238
    %v1242 = vxor.u32 %v1241, 2147483648
    %v1243 = vsel %vm1160, %v1242, %v1241
    %v1244 = vsub.s32 4, %v1220
    %v1245 = vsel %vm1160, %v1244, %v1220
    %v1246 = vsel %vm1159, %v836, %v1243
    %v1247 = vsel %vm1159, 0, %v1245
    %v1248 = vcosq.f32.pop %v1246
    %v1249 = vsinq.f32.pop %v1246
    %vm1250 = vweird.f32 %v836
    %v1251 = vand.u32 %v1247, 3
    %vm1252 = vcmp.lt.s32.totalorder %v1251, 2
    %vm1253 = vcmp.eq.s32.totalorder %v1251, 0
    %v1254 = vxor.u32 %v1249, 2147483648
    %v1255 = vsel %vm1253, %v1248, %v1254
    %vm1256 = vcmp.eq.s32.totalorder %v1251, 2
    %v1257 = vxor.u32 %v1248, 2147483648
    %v1258 = vsel %vm1256, %v1257, %v1249
    %v1259 = vsel %vm1252, %v1255, %v1258
    %v1260 = vsel %vm1250, nan, %v1259
    %v1261 = vand.u32 2147483647, %v837
    %vm1262 = vcmp.le.f32.partialorder %v1261, 0.7853982
    %vm1263 = vcmp.lt.s32.totalorder %v837, 0
    %v1264 = vand.u32 %v837, 2139095040
    %v1265 = vshrl.u32 %v1264, 23
    %v1266 = vsub.s32 %v1265, 127
    %v1267 = vand.u32 2147483647, %v837
    %v1268 = vand.u32 %v1267, 8388607
    %v1269 = vor.u32 %v1268, 8388608
    %v1270 = vsub.s32 0, %v1269
    %v1271 = vadd.s32 %v1266, 1
    %vm1272 = vcmp.gt.s32.totalorder %v1271, 0
    %v1273 = vsel %vm1272, %v1271, 0
    %v1274 = vshrl.u32 %v1273, 5
    %v1275 = vand.u32 %v1273, 31
    %v1276 = vsub.s32 32, %v1275
    %v1277 = vshrl.u32 683565275, %v1276
    %v1278 = vshll.u32 683565275, %v1275
    %v1279 = vshrl.u32 2475754826, %v1276
    %v1280 = vor.u32 %v1278, %v1279
    %v1281 = vshll.u32 2475754826, %v1275
    %v1282 = vshrl.u32 2131351028, %v1276
    %v1283 = vor.u32 %v1281, %v1282
    %v1284 = vshll.u32 2131351028, %v1275
    %v1285 = vshrl.u32 2102212464, %v1276
    %v1286 = vor.u32 %v1284, %v1285
    %v1287 = vshll.u32 2102212464, %v1275
    %v1288 = vshrl.u32 920167782, %v1276
    %v1289 = vor.u32 %v1287, %v1288
    %v1290 = vshll.u32 920167782, %v1275
    %v1291 = vshrl.u32 1326507024, %v1276
    %v1292 = vor.u32 %v1290, %v1291
    %vm1293 = vcmp.lt.s32.totalorder %v1274, 1
    %vm1294 = vcmp.lt.s32.totalorder %v1274, 2
    %vm1295 = vcmp.lt.s32.totalorder %v1274, 3
    %vm1296 = vcmp.lt.s32.totalorder %v1274, 4
    %v1297 = vsel %vm1293, %v1277, %v1280
    %v1298 = vsel %vm1296, %v1286, 2102212464
    %v1299 = vsel %vm1295, %v1283, %v1298
    %v1300 = vsel %vm1294, %v1297, %v1299
    %v1301 = vsel %vm1293, %v1280, %v1283
    %v1302 = vsel %vm1296, %v1289, 920167782
    %v1303 = vsel %vm1295, %v1286, %v1302
    %v1304 = vsel %vm1294, %v1301, %v1303
    %v1305 = vsel %vm1293, %v1283, %v1286
    %v1306 = vsel %vm1296, %v1292, 1326507024
    %v1307 = vsel %vm1295, %v1289, %v1306
    %v1308 = vsel %vm1294, %v1305, %v1307
    %v1309 = vshll.u32 %v1269, 8
    %v1310 = vmul.u32.u64.compose %v1309, %v1308
    %v1311 = vextract.low.u32 %v1310
    %v1312 = vextract.high.u32 %v1310
    %v1313 = vmul.u32.u64.compose %v1309, %v1304
    %v1314 = vextract.low.u32 %v1313
    %v1315 = vextract.high.u32 %v1313
    %v1316 = vmul.u32 %v1309, %v1300
    %v1317 = vadd.s32 %v1312, %v1314
    %vm1318 = vc.u32 %v1312, %v1314
    %v1319 = vadd.s32 %v1315, 1
    %v1320 = vsel %vm1318, %v1319, %v1315
    %v1321 = vadd.s32 %v1316, %v1320
    %v1322 = vadd.s32 %v1321, 536870912
    %v1323 = vshrl.u32 %v1322, 30
    %v1324 = vshll.u32 %v1323, 30
    %v1325 = vsub.s32 %v1321, %v1324
    %vm1326 = vcmp.lt.s32.totalorder %v1325, 0
    %v1327 = vsub.s32 0, %v1325
    %v1328 = vsel %vm1326, %v1327, %v1325
    %v1329 = vclz %v1328
    %v1330 = vsub.s32 %v1329, 2
    %vm1331 = vcmp.gt.s32.totalorder 0, %v1330
    %v1332 = vsel %vm1331, 0, %v1330
    %v1333 = vsub.s32 32, %v1332
    %v1334 = vshll.u32 %v1325, %v1332
    %v1335 = vshrl.u32 %v1317, %v1333
    %v1336 = vor.u32 %v1334, %v1335
    %v1337 = vsub.s32 4294967266, %v1332
    %v1338 = vadd.s32 %v1337, 127
    %v1339 = vshll.u32 %v1338, 23
    %v1340 = vor.u32 4788187, %v1339
    %v1341 = vand.u32 2147483647, %v1340
    %v1343 = vcvt.s32.f32 %v1336
    %v1344 = vmul.f32 %v1343, %v1341
    %v1345 = vxor.u32 %v1344, 2147483648
    %v1346 = vsel %vm1263, %v1345, %v1344
    %v1347 = vsub.s32 4, %v1323
    %v1348 = vsel %vm1263, %v1347, %v1323
    %v1349 = vsel %vm1262, %v837, %v1346
    %v1350 = vsel %vm1262, 0, %v1348
    %v1351 = vcosq.f32.pop %v1349
    %v1352 = vsinq.f32.pop %v1349
    %vm1353 = vweird.f32 %v837
    %v1354 = vand.u32 %v1350, 3
    %vm1355 = vcmp.lt.s32.totalorder %v1354, 2
    %vm1356 = vcmp.eq.s32.totalorder %v1354, 0
    %v1357 = vxor.u32 %v1352, 2147483648
    %v1358 = vsel %vm1356, %v1351, %v1357
    %vm1359 = vcmp.eq.s32.totalorder %v1354, 2
    %v1360 = vxor.u32 %v1351, 2147483648
    %v1361 = vsel %vm1359, %v1360, %v1352
    %v1362 = vsel %vm1355, %v1358, %v1361
    %v1363 = vsel %vm1353, nan, %v1362
    %v1364 = vand.u32 2147483647, %v838
    %vm1365 = vcmp.le.f32.partialorder %v1364, 0.7853982
    %vm1366 = vcmp.lt.s32.totalorder %v838, 0
    %v1367 = vand.u32 %v838, 2139095040
    %v1368 = vshrl.u32 %v1367, 23
    %v1369 = vsub.s32 %v1368, 127
    %v1370 = vand.u32 2147483647, %v838
    %v1371 = vand.u32 %v1370, 8388607
    %v1372 = vor.u32 %v1371, 8388608
    %v1373 = vsub.s32 0, %v1372
    %v1374 = vadd.s32 %v1369, 1
    %vm1375 = vcmp.gt.s32.totalorder %v1374, 0
    %v1376 = vsel %vm1375, %v1374, 0
    %v1377 = vshrl.u32 %v1376, 5
    %v1378 = vand.u32 %v1376, 31
    %v1379 = vsub.s32 32, %v1378
    %v1380 = vshrl.u32 683565275, %v1379
    %v1381 = vshll.u32 683565275, %v1378
    %v1382 = vshrl.u32 2475754826, %v1379
    %v1383 = vor.u32 %v1381, %v1382
    %v1384 = vshll.u32 2475754826, %v1378
    %v1385 = vshrl.u32 2131351028, %v1379
    %v1386 = vor.u32 %v1384, %v1385
    %v1387 = vshll.u32 2131351028, %v1378
    %v1388 = vshrl.u32 2102212464, %v1379
    %v1389 = vor.u32 %v1387, %v1388
    %v1390 = vshll.u32 2102212464, %v1378
    %v1391 = vshrl.u32 920167782, %v1379
    %v1392 = vor.u32 %v1390, %v1391
    %v1393 = vshll.u32 920167782, %v1378
    %v1394 = vshrl.u32 1326507024, %v1379
    %v1395 = vor.u32 %v1393, %v1394
    %vm1396 = vcmp.lt.s32.totalorder %v1377, 1
    %vm1397 = vcmp.lt.s32.totalorder %v1377, 2
    %vm1398 = vcmp.lt.s32.totalorder %v1377, 3
    %vm1399 = vcmp.lt.s32.totalorder %v1377, 4
    %v1400 = vsel %vm1396, %v1380, %v1383
    %v1401 = vsel %vm1399, %v1389, 2102212464
    %v1402 = vsel %vm1398, %v1386, %v1401
    %v1403 = vsel %vm1397, %v1400, %v1402
    %v1404 = vsel %vm1396, %v1383, %v1386
    %v1405 = vsel %vm1399, %v1392, 920167782
    %v1406 = vsel %vm1398, %v1389, %v1405
    %v1407 = vsel %vm1397, %v1404, %v1406
    %v1408 = vsel %vm1396, %v1386, %v1389
    %v1409 = vsel %vm1399, %v1395, 1326507024
    %v1410 = vsel %vm1398, %v1392, %v1409
    %v1411 = vsel %vm1397, %v1408, %v1410
    %v1412 = vshll.u32 %v1372, 8
    %v1413 = vmul.u32.u64.compose %v1412, %v1411
    %v1414 = vextract.low.u32 %v1413
    %v1415 = vextract.high.u32 %v1413
    %v1416 = vmul.u32.u64.compose %v1412, %v1407
    %v1417 = vextract.low.u32 %v1416
    %v1418 = vextract.high.u32 %v1416
    %v1419 = vmul.u32 %v1412, %v1403
    %v1420 = vadd.s32 %v1415, %v1417
    %vm1421 = vc.u32 %v1415, %v1417
    %v1422 = vadd.s32 %v1418, 1
    %v1423 = vsel %vm1421, %v1422, %v1418
    %v1424 = vadd.s32 %v1419, %v1423
    %v1425 = vadd.s32 %v1424, 536870912
    %v1426 = vshrl.u32 %v1425, 30
    %v1427 = vshll.u32 %v1426, 30
    %v1428 = vsub.s32 %v1424, %v1427
    %vm1429 = vcmp.lt.s32.totalorder %v1428, 0
    %v1430 = vsub.s32 0, %v1428
    %v1431 = vsel %vm1429, %v1430, %v1428
    %v1432 = vclz %v1431
    %v1433 = vsub.s32 %v1432, 2
    %vm1434 = vcmp.gt.s32.totalorder 0, %v1433
    %v1435 = vsel %vm1434, 0, %v1433
    %v1436 = vsub.s32 32, %v1435
    %v1437 = vshll.u32 %v1428, %v1435
    %v1438 = vshrl.u32 %v1420, %v1436
    %v1439 = vor.u32 %v1437, %v1438
    %v1440 = vsub.s32 4294967266, %v1435
    %v1441 = vadd.s32 %v1440, 127
    %v1442 = vshll.u32 %v1441, 23
    %v1443 = vor.u32 4788187, %v1442
    %v1444 = vand.u32 2147483647, %v1443
    %v1446 = vcvt.s32.f32 %v1439
    %v1447 = vmul.f32 %v1446, %v1444
    %v1448 = vxor.u32 %v1447, 2147483648
    %v1449 = vsel %vm1366, %v1448, %v1447
    %v1450 = vsub.s32 4, %v1426
    %v1451 = vsel %vm1366, %v1450, %v1426
    %v1452 = vsel %vm1365, %v838, %v1449
    %v1453 = vsel %vm1365, 0, %v1451
    %v1454 = vcosq.f32.pop %v1452
    %v1455 = vsinq.f32.pop %v1452
    %vm1456 = vweird.f32 %v838
    %v1457 = vand.u32 %v1453, 3
    %vm1458 = vcmp.lt.s32.totalorder %v1457, 2
    %vm1459 = vcmp.eq.s32.totalorder %v1457, 0
    %v1460 = vxor.u32 %v1455, 2147483648
    %v1461 = vsel %vm1459, %v1454, %v1460
    %vm1462 = vcmp.eq.s32.totalorder %v1457, 2
    %v1463 = vxor.u32 %v1454, 2147483648
    %v1464 = vsel %vm1462, %v1463, %v1455
    %v1465 = vsel %vm1458, %v1461, %v1464
    %v1466 = vsel %vm1456, nan, %v1465
    %v1467 = vand.u32 2147483647, %v839
    %vm1468 = vcmp.le.f32.partialorder %v1467, 0.7853982
    %vm1469 = vcmp.lt.s32.totalorder %v839, 0
    %v1470 = vand.u32 %v839, 2139095040
    %v1471 = vshrl.u32 %v1470, 23
    %v1472 = vsub.s32 %v1471, 127
    %v1473 = vand.u32 2147483647, %v839
    %v1474 = vand.u32 %v1473, 8388607
    %v1475 = vor.u32 %v1474, 8388608
    %v1476 = vsub.s32 0, %v1475
    %v1477 = vadd.s32 %v1472, 1
    %vm1478 = vcmp.gt.s32.totalorder %v1477, 0
    %v1479 = vsel %vm1478, %v1477, 0
    %v1480 = vshrl.u32 %v1479, 5
    %v1481 = vand.u32 %v1479, 31
    %v1482 = vsub.s32 32, %v1481
    %v1483 = vshrl.u32 683565275, %v1482
    %v1484 = vshll.u32 683565275, %v1481
    %v1485 = vshrl.u32 2475754826, %v1482
    %v1486 = vor.u32 %v1484, %v1485
    %v1487 = vshll.u32 2475754826, %v1481
    %v1488 = vshrl.u32 2131351028, %v1482
    %v1489 = vor.u32 %v1487, %v1488
    %v1490 = vshll.u32 2131351028, %v1481
    %v1491 = vshrl.u32 2102212464, %v1482
    %v1492 = vor.u32 %v1490, %v1491
    %v1493 = vshll.u32 2102212464, %v1481
    %v1494 = vshrl.u32 920167782, %v1482
    %v1495 = vor.u32 %v1493, %v1494
    %v1496 = vshll.u32 920167782, %v1481
    %v1497 = vshrl.u32 1326507024, %v1482
    %v1498 = vor.u32 %v1496, %v1497
    %vm1499 = vcmp.lt.s32.totalorder %v1480, 1
    %vm1500 = vcmp.lt.s32.totalorder %v1480, 2
    %vm1501 = vcmp.lt.s32.totalorder %v1480, 3
    %vm1502 = vcmp.lt.s32.totalorder %v1480, 4
    %v1503 = vsel %vm1499, %v1483, %v1486
    %v1504 = vsel %vm1502, %v1492, 2102212464
    %v1505 = vsel %vm1501, %v1489, %v1504
    %v1506 = vsel %vm1500, %v1503, %v1505
    %v1507 = vsel %vm1499, %v1486, %v1489
    %v1508 = vsel %vm1502, %v1495, 920167782
    %v1509 = vsel %vm1501, %v1492, %v1508
    %v1510 = vsel %vm1500, %v1507, %v1509
    %v1511 = vsel %vm1499, %v1489, %v1492
    %v1512 = vsel %vm1502, %v1498, 1326507024
    %v1513 = vsel %vm1501, %v1495, %v1512
    %v1514 = vsel %vm1500, %v1511, %v1513
    %v1515 = vshll.u32 %v1475, 8
    %v1516 = vmul.u32.u64.compose %v1515, %v1514
    %v1517 = vextract.low.u32 %v1516
    %v1518 = vextract.high.u32 %v1516
    %v1519 = vmul.u32.u64.compose %v1515, %v1510
    %v1520 = vextract.low.u32 %v1519
    %v1521 = vextract.high.u32 %v1519
    %v1522 = vmul.u32 %v1515, %v1506
    %v1523 = vadd.s32 %v1518, %v1520
    %vm1524 = vc.u32 %v1518, %v1520
    %v1525 = vadd.s32 %v1521, 1
    %v1526 = vsel %vm1524, %v1525, %v1521
    %v1527 = vadd.s32 %v1522, %v1526
    %v1528 = vadd.s32 %v1527, 536870912
    %v1529 = vshrl.u32 %v1528, 30
    %v1530 = vshll.u32 %v1529, 30
    %v1531 = vsub.s32 %v1527, %v1530
    %vm1532 = vcmp.lt.s32.totalorder %v1531, 0
    %v1533 = vsub.s32 0, %v1531
    %v1534 = vsel %vm1532, %v1533, %v1531
    %v1535 = vclz %v1534
    %v1536 = vsub.s32 %v1535, 2
    %vm1537 = vcmp.gt.s32.totalorder 0, %v1536
    %v1538 = vsel %vm1537, 0, %v1536
    %v1539 = vsub.s32 32, %v1538
    %v1540 = vshll.u32 %v1531, %v1538
    %v1541 = vshrl.u32 %v1523, %v1539
    %v1542 = vor.u32 %v1540, %v1541
    %v1543 = vsub.s32 4294967266, %v1538
    %v1544 = vadd.s32 %v1543, 127
    %v1545 = vshll.u32 %v1544, 23
    %v1546 = vor.u32 4788187, %v1545
    %v1547 = vand.u32 2147483647, %v1546
    %v1549 = vcvt.s32.f32 %v1542
    %v1550 = vmul.f32 %v1549, %v1547
    %v1551 = vxor.u32 %v1550, 2147483648
    %v1552 = vsel %vm1469, %v1551, %v1550
    %v1553 = vsub.s32 4, %v1529
    %v1554 = vsel %vm1469, %v1553, %v1529
    %v1555 = vsel %vm1468, %v839, %v1552
    %v1556 = vsel %vm1468, 0, %v1554
    %v1557 = vcosq.f32.pop %v1555
    %v1558 = vsinq.f32.pop %v1555
    %vm1559 = vweird.f32 %v839
    %v1560 = vand.u32 %v1556, 3
    %vm1561 = vcmp.lt.s32.totalorder %v1560, 2
    %vm1562 = vcmp.eq.s32.totalorder %v1560, 0
    %v1563 = vxor.u32 %v1558, 2147483648
    %v1564 = vsel %vm1562, %v1557, %v1563
    %vm1565 = vcmp.eq.s32.totalorder %v1560, 2
    %v1566 = vxor.u32 %v1557, 2147483648
    %v1567 = vsel %vm1565, %v1566, %v1558
    %v1568 = vsel %vm1561, %v1564, %v1567
    %v1569 = vsel %vm1559, nan, %v1568
    %v1570 = vand.u32 2147483647, %v840
    %vm1571 = vcmp.le.f32.partialorder %v1570, 0.7853982
    %vm1572 = vcmp.lt.s32.totalorder %v840, 0
    %v1573 = vand.u32 %v840, 2139095040
    %v1574 = vshrl.u32 %v1573, 23
    %v1575 = vsub.s32 %v1574, 127
    %v1576 = vand.u32 2147483647, %v840
    %v1577 = vand.u32 %v1576, 8388607
    %v1578 = vor.u32 %v1577, 8388608
    %v1579 = vsub.s32 0, %v1578
    %v1580 = vadd.s32 %v1575, 1
    %vm1581 = vcmp.gt.s32.totalorder %v1580, 0
    %v1582 = vsel %vm1581, %v1580, 0
    %v1583 = vshrl.u32 %v1582, 5
    %v1584 = vand.u32 %v1582, 31
    %v1585 = vsub.s32 32, %v1584
    %v1586 = vshrl.u32 683565275, %v1585
    %v1587 = vshll.u32 683565275, %v1584
    %v1588 = vshrl.u32 2475754826, %v1585
    %v1589 = vor.u32 %v1587, %v1588
    %v1590 = vshll.u32 2475754826, %v1584
    %v1591 = vshrl.u32 2131351028, %v1585
    %v1592 = vor.u32 %v1590, %v1591
    %v1593 = vshll.u32 2131351028, %v1584
    %v1594 = vshrl.u32 2102212464, %v1585
    %v1595 = vor.u32 %v1593, %v1594
    %v1596 = vshll.u32 2102212464, %v1584
    %v1597 = vshrl.u32 920167782, %v1585
    %v1598 = vor.u32 %v1596, %v1597
    %v1599 = vshll.u32 920167782, %v1584
    %v1600 = vshrl.u32 1326507024, %v1585
    %v1601 = vor.u32 %v1599, %v1600
    %vm1602 = vcmp.lt.s32.totalorder %v1583, 1
    %vm1603 = vcmp.lt.s32.totalorder %v1583, 2
    %vm1604 = vcmp.lt.s32.totalorder %v1583, 3
    %vm1605 = vcmp.lt.s32.totalorder %v1583, 4
    %v1606 = vsel %vm1602, %v1586, %v1589
    %v1607 = vsel %vm1605, %v1595, 2102212464
    %v1608 = vsel %vm1604, %v1592, %v1607
    %v1609 = vsel %vm1603, %v1606, %v1608
    %v1610 = vsel %vm1602, %v1589, %v1592
    %v1611 = vsel %vm1605, %v1598, 920167782
    %v1612 = vsel %vm1604, %v1595, %v1611
    %v1613 = vsel %vm1603, %v1610, %v1612
    %v1614 = vsel %vm1602, %v1592, %v1595
    %v1615 = vsel %vm1605, %v1601, 1326507024
    %v1616 = vsel %vm1604, %v1598, %v1615
    %v1617 = vsel %vm1603, %v1614, %v1616
    %v1618 = vshll.u32 %v1578, 8
    %v1619 = vmul.u32.u64.compose %v1618, %v1617
    %v1620 = vextract.low.u32 %v1619
    %v1621 = vextract.high.u32 %v1619
    %v1622 = vmul.u32.u64.compose %v1618, %v1613
    %v1623 = vextract.low.u32 %v1622
    %v1624 = vextract.high.u32 %v1622
    %v1625 = vmul.u32 %v1618, %v1609
    %v1626 = vadd.s32 %v1621, %v1623
    %vm1627 = vc.u32 %v1621, %v1623
    %v1628 = vadd.s32 %v1624, 1
    %v1629 = vsel %vm1627, %v1628, %v1624
    %v1630 = vadd.s32 %v1625, %v1629
    %v1631 = vadd.s32 %v1630, 536870912
    %v1632 = vshrl.u32 %v1631, 30
    %v1633 = vshll.u32 %v1632, 30
    %v1634 = vsub.s32 %v1630, %v1633
    %vm1635 = vcmp.lt.s32.totalorder %v1634, 0
    %v1636 = vsub.s32 0, %v1634
    %v1637 = vsel %vm1635, %v1636, %v1634
    %v1638 = vclz %v1637
    %v1639 = vsub.s32 %v1638, 2
    %vm1640 = vcmp.gt.s32.totalorder 0, %v1639
    %v1641 = vsel %vm1640, 0, %v1639
    %v1642 = vsub.s32 32, %v1641
    %v1643 = vshll.u32 %v1634, %v1641
    %v1644 = vshrl.u32 %v1626, %v1642
    %v1645 = vor.u32 %v1643, %v1644
    %v1646 = vsub.s32 4294967266, %v1641
    %v1647 = vadd.s32 %v1646, 127
    %v1648 = vshll.u32 %v1647, 23
    %v1649 = vor.u32 4788187, %v1648
    %v1650 = vand.u32 2147483647, %v1649
    %v1652 = vcvt.s32.f32 %v1645
    %v1653 = vmul.f32 %v1652, %v1650
    %v1654 = vxor.u32 %v1653, 2147483648
    %v1655 = vsel %vm1572, %v1654, %v1653
    %v1656 = vsub.s32 4, %v1632
    %v1657 = vsel %vm1572, %v1656, %v1632
    %v1658 = vsel %vm1571, %v840, %v1655
    %v1659 = vsel %vm1571, 0, %v1657
    %v1660 = vcosq.f32.pop %v1658
    %v1661 = vsinq.f32.pop %v1658
    %vm1662 = vweird.f32 %v840
    %v1663 = vand.u32 %v1659, 3
    %vm1664 = vcmp.lt.s32.totalorder %v1663, 2
    %vm1665 = vcmp.eq.s32.totalorder %v1663, 0
    %v1666 = vxor.u32 %v1661, 2147483648
    %v1667 = vsel %vm1665, %v1660, %v1666
    %vm1668 = vcmp.eq.s32.totalorder %v1663, 2
    %v1669 = vxor.u32 %v1660, 2147483648
    %v1670 = vsel %vm1668, %v1669, %v1661
    %v1671 = vsel %vm1664, %v1667, %v1670
    %v1672 = vsel %vm1662, nan, %v1671
    %v1673 = vand.u32 2147483647, %v841
    %vm1674 = vcmp.le.f32.partialorder %v1673, 0.7853982
    %vm1675 = vcmp.lt.s32.totalorder %v841, 0
    %v1676 = vand.u32 %v841, 2139095040
    %v1677 = vshrl.u32 %v1676, 23
    %v1678 = vsub.s32 %v1677, 127
    %v1679 = vand.u32 2147483647, %v841
    %v1680 = vand.u32 %v1679, 8388607
    %v1681 = vor.u32 %v1680, 8388608
    %v1682 = vsub.s32 0, %v1681
    %v1683 = vadd.s32 %v1678, 1
    %vm1684 = vcmp.gt.s32.totalorder %v1683, 0
    %v1685 = vsel %vm1684, %v1683, 0
    %v1686 = vshrl.u32 %v1685, 5
    %v1687 = vand.u32 %v1685, 31
    %v1688 = vsub.s32 32, %v1687
    %v1689 = vshrl.u32 683565275, %v1688
    %v1690 = vshll.u32 683565275, %v1687
    %v1691 = vshrl.u32 2475754826, %v1688
    %v1692 = vor.u32 %v1690, %v1691
    %v1693 = vshll.u32 2475754826, %v1687
    %v1694 = vshrl.u32 2131351028, %v1688
    %v1695 = vor.u32 %v1693, %v1694
    %v1696 = vshll.u32 2131351028, %v1687
    %v1697 = vshrl.u32 2102212464, %v1688
    %v1698 = vor.u32 %v1696, %v1697
    %v1699 = vshll.u32 2102212464, %v1687
    %v1700 = vshrl.u32 920167782, %v1688
    %v1701 = vor.u32 %v1699, %v1700
    %v1702 = vshll.u32 920167782, %v1687
    %v1703 = vshrl.u32 1326507024, %v1688
    %v1704 = vor.u32 %v1702, %v1703
    %vm1705 = vcmp.lt.s32.totalorder %v1686, 1
    %vm1706 = vcmp.lt.s32.totalorder %v1686, 2
    %vm1707 = vcmp.lt.s32.totalorder %v1686, 3
    %vm1708 = vcmp.lt.s32.totalorder %v1686, 4
    %v1709 = vsel %vm1705, %v1689, %v1692
    %v1710 = vsel %vm1708, %v1698, 2102212464
    %v1711 = vsel %vm1707, %v1695, %v1710
    %v1712 = vsel %vm1706, %v1709, %v1711
    %v1713 = vsel %vm1705, %v1692, %v1695
    %v1714 = vsel %vm1708, %v1701, 920167782
    %v1715 = vsel %vm1707, %v1698, %v1714
    %v1716 = vsel %vm1706, %v1713, %v1715
    %v1717 = vsel %vm1705, %v1695, %v1698
    %v1718 = vsel %vm1708, %v1704, 1326507024
    %v1719 = vsel %vm1707, %v1701, %v1718
    %v1720 = vsel %vm1706, %v1717, %v1719
    %v1721 = vshll.u32 %v1681, 8
    %v1722 = vmul.u32.u64.compose %v1721, %v1720
    %v1723 = vextract.low.u32 %v1722
    %v1724 = vextract.high.u32 %v1722
    %v1725 = vmul.u32.u64.compose %v1721, %v1716
    %v1726 = vextract.low.u32 %v1725
    %v1727 = vextract.high.u32 %v1725
    %v1728 = vmul.u32 %v1721, %v1712
    %v1729 = vadd.s32 %v1724, %v1726
    %vm1730 = vc.u32 %v1724, %v1726
    %v1731 = vadd.s32 %v1727, 1
    %v1732 = vsel %vm1730, %v1731, %v1727
    %v1733 = vadd.s32 %v1728, %v1732
    %v1734 = vadd.s32 %v1733, 536870912
    %v1735 = vshrl.u32 %v1734, 30
    %v1736 = vshll.u32 %v1735, 30
    %v1737 = vsub.s32 %v1733, %v1736
    %vm1738 = vcmp.lt.s32.totalorder %v1737, 0
    %v1739 = vsub.s32 0, %v1737
    %v1740 = vsel %vm1738, %v1739, %v1737
    %v1741 = vclz %v1740
    %v1742 = vsub.s32 %v1741, 2
    %vm1743 = vcmp.gt.s32.totalorder 0, %v1742
    %v1744 = vsel %vm1743, 0, %v1742
    %v1745 = vsub.s32 32, %v1744
    %v1746 = vshll.u32 %v1737, %v1744
    %v1747 = vshrl.u32 %v1729, %v1745
    %v1748 = vor.u32 %v1746, %v1747
    %v1749 = vsub.s32 4294967266, %v1744
    %v1750 = vadd.s32 %v1749, 127
    %v1751 = vshll.u32 %v1750, 23
    %v1752 = vor.u32 4788187, %v1751
    %v1753 = vand.u32 2147483647, %v1752
    %v1755 = vcvt.s32.f32 %v1748
    %v1756 = vmul.f32 %v1755, %v1753
    %v1757 = vxor.u32 %v1756, 2147483648
    %v1758 = vsel %vm1675, %v1757, %v1756
    %v1759 = vsub.s32 4, %v1735
    %v1760 = vsel %vm1675, %v1759, %v1735
    %v1761 = vsel %vm1674, %v841, %v1758
    %v1762 = vsel %vm1674, 0, %v1760
    %v1763 = vcosq.f32.pop %v1761
    %v1764 = vsinq.f32.pop %v1761
    %vm1765 = vweird.f32 %v841
    %v1766 = vand.u32 %v1762, 3
    %vm1767 = vcmp.lt.s32.totalorder %v1766, 2
    %vm1768 = vcmp.eq.s32.totalorder %v1766, 0
    %v1769 = vxor.u32 %v1764, 2147483648
    %v1770 = vsel %vm1768, %v1763, %v1769
    %vm1771 = vcmp.eq.s32.totalorder %v1766, 2
    %v1772 = vxor.u32 %v1763, 2147483648
    %v1773 = vsel %vm1771, %v1772, %v1764
    %v1774 = vsel %vm1767, %v1770, %v1773
    %v1775 = vsel %vm1765, nan, %v1774
    %v1776 = vand.u32 2147483647, %v842
    %vm1777 = vcmp.le.f32.partialorder %v1776, 0.7853982
    %vm1778 = vcmp.lt.s32.totalorder %v842, 0
    %v1779 = vand.u32 %v842, 2139095040
    %v1780 = vshrl.u32 %v1779, 23
    %v1781 = vsub.s32 %v1780, 127
    %v1782 = vand.u32 2147483647, %v842
    %v1783 = vand.u32 %v1782, 8388607
    %v1784 = vor.u32 %v1783, 8388608
    %v1785 = vsub.s32 0, %v1784
    %v1786 = vadd.s32 %v1781, 1
    %vm1787 = vcmp.gt.s32.totalorder %v1786, 0
    %v1788 = vsel %vm1787, %v1786, 0
    %v1789 = vshrl.u32 %v1788, 5
    %v1790 = vand.u32 %v1788, 31
    %v1791 = vsub.s32 32, %v1790
    %v1792 = vshrl.u32 683565275, %v1791
    %v1793 = vshll.u32 683565275, %v1790
    %v1794 = vshrl.u32 2475754826, %v1791
    %v1795 = vor.u32 %v1793, %v1794
    %v1796 = vshll.u32 2475754826, %v1790
    %v1797 = vshrl.u32 2131351028, %v1791
    %v1798 = vor.u32 %v1796, %v1797
    %v1799 = vshll.u32 2131351028, %v1790
    %v1800 = vshrl.u32 2102212464, %v1791
    %v1801 = vor.u32 %v1799, %v1800
    %v1802 = vshll.u32 2102212464, %v1790
    %v1803 = vshrl.u32 920167782, %v1791
    %v1804 = vor.u32 %v1802, %v1803
    %v1805 = vshll.u32 920167782, %v1790
    %v1806 = vshrl.u32 1326507024, %v1791
    %v1807 = vor.u32 %v1805, %v1806
    %vm1808 = vcmp.lt.s32.totalorder %v1789, 1
    %vm1809 = vcmp.lt.s32.totalorder %v1789, 2
    %vm1810 = vcmp.lt.s32.totalorder %v1789, 3
    %vm1811 = vcmp.lt.s32.totalorder %v1789, 4
    %v1812 = vsel %vm1808, %v1792, %v1795
    %v1813 = vsel %vm1811, %v1801, 2102212464
    %v1814 = vsel %vm1810, %v1798, %v1813
    %v1815 = vsel %vm1809, %v1812, %v1814
    %v1816 = vsel %vm1808, %v1795, %v1798
    %v1817 = vsel %vm1811, %v1804, 920167782
    %v1818 = vsel %vm1810, %v1801, %v1817
    %v1819 = vsel %vm1809, %v1816, %v1818
    %v1820 = vsel %vm1808, %v1798, %v1801
    %v1821 = vsel %vm1811, %v1807, 1326507024
    %v1822 = vsel %vm1810, %v1804, %v1821
    %v1823 = vsel %vm1809, %v1820, %v1822
    %v1824 = vshll.u32 %v1784, 8
    %v1825 = vmul.u32.u64.compose %v1824, %v1823
    %v1826 = vextract.low.u32 %v1825
    %v1827 = vextract.high.u32 %v1825
    %v1828 = vmul.u32.u64.compose %v1824, %v1819
    %v1829 = vextract.low.u32 %v1828
    %v1830 = vextract.high.u32 %v1828
    %v1831 = vmul.u32 %v1824, %v1815
    %v1832 = vadd.s32 %v1827, %v1829
    %vm1833 = vc.u32 %v1827, %v1829
    %v1834 = vadd.s32 %v1830, 1
    %v1835 = vsel %vm1833, %v1834, %v1830
    %v1836 = vadd.s32 %v1831, %v1835
    %v1837 = vadd.s32 %v1836, 536870912
    %v1838 = vshrl.u32 %v1837, 30
    %v1839 = vshll.u32 %v1838, 30
    %v1840 = vsub.s32 %v1836, %v1839
    %vm1841 = vcmp.lt.s32.totalorder %v1840, 0
    %v1842 = vsub.s32 0, %v1840
    %v1843 = vsel %vm1841, %v1842, %v1840
    %v1844 = vclz %v1843
    %v1845 = vsub.s32 %v1844, 2
    %vm1846 = vcmp.gt.s32.totalorder 0, %v1845
    %v1847 = vsel %vm1846, 0, %v1845
    %v1848 = vsub.s32 32, %v1847
    %v1849 = vshll.u32 %v1840, %v1847
    %v1850 = vshrl.u32 %v1832, %v1848
    %v1851 = vor.u32 %v1849, %v1850
    %v1852 = vsub.s32 4294967266, %v1847
    %v1853 = vadd.s32 %v1852, 127
    %v1854 = vshll.u32 %v1853, 23
    %v1855 = vor.u32 4788187, %v1854
    %v1856 = vand.u32 2147483647, %v1855
    %v1858 = vcvt.s32.f32 %v1851
    %v1859 = vmul.f32 %v1858, %v1856
    %v1860 = vxor.u32 %v1859, 2147483648
    %v1861 = vsel %vm1778, %v1860, %v1859
    %v1862 = vsub.s32 4, %v1838
    %v1863 = vsel %vm1778, %v1862, %v1838
    %v1864 = vsel %vm1777, %v842, %v1861
    %v1865 = vsel %vm1777, 0, %v1863
    %v1866 = vcosq.f32.pop %v1864
    %v1867 = vsinq.f32.pop %v1864
    %vm1868 = vweird.f32 %v842
    %v1869 = vand.u32 %v1865, 3
    %vm1870 = vcmp.lt.s32.totalorder %v1869, 2
    %vm1871 = vcmp.eq.s32.totalorder %v1869, 0
    %v1872 = vxor.u32 %v1867, 2147483648
    %v1873 = vsel %vm1871, %v1866, %v1872
    %vm1874 = vcmp.eq.s32.totalorder %v1869, 2
    %v1875 = vxor.u32 %v1866, 2147483648
    %v1876 = vsel %vm1874, %v1875, %v1867
    %v1877 = vsel %vm1870, %v1873, %v1876
    %v1878 = vsel %vm1868, nan, %v1877
    %v1879 = vand.u32 2147483647, %v843
    %vm1880 = vcmp.le.f32.partialorder %v1879, 0.7853982
    %vm1881 = vcmp.lt.s32.totalorder %v843, 0
    %v1882 = vand.u32 %v843, 2139095040
    %v1883 = vshrl.u32 %v1882, 23
    %v1884 = vsub.s32 %v1883, 127
    %v1885 = vand.u32 2147483647, %v843
    %v1886 = vand.u32 %v1885, 8388607
    %v1887 = vor.u32 %v1886, 8388608
    %v1888 = vsub.s32 0, %v1887
    %v1889 = vadd.s32 %v1884, 1
    %vm1890 = vcmp.gt.s32.totalorder %v1889, 0
    %v1891 = vsel %vm1890, %v1889, 0
    %v1892 = vshrl.u32 %v1891, 5
    %v1893 = vand.u32 %v1891, 31
    %v1894 = vsub.s32 32, %v1893
    %v1895 = vshrl.u32 683565275, %v1894
    %v1896 = vshll.u32 683565275, %v1893
    %v1897 = vshrl.u32 2475754826, %v1894
    %v1898 = vor.u32 %v1896, %v1897
    %v1899 = vshll.u32 2475754826, %v1893
    %v1900 = vshrl.u32 2131351028, %v1894
    %v1901 = vor.u32 %v1899, %v1900
    %v1902 = vshll.u32 2131351028, %v1893
    %v1903 = vshrl.u32 2102212464, %v1894
    %v1904 = vor.u32 %v1902, %v1903
    %v1905 = vshll.u32 2102212464, %v1893
    %v1906 = vshrl.u32 920167782, %v1894
    %v1907 = vor.u32 %v1905, %v1906
    %v1908 = vshll.u32 920167782, %v1893
    %v1909 = vshrl.u32 1326507024, %v1894
    %v1910 = vor.u32 %v1908, %v1909
    %vm1911 = vcmp.lt.s32.totalorder %v1892, 1
    %vm1912 = vcmp.lt.s32.totalorder %v1892, 2
    %vm1913 = vcmp.lt.s32.totalorder %v1892, 3
    %vm1914 = vcmp.lt.s32.totalorder %v1892, 4
    %v1915 = vsel %vm1911, %v1895, %v1898
    %v1916 = vsel %vm1914, %v1904, 2102212464
    %v1917 = vsel %vm1913, %v1901, %v1916
    %v1918 = vsel %vm1912, %v1915, %v1917
    %v1919 = vsel %vm1911, %v1898, %v1901
    %v1920 = vsel %vm1914, %v1907, 920167782
    %v1921 = vsel %vm1913, %v1904, %v1920
    %v1922 = vsel %vm1912, %v1919, %v1921
    %v1923 = vsel %vm1911, %v1901, %v1904
    %v1924 = vsel %vm1914, %v1910, 1326507024
    %v1925 = vsel %vm1913, %v1907, %v1924
    %v1926 = vsel %vm1912, %v1923, %v1925
    %v1927 = vshll.u32 %v1887, 8
    %v1928 = vmul.u32.u64.compose %v1927, %v1926
    %v1929 = vextract.low.u32 %v1928
    %v1930 = vextract.high.u32 %v1928
    %v1931 = vmul.u32.u64.compose %v1927, %v1922
    %v1932 = vextract.low.u32 %v1931
    %v1933 = vextract.high.u32 %v1931
    %v1934 = vmul.u32 %v1927, %v1918
    %v1935 = vadd.s32 %v1930, %v1932
    %vm1936 = vc.u32 %v1930, %v1932
    %v1937 = vadd.s32 %v1933, 1
    %v1938 = vsel %vm1936, %v1937, %v1933
    %v1939 = vadd.s32 %v1934, %v1938
    %v1940 = vadd.s32 %v1939, 536870912
    %v1941 = vshrl.u32 %v1940, 30
    %v1942 = vshll.u32 %v1941, 30
    %v1943 = vsub.s32 %v1939, %v1942
    %vm1944 = vcmp.lt.s32.totalorder %v1943, 0
    %v1945 = vsub.s32 0, %v1943
    %v1946 = vsel %vm1944, %v1945, %v1943
    %v1947 = vclz %v1946
    %v1948 = vsub.s32 %v1947, 2
    %vm1949 = vcmp.gt.s32.totalorder 0, %v1948
    %v1950 = vsel %vm1949, 0, %v1948
    %v1951 = vsub.s32 32, %v1950
    %v1952 = vshll.u32 %v1943, %v1950
    %v1953 = vshrl.u32 %v1935, %v1951
    %v1954 = vor.u32 %v1952, %v1953
    %v1955 = vsub.s32 4294967266, %v1950
    %v1956 = vadd.s32 %v1955, 127
    %v1957 = vshll.u32 %v1956, 23
    %v1958 = vor.u32 4788187, %v1957
    %v1959 = vand.u32 2147483647, %v1958
    %v1961 = vcvt.s32.f32 %v1954
    %v1962 = vmul.f32 %v1961, %v1959
    %v1963 = vxor.u32 %v1962, 2147483648
    %v1964 = vsel %vm1881, %v1963, %v1962
    %v1965 = vsub.s32 4, %v1941
    %v1966 = vsel %vm1881, %v1965, %v1941
    %v1967 = vsel %vm1880, %v843, %v1964
    %v1968 = vsel %vm1880, 0, %v1966
    %v1969 = vcosq.f32.pop %v1967
    %v1970 = vsinq.f32.pop %v1967
    %vm1971 = vweird.f32 %v843
    %v1972 = vand.u32 %v1968, 3
    %vm1973 = vcmp.lt.s32.totalorder %v1972, 2
    %vm1974 = vcmp.eq.s32.totalorder %v1972, 0
    %v1975 = vxor.u32 %v1970, 2147483648
    %v1976 = vsel %vm1974, %v1969, %v1975
    %vm1977 = vcmp.eq.s32.totalorder %v1972, 2
    %v1978 = vxor.u32 %v1969, 2147483648
    %v1979 = vsel %vm1977, %v1978, %v1970
    %v1980 = vsel %vm1973, %v1976, %v1979
    %v1981 = vsel %vm1971, nan, %v1980
    %v1982 = vand.u32 2147483647, %v844
    %vm1983 = vcmp.le.f32.partialorder %v1982, 0.7853982
    %vm1984 = vcmp.lt.s32.totalorder %v844, 0
    %v1985 = vand.u32 %v844, 2139095040
    %v1986 = vshrl.u32 %v1985, 23
    %v1987 = vsub.s32 %v1986, 127
    %v1988 = vand.u32 2147483647, %v844
    %v1989 = vand.u32 %v1988, 8388607
    %v1990 = vor.u32 %v1989, 8388608
    %v1991 = vsub.s32 0, %v1990
    %v1992 = vadd.s32 %v1987, 1
    %vm1993 = vcmp.gt.s32.totalorder %v1992, 0
    %v1994 = vsel %vm1993, %v1992, 0
    %v1995 = vshrl.u32 %v1994, 5
    %v1996 = vand.u32 %v1994, 31
    %v1997 = vsub.s32 32, %v1996
    %v1998 = vshrl.u32 683565275, %v1997
    %v1999 = vshll.u32 683565275, %v1996
    %v2000 = vshrl.u32 2475754826, %v1997
    %v2001 = vor.u32 %v1999, %v2000
    %v2002 = vshll.u32 2475754826, %v1996
    %v2003 = vshrl.u32 2131351028, %v1997
    %v2004 = vor.u32 %v2002, %v2003
    %v2005 = vshll.u32 2131351028, %v1996
    %v2006 = vshrl.u32 2102212464, %v1997
    %v2007 = vor.u32 %v2005, %v2006
    %v2008 = vshll.u32 2102212464, %v1996
    %v2009 = vshrl.u32 920167782, %v1997
    %v2010 = vor.u32 %v2008, %v2009
    %v2011 = vshll.u32 920167782, %v1996
    %v2012 = vshrl.u32 1326507024, %v1997
    %v2013 = vor.u32 %v2011, %v2012
    %vm2014 = vcmp.lt.s32.totalorder %v1995, 1
    %vm2015 = vcmp.lt.s32.totalorder %v1995, 2
    %vm2016 = vcmp.lt.s32.totalorder %v1995, 3
    %vm2017 = vcmp.lt.s32.totalorder %v1995, 4
    %v2018 = vsel %vm2014, %v1998, %v2001
    %v2019 = vsel %vm2017, %v2007, 2102212464
    %v2020 = vsel %vm2016, %v2004, %v2019
    %v2021 = vsel %vm2015, %v2018, %v2020
    %v2022 = vsel %vm2014, %v2001, %v2004
    %v2023 = vsel %vm2017, %v2010, 920167782
    %v2024 = vsel %vm2016, %v2007, %v2023
    %v2025 = vsel %vm2015, %v2022, %v2024
    %v2026 = vsel %vm2014, %v2004, %v2007
    %v2027 = vsel %vm2017, %v2013, 1326507024
    %v2028 = vsel %vm2016, %v2010, %v2027
    %v2029 = vsel %vm2015, %v2026, %v2028
    %v2030 = vshll.u32 %v1990, 8
    %v2031 = vmul.u32.u64.compose %v2030, %v2029
    %v2032 = vextract.low.u32 %v2031
    %v2033 = vextract.high.u32 %v2031
    %v2034 = vmul.u32.u64.compose %v2030, %v2025
    %v2035 = vextract.low.u32 %v2034
    %v2036 = vextract.high.u32 %v2034
    %v2037 = vmul.u32 %v2030, %v2021
    %v2038 = vadd.s32 %v2033, %v2035
    %vm2039 = vc.u32 %v2033, %v2035
    %v2040 = vadd.s32 %v2036, 1
    %v2041 = vsel %vm2039, %v2040, %v2036
    %v2042 = vadd.s32 %v2037, %v2041
    %v2043 = vadd.s32 %v2042, 536870912
    %v2044 = vshrl.u32 %v2043, 30
    %v2045 = vshll.u32 %v2044, 30
    %v2046 = vsub.s32 %v2042, %v2045
    %vm2047 = vcmp.lt.s32.totalorder %v2046, 0
    %v2048 = vsub.s32 0, %v2046
    %v2049 = vsel %vm2047, %v2048, %v2046
    %v2050 = vclz %v2049
    %v2051 = vsub.s32 %v2050, 2
    %vm2052 = vcmp.gt.s32.totalorder 0, %v2051
    %v2053 = vsel %vm2052, 0, %v2051
    %v2054 = vsub.s32 32, %v2053
    %v2055 = vshll.u32 %v2046, %v2053
    %v2056 = vshrl.u32 %v2038, %v2054
    %v2057 = vor.u32 %v2055, %v2056
    %v2058 = vsub.s32 4294967266, %v2053
    %v2059 = vadd.s32 %v2058, 127
    %v2060 = vshll.u32 %v2059, 23
    %v2061 = vor.u32 4788187, %v2060
    %v2062 = vand.u32 2147483647, %v2061
    %v2064 = vcvt.s32.f32 %v2057
    %v2065 = vmul.f32 %v2064, %v2062
    %v2066 = vxor.u32 %v2065, 2147483648
    %v2067 = vsel %vm1984, %v2066, %v2065
    %v2068 = vsub.s32 4, %v2044
    %v2069 = vsel %vm1984, %v2068, %v2044
    %v2070 = vsel %vm1983, %v844, %v2067
    %v2071 = vsel %vm1983, 0, %v2069
    %v2072 = vcosq.f32.pop %v2070
    %v2073 = vsinq.f32.pop %v2070
    %vm2074 = vweird.f32 %v844
    %v2075 = vand.u32 %v2071, 3
    %vm2076 = vcmp.lt.s32.totalorder %v2075, 2
    %vm2077 = vcmp.eq.s32.totalorder %v2075, 0
    %v2078 = vxor.u32 %v2073, 2147483648
    %v2079 = vsel %vm2077, %v2072, %v2078
    %vm2080 = vcmp.eq.s32.totalorder %v2075, 2
    %v2081 = vxor.u32 %v2072, 2147483648
    %v2082 = vsel %vm2080, %v2081, %v2073
    %v2083 = vsel %vm2076, %v2079, %v2082
    %v2084 = vsel %vm2074, nan, %v2083
    %v2085 = vand.u32 2147483647, %v845
    %vm2086 = vcmp.le.f32.partialorder %v2085, 0.7853982
    %vm2087 = vcmp.lt.s32.totalorder %v845, 0
    %v2088 = vand.u32 %v845, 2139095040
    %v2089 = vshrl.u32 %v2088, 23
    %v2090 = vsub.s32 %v2089, 127
    %v2091 = vand.u32 2147483647, %v845
    %v2092 = vand.u32 %v2091, 8388607
    %v2093 = vor.u32 %v2092, 8388608
    %v2094 = vsub.s32 0, %v2093
    %v2095 = vadd.s32 %v2090, 1
    %vm2096 = vcmp.gt.s32.totalorder %v2095, 0
    %v2097 = vsel %vm2096, %v2095, 0
    %v2098 = vshrl.u32 %v2097, 5
    %v2099 = vand.u32 %v2097, 31
    %v2100 = vsub.s32 32, %v2099
    %v2101 = vshrl.u32 683565275, %v2100
    %v2102 = vshll.u32 683565275, %v2099
    %v2103 = vshrl.u32 2475754826, %v2100
    %v2104 = vor.u32 %v2102, %v2103
    %v2105 = vshll.u32 2475754826, %v2099
    %v2106 = vshrl.u32 2131351028, %v2100
    %v2107 = vor.u32 %v2105, %v2106
    %v2108 = vshll.u32 2131351028, %v2099
    %v2109 = vshrl.u32 2102212464, %v2100
    %v2110 = vor.u32 %v2108, %v2109
    %v2111 = vshll.u32 2102212464, %v2099
    %v2112 = vshrl.u32 920167782, %v2100
    %v2113 = vor.u32 %v2111, %v2112
    %v2114 = vshll.u32 920167782, %v2099
    %v2115 = vshrl.u32 1326507024, %v2100
    %v2116 = vor.u32 %v2114, %v2115
    %vm2117 = vcmp.lt.s32.totalorder %v2098, 1
    %vm2118 = vcmp.lt.s32.totalorder %v2098, 2
    %vm2119 = vcmp.lt.s32.totalorder %v2098, 3
    %vm2120 = vcmp.lt.s32.totalorder %v2098, 4
    %v2121 = vsel %vm2117, %v2101, %v2104
    %v2122 = vsel %vm2120, %v2110, 2102212464
    %v2123 = vsel %vm2119, %v2107, %v2122
    %v2124 = vsel %vm2118, %v2121, %v2123
    %v2125 = vsel %vm2117, %v2104, %v2107
    %v2126 = vsel %vm2120, %v2113, 920167782
    %v2127 = vsel %vm2119, %v2110, %v2126
    %v2128 = vsel %vm2118, %v2125, %v2127
    %v2129 = vsel %vm2117, %v2107, %v2110
    %v2130 = vsel %vm2120, %v2116, 1326507024
    %v2131 = vsel %vm2119, %v2113, %v2130
    %v2132 = vsel %vm2118, %v2129, %v2131
    %v2133 = vshll.u32 %v2093, 8
    %v2134 = vmul.u32.u64.compose %v2133, %v2132
    %v2135 = vextract.low.u32 %v2134
    %v2136 = vextract.high.u32 %v2134
    %v2137 = vmul.u32.u64.compose %v2133, %v2128
    %v2138 = vextract.low.u32 %v2137
    %v2139 = vextract.high.u32 %v2137
    %v2140 = vmul.u32 %v2133, %v2124
    %v2141 = vadd.s32 %v2136, %v2138
    %vm2142 = vc.u32 %v2136, %v2138
    %v2143 = vadd.s32 %v2139, 1
    %v2144 = vsel %vm2142, %v2143, %v2139
    %v2145 = vadd.s32 %v2140, %v2144
    %v2146 = vadd.s32 %v2145, 536870912
    %v2147 = vshrl.u32 %v2146, 30
    %v2148 = vshll.u32 %v2147, 30
    %v2149 = vsub.s32 %v2145, %v2148
    %vm2150 = vcmp.lt.s32.totalorder %v2149, 0
    %v2151 = vsub.s32 0, %v2149
    %v2152 = vsel %vm2150, %v2151, %v2149
    %v2153 = vclz %v2152
    %v2154 = vsub.s32 %v2153, 2
    %vm2155 = vcmp.gt.s32.totalorder 0, %v2154
    %v2156 = vsel %vm2155, 0, %v2154
    %v2157 = vsub.s32 32, %v2156
    %v2158 = vshll.u32 %v2149, %v2156
    %v2159 = vshrl.u32 %v2141, %v2157
    %v2160 = vor.u32 %v2158, %v2159
    %v2161 = vsub.s32 4294967266, %v2156
    %v2162 = vadd.s32 %v2161, 127
    %v2163 = vshll.u32 %v2162, 23
    %v2164 = vor.u32 4788187, %v2163
    %v2165 = vand.u32 2147483647, %v2164
    %v2167 = vcvt.s32.f32 %v2160
    %v2168 = vmul.f32 %v2167, %v2165
    %v2169 = vxor.u32 %v2168, 2147483648
    %v2170 = vsel %vm2087, %v2169, %v2168
    %v2171 = vsub.s32 4, %v2147
    %v2172 = vsel %vm2087, %v2171, %v2147
    %v2173 = vsel %vm2086, %v845, %v2170
    %v2174 = vsel %vm2086, 0, %v2172
    %v2175 = vcosq.f32.pop %v2173
    %v2176 = vsinq.f32.pop %v2173
    %vm2177 = vweird.f32 %v845
    %v2178 = vand.u32 %v2174, 3
    %vm2179 = vcmp.lt.s32.totalorder %v2178, 2
    %vm2180 = vcmp.eq.s32.totalorder %v2178, 0
    %v2181 = vxor.u32 %v2176, 2147483648
    %v2182 = vsel %vm2180, %v2175, %v2181
    %vm2183 = vcmp.eq.s32.totalorder %v2178, 2
    %v2184 = vxor.u32 %v2175, 2147483648
    %v2185 = vsel %vm2183, %v2184, %v2176
    %v2186 = vsel %vm2179, %v2182, %v2185
    %v2187 = vsel %vm2177, nan, %v2186
    %v2188 = vand.u32 2147483647, %v846
    %vm2189 = vcmp.le.f32.partialorder %v2188, 0.7853982
    %vm2190 = vcmp.lt.s32.totalorder %v846, 0
    %v2191 = vand.u32 %v846, 2139095040
    %v2192 = vshrl.u32 %v2191, 23
    %v2193 = vsub.s32 %v2192, 127
    %v2194 = vand.u32 2147483647, %v846
    %v2195 = vand.u32 %v2194, 8388607
    %v2196 = vor.u32 %v2195, 8388608
    %v2197 = vsub.s32 0, %v2196
    %v2198 = vadd.s32 %v2193, 1
    %vm2199 = vcmp.gt.s32.totalorder %v2198, 0
    %v2200 = vsel %vm2199, %v2198, 0
    %v2201 = vshrl.u32 %v2200, 5
    %v2202 = vand.u32 %v2200, 31
    %v2203 = vsub.s32 32, %v2202
    %v2204 = vshrl.u32 683565275, %v2203
    %v2205 = vshll.u32 683565275, %v2202
    %v2206 = vshrl.u32 2475754826, %v2203
    %v2207 = vor.u32 %v2205, %v2206
    %v2208 = vshll.u32 2475754826, %v2202
    %v2209 = vshrl.u32 2131351028, %v2203
    %v2210 = vor.u32 %v2208, %v2209
    %v2211 = vshll.u32 2131351028, %v2202
    %v2212 = vshrl.u32 2102212464, %v2203
    %v2213 = vor.u32 %v2211, %v2212
    %v2214 = vshll.u32 2102212464, %v2202
    %v2215 = vshrl.u32 920167782, %v2203
    %v2216 = vor.u32 %v2214, %v2215
    %v2217 = vshll.u32 920167782, %v2202
    %v2218 = vshrl.u32 1326507024, %v2203
    %v2219 = vor.u32 %v2217, %v2218
    %vm2220 = vcmp.lt.s32.totalorder %v2201, 1
    %vm2221 = vcmp.lt.s32.totalorder %v2201, 2
    %vm2222 = vcmp.lt.s32.totalorder %v2201, 3
    %vm2223 = vcmp.lt.s32.totalorder %v2201, 4
    %v2224 = vsel %vm2220, %v2204, %v2207
    %v2225 = vsel %vm2223, %v2213, 2102212464
    %v2226 = vsel %vm2222, %v2210, %v2225
    %v2227 = vsel %vm2221, %v2224, %v2226
    %v2228 = vsel %vm2220, %v2207, %v2210
    %v2229 = vsel %vm2223, %v2216, 920167782
    %v2230 = vsel %vm2222, %v2213, %v2229
    %v2231 = vsel %vm2221, %v2228, %v2230
    %v2232 = vsel %vm2220, %v2210, %v2213
    %v2233 = vsel %vm2223, %v2219, 1326507024
    %v2234 = vsel %vm2222, %v2216, %v2233
    %v2235 = vsel %vm2221, %v2232, %v2234
    %v2236 = vshll.u32 %v2196, 8
    %v2237 = vmul.u32.u64.compose %v2236, %v2235
    %v2238 = vextract.low.u32 %v2237
    %v2239 = vextract.high.u32 %v2237
    %v2240 = vmul.u32.u64.compose %v2236, %v2231
    %v2241 = vextract.low.u32 %v2240
    %v2242 = vextract.high.u32 %v2240
    %v2243 = vmul.u32 %v2236, %v2227
    %v2244 = vadd.s32 %v2239, %v2241
    %vm2245 = vc.u32 %v2239, %v2241
    %v2246 = vadd.s32 %v2242, 1
    %v2247 = vsel %vm2245, %v2246, %v2242
    %v2248 = vadd.s32 %v2243, %v2247
    %v2249 = vadd.s32 %v2248, 536870912
    %v2250 = vshrl.u32 %v2249, 30
    %v2251 = vshll.u32 %v2250, 30
    %v2252 = vsub.s32 %v2248, %v2251
    %vm2253 = vcmp.lt.s32.totalorder %v2252, 0
    %v2254 = vsub.s32 0, %v2252
    %v2255 = vsel %vm2253, %v2254, %v2252
    %v2256 = vclz %v2255
    %v2257 = vsub.s32 %v2256, 2
    %vm2258 = vcmp.gt.s32.totalorder 0, %v2257
    %v2259 = vsel %vm2258, 0, %v2257
    %v2260 = vsub.s32 32, %v2259
    %v2261 = vshll.u32 %v2252, %v2259
    %v2262 = vshrl.u32 %v2244, %v2260
    %v2263 = vor.u32 %v2261, %v2262
    %v2264 = vsub.s32 4294967266, %v2259
    %v2265 = vadd.s32 %v2264, 127
    %v2266 = vshll.u32 %v2265, 23
    %v2267 = vor.u32 4788187, %v2266
    %v2268 = vand.u32 2147483647, %v2267
    %v2270 = vcvt.s32.f32 %v2263
    %v2271 = vmul.f32 %v2270, %v2268
    %v2272 = vxor.u32 %v2271, 2147483648
    %v2273 = vsel %vm2190, %v2272, %v2271
    %v2274 = vsub.s32 4, %v2250
    %v2275 = vsel %vm2190, %v2274, %v2250
    %v2276 = vsel %vm2189, %v846, %v2273
    %v2277 = vsel %vm2189, 0, %v2275
    %v2278 = vcosq.f32.pop %v2276
    %v2279 = vsinq.f32.pop %v2276
    %vm2280 = vweird.f32 %v846
    %v2281 = vand.u32 %v2277, 3
    %vm2282 = vcmp.lt.s32.totalorder %v2281, 2
    %vm2283 = vcmp.eq.s32.totalorder %v2281, 0
    %v2284 = vxor.u32 %v2279, 2147483648
    %v2285 = vsel %vm2283, %v2278, %v2284
    %vm2286 = vcmp.eq.s32.totalorder %v2281, 2
    %v2287 = vxor.u32 %v2278, 2147483648
    %v2288 = vsel %vm2286, %v2287, %v2279
    %v2289 = vsel %vm2282, %v2285, %v2288
    %v2290 = vsel %vm2280, nan, %v2289
    %v2291 = vand.u32 2147483647, %v847
    %vm2292 = vcmp.le.f32.partialorder %v2291, 0.7853982
    %vm2293 = vcmp.lt.s32.totalorder %v847, 0
    %v2294 = vand.u32 %v847, 2139095040
    %v2295 = vshrl.u32 %v2294, 23
    %v2296 = vsub.s32 %v2295, 127
    %v2297 = vand.u32 2147483647, %v847
    %v2298 = vand.u32 %v2297, 8388607
    %v2299 = vor.u32 %v2298, 8388608
    %v2300 = vsub.s32 0, %v2299
    %v2301 = vadd.s32 %v2296, 1
    %vm2302 = vcmp.gt.s32.totalorder %v2301, 0
    %v2303 = vsel %vm2302, %v2301, 0
    %v2304 = vshrl.u32 %v2303, 5
    %v2305 = vand.u32 %v2303, 31
    %v2306 = vsub.s32 32, %v2305
    %v2307 = vshrl.u32 683565275, %v2306
    %v2308 = vshll.u32 683565275, %v2305
    %v2309 = vshrl.u32 2475754826, %v2306
    %v2310 = vor.u32 %v2308, %v2309
    %v2311 = vshll.u32 2475754826, %v2305
    %v2312 = vshrl.u32 2131351028, %v2306
    %v2313 = vor.u32 %v2311, %v2312
    %v2314 = vshll.u32 2131351028, %v2305
    %v2315 = vshrl.u32 2102212464, %v2306
    %v2316 = vor.u32 %v2314, %v2315
    %v2317 = vshll.u32 2102212464, %v2305
    %v2318 = vshrl.u32 920167782, %v2306
    %v2319 = vor.u32 %v2317, %v2318
    %v2320 = vshll.u32 920167782, %v2305
    %v2321 = vshrl.u32 1326507024, %v2306
    %v2322 = vor.u32 %v2320, %v2321
    %vm2323 = vcmp.lt.s32.totalorder %v2304, 1
    %vm2324 = vcmp.lt.s32.totalorder %v2304, 2
    %vm2325 = vcmp.lt.s32.totalorder %v2304, 3
    %vm2326 = vcmp.lt.s32.totalorder %v2304, 4
    %v2327 = vsel %vm2323, %v2307, %v2310
    %v2328 = vsel %vm2326, %v2316, 2102212464
    %v2329 = vsel %vm2325, %v2313, %v2328
    %v2330 = vsel %vm2324, %v2327, %v2329
    %v2331 = vsel %vm2323, %v2310, %v2313
    %v2332 = vsel %vm2326, %v2319, 920167782
    %v2333 = vsel %vm2325, %v2316, %v2332
    %v2334 = vsel %vm2324, %v2331, %v2333
    %v2335 = vsel %vm2323, %v2313, %v2316
    %v2336 = vsel %vm2326, %v2322, 1326507024
    %v2337 = vsel %vm2325, %v2319, %v2336
    %v2338 = vsel %vm2324, %v2335, %v2337
    %v2339 = vshll.u32 %v2299, 8
    %v2340 = vmul.u32.u64.compose %v2339, %v2338
    %v2341 = vextract.low.u32 %v2340
    %v2342 = vextract.high.u32 %v2340
    %v2343 = vmul.u32.u64.compose %v2339, %v2334
    %v2344 = vextract.low.u32 %v2343
    %v2345 = vextract.high.u32 %v2343
    %v2346 = vmul.u32 %v2339, %v2330
    %v2347 = vadd.s32 %v2342, %v2344
    %vm2348 = vc.u32 %v2342, %v2344
    %v2349 = vadd.s32 %v2345, 1
    %v2350 = vsel %vm2348, %v2349, %v2345
    %v2351 = vadd.s32 %v2346, %v2350
    %v2352 = vadd.s32 %v2351, 536870912
    %v2353 = vshrl.u32 %v2352, 30
    %v2354 = vshll.u32 %v2353, 30
    %v2355 = vsub.s32 %v2351, %v2354
    %vm2356 = vcmp.lt.s32.totalorder %v2355, 0
    %v2357 = vsub.s32 0, %v2355
    %v2358 = vsel %vm2356, %v2357, %v2355
    %v2359 = vclz %v2358
    %v2360 = vsub.s32 %v2359, 2
    %vm2361 = vcmp.gt.s32.totalorder 0, %v2360
    %v2362 = vsel %vm2361, 0, %v2360
    %v2363 = vsub.s32 32, %v2362
    %v2364 = vshll.u32 %v2355, %v2362
    %v2365 = vshrl.u32 %v2347, %v2363
    %v2366 = vor.u32 %v2364, %v2365
    %v2367 = vsub.s32 4294967266, %v2362
    %v2368 = vadd.s32 %v2367, 127
    %v2369 = vshll.u32 %v2368, 23
    %v2370 = vor.u32 4788187, %v2369
    %v2371 = vand.u32 2147483647, %v2370
    %v2373 = vcvt.s32.f32 %v2366
    %v2374 = vmul.f32 %v2373, %v2371
    %v2375 = vxor.u32 %v2374, 2147483648
    %v2376 = vsel %vm2293, %v2375, %v2374
    %v2377 = vsub.s32 4, %v2353
    %v2378 = vsel %vm2293, %v2377, %v2353
    %v2379 = vsel %vm2292, %v847, %v2376
    %v2380 = vsel %vm2292, 0, %v2378
    %v2381 = vcosq.f32.pop %v2379
    %v2382 = vsinq.f32.pop %v2379
    %vm2383 = vweird.f32 %v847
    %v2384 = vand.u32 %v2380, 3
    %vm2385 = vcmp.lt.s32.totalorder %v2384, 2
    %vm2386 = vcmp.eq.s32.totalorder %v2384, 0
    %v2387 = vxor.u32 %v2382, 2147483648
    %v2388 = vsel %vm2386, %v2381, %v2387
    %vm2389 = vcmp.eq.s32.totalorder %v2384, 2
    %v2390 = vxor.u32 %v2381, 2147483648
    %v2391 = vsel %vm2389, %v2390, %v2382
    %v2392 = vsel %vm2385, %v2388, %v2391
    %v2393 = vsel %vm2383, nan, %v2392
    %v2394 = vand.u32 2147483647, %v848
    %vm2395 = vcmp.le.f32.partialorder %v2394, 0.7853982
    %vm2396 = vcmp.lt.s32.totalorder %v848, 0
    %v2397 = vand.u32 %v848, 2139095040
    %v2398 = vshrl.u32 %v2397, 23
    %v2399 = vsub.s32 %v2398, 127
    %v2400 = vand.u32 2147483647, %v848
    %v2401 = vand.u32 %v2400, 8388607
    %v2402 = vor.u32 %v2401, 8388608
    %v2403 = vsub.s32 0, %v2402
    %v2404 = vadd.s32 %v2399, 1
    %vm2405 = vcmp.gt.s32.totalorder %v2404, 0
    %v2406 = vsel %vm2405, %v2404, 0
    %v2407 = vshrl.u32 %v2406, 5
    %v2408 = vand.u32 %v2406, 31
    %v2409 = vsub.s32 32, %v2408
    %v2410 = vshrl.u32 683565275, %v2409
    %v2411 = vshll.u32 683565275, %v2408
    %v2412 = vshrl.u32 2475754826, %v2409
    %v2413 = vor.u32 %v2411, %v2412
    %v2414 = vshll.u32 2475754826, %v2408
    %v2415 = vshrl.u32 2131351028, %v2409
    %v2416 = vor.u32 %v2414, %v2415
    %v2417 = vshll.u32 2131351028, %v2408
    %v2418 = vshrl.u32 2102212464, %v2409
    %v2419 = vor.u32 %v2417, %v2418
    %v2420 = vshll.u32 2102212464, %v2408
    %v2421 = vshrl.u32 920167782, %v2409
    %v2422 = vor.u32 %v2420, %v2421
    %v2423 = vshll.u32 920167782, %v2408
    %v2424 = vshrl.u32 1326507024, %v2409
    %v2425 = vor.u32 %v2423, %v2424
    %vm2426 = vcmp.lt.s32.totalorder %v2407, 1
    %vm2427 = vcmp.lt.s32.totalorder %v2407, 2
    %vm2428 = vcmp.lt.s32.totalorder %v2407, 3
    %vm2429 = vcmp.lt.s32.totalorder %v2407, 4
    %v2430 = vsel %vm2426, %v2410, %v2413
    %v2431 = vsel %vm2429, %v2419, 2102212464
    %v2432 = vsel %vm2428, %v2416, %v2431
    %v2433 = vsel %vm2427, %v2430, %v2432
    %v2434 = vsel %vm2426, %v2413, %v2416
    %v2435 = vsel %vm2429, %v2422, 920167782
    %v2436 = vsel %vm2428, %v2419, %v2435
    %v2437 = vsel %vm2427, %v2434, %v2436
    %v2438 = vsel %vm2426, %v2416, %v2419
    %v2439 = vsel %vm2429, %v2425, 1326507024
    %v2440 = vsel %vm2428, %v2422, %v2439
    %v2441 = vsel %vm2427, %v2438, %v2440
    %v2442 = vshll.u32 %v2402, 8
    %v2443 = vmul.u32.u64.compose %v2442, %v2441
    %v2444 = vextract.low.u32 %v2443
    %v2445 = vextract.high.u32 %v2443
    %v2446 = vmul.u32.u64.compose %v2442, %v2437
    %v2447 = vextract.low.u32 %v2446
    %v2448 = vextract.high.u32 %v2446
    %v2449 = vmul.u32 %v2442, %v2433
    %v2450 = vadd.s32 %v2445, %v2447
    %vm2451 = vc.u32 %v2445, %v2447
    %v2452 = vadd.s32 %v2448, 1
    %v2453 = vsel %vm2451, %v2452, %v2448
    %v2454 = vadd.s32 %v2449, %v2453
    %v2455 = vadd.s32 %v2454, 536870912
    %v2456 = vshrl.u32 %v2455, 30
    %v2457 = vshll.u32 %v2456, 30
    %v2458 = vsub.s32 %v2454, %v2457
    %vm2459 = vcmp.lt.s32.totalorder %v2458, 0
    %v2460 = vsub.s32 0, %v2458
    %v2461 = vsel %vm2459, %v2460, %v2458
    %v2462 = vclz %v2461
    %v2463 = vsub.s32 %v2462, 2
    %vm2464 = vcmp.gt.s32.totalorder 0, %v2463
    %v2465 = vsel %vm2464, 0, %v2463
    %v2466 = vsub.s32 32, %v2465
    %v2467 = vshll.u32 %v2458, %v2465
    %v2468 = vshrl.u32 %v2450, %v2466
    %v2469 = vor.u32 %v2467, %v2468
    %v2470 = vsub.s32 4294967266, %v2465
    %v2471 = vadd.s32 %v2470, 127
    %v2472 = vshll.u32 %v2471, 23
    %v2473 = vor.u32 4788187, %v2472
    %v2474 = vand.u32 2147483647, %v2473
    %v2476 = vcvt.s32.f32 %v2469
    %v2477 = vmul.f32 %v2476, %v2474
    %v2478 = vxor.u32 %v2477, 2147483648
    %v2479 = vsel %vm2396, %v2478, %v2477
    %v2480 = vsub.s32 4, %v2456
    %v2481 = vsel %vm2396, %v2480, %v2456
    %v2482 = vsel %vm2395, %v848, %v2479
    %v2483 = vsel %vm2395, 0, %v2481
    %v2484 = vcosq.f32.pop %v2482
    %v2485 = vsinq.f32.pop %v2482
    %vm2486 = vweird.f32 %v848
    %v2487 = vand.u32 %v2483, 3
    %vm2488 = vcmp.lt.s32.totalorder %v2487, 2
    %vm2489 = vcmp.eq.s32.totalorder %v2487, 0
    %v2490 = vxor.u32 %v2485, 2147483648
    %v2491 = vsel %vm2489, %v2484, %v2490
    %vm2492 = vcmp.eq.s32.totalorder %v2487, 2
    %v2493 = vxor.u32 %v2484, 2147483648
    %v2494 = vsel %vm2492, %v2493, %v2485
    %v2495 = vsel %vm2488, %v2491, %v2494
    %v2496 = vsel %vm2486, nan, %v2495
    %v2497 = vadd.f32 %v951, 1.0
    %v2498 = vadd.f32 %v1054, 1.0
    %v2499 = vadd.f32 %v1157, 1.0
    %v2500 = vadd.f32 %v1260, 1.0
    %v2501 = vadd.f32 %v1363, 1.0
    %v2502 = vadd.f32 %v1466, 1.0
    %v2503 = vadd.f32 %v1569, 1.0
    %v2504 = vadd.f32 %v1672, 1.0
    %v2505 = vadd.f32 %v1775, 1.0
    %v2506 = vadd.f32 %v1878, 1.0
    %v2507 = vadd.f32 %v1981, 1.0
    %v2508 = vadd.f32 %v2084, 1.0
    %v2509 = vadd.f32 %v2187, 1.0
    %v2510 = vadd.f32 %v2290, 1.0
    %v2511 = vadd.f32 %v2393, 1.0
    %v2512 = vadd.f32 %v2496, 1.0
    %v2513 = vmul.f32 %v2497, 0.5
    %v2514 = vmul.f32 %v2498, 0.5
    %v2515 = vmul.f32 %v2499, 0.5
    %v2516 = vmul.f32 %v2500, 0.5
    %v2517 = vmul.f32 %v2501, 0.5
    %v2518 = vmul.f32 %v2502, 0.5
    %v2519 = vmul.f32 %v2503, 0.5
    %v2520 = vmul.f32 %v2504, 0.5
    %v2521 = vmul.f32 %v2505, 0.5
    %v2522 = vmul.f32 %v2506, 0.5
    %v2523 = vmul.f32 %v2507, 0.5
    %v2524 = vmul.f32 %v2508, 0.5
    %v2525 = vmul.f32 %v2509, 0.5
    %v2526 = vmul.f32 %v2510, 0.5
    %v2527 = vmul.f32 %v2511, 0.5
    %v2528 = vmul.f32 %v2512, 0.5
    %2530 = vset.pattern.permute.xlu0 0
    %2531 = vperm.xlu0 %2530, %v2513
    %v2532 = vpop.permute.xlu0 %2531
    %2535 = vset.pattern.permute.xlu0 0
    %2536 = vperm.xlu0 %2535, %v2514
    %v2537 = vpop.permute.xlu0 %2536
    %2540 = vset.pattern.permute.xlu0 0
    %2541 = vperm.xlu0 %2540, %v2515
    %v2542 = vpop.permute.xlu0 %2541
    %2545 = vset.pattern.permute.xlu0 0
    %2546 = vperm.xlu0 %2545, %v2516
    %v2547 = vpop.permute.xlu0 %2546
    %2550 = vset.pattern.permute.xlu0 0
    %2551 = vperm.xlu0 %2550, %v2517
    %v2552 = vpop.permute.xlu0 %2551
    %2555 = vset.pattern.permute.xlu0 0
    %2556 = vperm.xlu0 %2555, %v2518
    %v2557 = vpop.permute.xlu0 %2556
    %2560 = vset.pattern.permute.xlu0 0
    %2561 = vperm.xlu0 %2560, %v2519
    %v2562 = vpop.permute.xlu0 %2561
    %2565 = vset.pattern.permute.xlu0 0
    %2566 = vperm.xlu0 %2565, %v2520
    %v2567 = vpop.permute.xlu0 %2566
    %2570 = vset.pattern.permute.xlu0 0
    %2571 = vperm.xlu0 %2570, %v2521
    %v2572 = vpop.permute.xlu0 %2571
    %2575 = vset.pattern.permute.xlu0 0
    %2576 = vperm.xlu0 %2575, %v2522
    %v2577 = vpop.permute.xlu0 %2576
    %2580 = vset.pattern.permute.xlu0 0
    %2581 = vperm.xlu0 %2580, %v2523
    %v2582 = vpop.permute.xlu0 %2581
    %2585 = vset.pattern.permute.xlu0 0
    %2586 = vperm.xlu0 %2585, %v2524
    %v2587 = vpop.permute.xlu0 %2586
    %2590 = vset.pattern.permute.xlu0 0
    %2591 = vperm.xlu0 %2590, %v2525
    %v2592 = vpop.permute.xlu0 %2591
    %2595 = vset.pattern.permute.xlu0 0
    %2596 = vperm.xlu0 %2595, %v2526
    %v2597 = vpop.permute.xlu0 %2596
    %2600 = vset.pattern.permute.xlu0 0
    %2601 = vperm.xlu0 %2600, %v2527
    %v2602 = vpop.permute.xlu0 %2601
    %2605 = vset.pattern.permute.xlu0 0
    %2606 = vperm.xlu0 %2605, %v2528
    %v2607 = vpop.permute.xlu0 %2606
    %v2609 = vmul.f32 %v739, %v2532
    %v2610 = vmul.f32 %v744, %v2537
    %v2611 = vmul.f32 %v749, %v2542
    %v2612 = vmul.f32 %v754, %v2547
    %v2613 = vmul.f32 %v759, %v2552
    %v2614 = vmul.f32 %v764, %v2557
    %v2615 = vmul.f32 %v769, %v2562
    %v2616 = vmul.f32 %v774, %v2567
    %v2617 = vmul.f32 %v779, %v2572
    %v2618 = vmul.f32 %v784, %v2577
    %v2619 = vmul.f32 %v789, %v2582
    %v2620 = vmul.f32 %v794, %v2587
    %v2621 = vmul.f32 %v799, %v2592
    %v2622 = vmul.f32 %v804, %v2597
    %v2623 = vmul.f32 %v809, %v2602
    %v2624 = vmul.f32 %v814, %v2607
    %v2625 = vlaneseq
    %v2626 = vand.u32 %v2625, 127
    %v2627 = vld [vmem:[%s1] sm:$0xff]
    %v2628 = vld [vmem:[%s1 + $0x8] sm:$0xff]
    %v2629 = vld [vmem:[%s1 + $0x10] sm:$0xff]
    %v2630 = vld [vmem:[%s1 + $0x18] sm:$0xff]
    %v2631 = vld [vmem:[%s1 + $0x20] sm:$0xff]
    %v2632 = vld [vmem:[%s1 + $0x28] sm:$0xff]
    %v2633 = vld [vmem:[%s1 + $0x30] sm:$0xff]
    %v2634 = vld [vmem:[%s1 + $0x38] sm:$0xff]
    %v2635 = vld [vmem:[%s1 + $0x40] sm:$0xff]
    %v2636 = vld [vmem:[%s1 + $0x48] sm:$0xff]
    %v2637 = vld [vmem:[%s1 + $0x50] sm:$0xff]
    %v2638 = vld [vmem:[%s1 + $0x58] sm:$0xff]
    %v2639 = vld [vmem:[%s1 + $0x60] sm:$0xff]
    %v2640 = vld [vmem:[%s1 + $0x68] sm:$0xff]
    %v2641 = vld [vmem:[%s1 + $0x70] sm:$0xff]
    %v2642 = vld [vmem:[%s1 + $0x78] sm:$0xff]
    %2643 = vset.pattern.permute.xlu0 0
    %2644 = vperm.xlu0 %2643, %v2627
    %v2645 = vpop.permute.xlu0 %2644
    %2646 = vset.pattern.permute.xlu0 0
    %2647 = vperm.xlu0 %2646, %v2628
    %v2648 = vpop.permute.xlu0 %2647
    %2649 = vset.pattern.permute.xlu0 0
    %2650 = vperm.xlu0 %2649, %v2629
    %v2651 = vpop.permute.xlu0 %2650
    %2652 = vset.pattern.permute.xlu0 0
    %2653 = vperm.xlu0 %2652, %v2630
    %v2654 = vpop.permute.xlu0 %2653
    %2655 = vset.pattern.permute.xlu0 0
    %2656 = vperm.xlu0 %2655, %v2631
    %v2657 = vpop.permute.xlu0 %2656
    %2658 = vset.pattern.permute.xlu0 0
    %2659 = vperm.xlu0 %2658, %v2632
    %v2660 = vpop.permute.xlu0 %2659
    %2661 = vset.pattern.permute.xlu0 0
    %2662 = vperm.xlu0 %2661, %v2633
    %v2663 = vpop.permute.xlu0 %2662
    %2664 = vset.pattern.permute.xlu0 0
    %2665 = vperm.xlu0 %2664, %v2634
    %v2666 = vpop.permute.xlu0 %2665
    %2667 = vset.pattern.permute.xlu0 0
    %2668 = vperm.xlu0 %2667, %v2635
    %v2669 = vpop.permute.xlu0 %2668
    %2670 = vset.pattern.permute.xlu0 0
    %2671 = vperm.xlu0 %2670, %v2636
    %v2672 = vpop.permute.xlu0 %2671
    %2673 = vset.pattern.permute.xlu0 0
    %2674 = vperm.xlu0 %2673, %v2637
    %v2675 = vpop.permute.xlu0 %2674
    %2676 = vset.pattern.permute.xlu0 0
    %2677 = vperm.xlu0 %2676, %v2638
    %v2678 = vpop.permute.xlu0 %2677
    %2679 = vset.pattern.permute.xlu0 0
    %2680 = vperm.xlu0 %2679, %v2639
    %v2681 = vpop.permute.xlu0 %2680
    %2682 = vset.pattern.permute.xlu0 0
    %2683 = vperm.xlu0 %2682, %v2640
    %v2684 = vpop.permute.xlu0 %2683
    %2685 = vset.pattern.permute.xlu0 0
    %2686 = vperm.xlu0 %2685, %v2641
    %v2687 = vpop.permute.xlu0 %2686
    %2688 = vset.pattern.permute.xlu0 0
    %2689 = vperm.xlu0 %2688, %v2642
    %v2690 = vpop.permute.xlu0 %2689
    %vm2691 = vcmp.eq.s32.totalorder %v2626, %v2645
    %vm2692 = vcmp.eq.s32.totalorder %v2626, %v2648
    %vm2693 = vcmp.eq.s32.totalorder %v2626, %v2651
    %vm2694 = vcmp.eq.s32.totalorder %v2626, %v2654
    %vm2695 = vcmp.eq.s32.totalorder %v2626, %v2657
    %vm2696 = vcmp.eq.s32.totalorder %v2626, %v2660
    %vm2697 = vcmp.eq.s32.totalorder %v2626, %v2663
    %vm2698 = vcmp.eq.s32.totalorder %v2626, %v2666
    %vm2699 = vcmp.eq.s32.totalorder %v2626, %v2669
    %vm2700 = vcmp.eq.s32.totalorder %v2626, %v2672
    %vm2701 = vcmp.eq.s32.totalorder %v2626, %v2675
    %vm2702 = vcmp.eq.s32.totalorder %v2626, %v2678
    %vm2703 = vcmp.eq.s32.totalorder %v2626, %v2681
    %vm2704 = vcmp.eq.s32.totalorder %v2626, %v2684
    %vm2705 = vcmp.eq.s32.totalorder %v2626, %v2687
    %vm2706 = vcmp.eq.s32.totalorder %v2626, %v2690
    %v2707 = vsel %vm2691, 1, 0
    %v2708 = vsel %vm2692, 1, 0
    %v2709 = vsel %vm2693, 1, 0
    %v2710 = vsel %vm2694, 1, 0
    %v2711 = vsel %vm2695, 1, 0
    %v2712 = vsel %vm2696, 1, 0
    %v2713 = vsel %vm2697, 1, 0
    %v2714 = vsel %vm2698, 1, 0
    %v2715 = vsel %vm2699, 1, 0
    %v2716 = vsel %vm2700, 1, 0
    %v2717 = vsel %vm2701, 1, 0
    %v2718 = vsel %vm2702, 1, 0
    %v2719 = vsel %vm2703, 1, 0
    %v2720 = vsel %vm2704, 1, 0
    %v2721 = vsel %vm2705, 1, 0
    %v2722 = vsel %vm2706, 1, 0
    %v2723 = vcvt.s32.f32 %v2707
    %v2724 = vcvt.s32.f32 %v2708
    %v2725 = vcvt.s32.f32 %v2709
    %v2726 = vcvt.s32.f32 %v2710
    %v2727 = vcvt.s32.f32 %v2711
    %v2728 = vcvt.s32.f32 %v2712
    %v2729 = vcvt.s32.f32 %v2713
    %v2730 = vcvt.s32.f32 %v2714
    %v2731 = vcvt.s32.f32 %v2715
    %v2732 = vcvt.s32.f32 %v2716
    %v2733 = vcvt.s32.f32 %v2717
    %v2734 = vcvt.s32.f32 %v2718
    %v2735 = vcvt.s32.f32 %v2719
    %v2736 = vcvt.s32.f32 %v2720
    %v2737 = vcvt.s32.f32 %v2721
    %v2738 = vcvt.s32.f32 %v2722
    %v2739 = vpack.c.bf16 %v2724, %v2723
    %v2740 = vpack.c.bf16 %v2726, %v2725
    %v2741 = vpack.c.bf16 %v2728, %v2727
    %v2742 = vpack.c.bf16 %v2730, %v2729
    %v2743 = vpack.c.bf16 %v2732, %v2731
    %v2744 = vpack.c.bf16 %v2734, %v2733
    %v2745 = vpack.c.bf16 %v2736, %v2735
    %v2746 = vpack.c.bf16 %v2738, %v2737
    %v2747 = vld [vmem:[#allocation2] sm:$0xf]
    %vm2748 = vcmask 64512
    %v2750 = vsel %vm2748, %v2739, 0
    %v2753 = vsel %vm2748, %v2740, 0
    %v2756 = vsel %vm2748, %v2741, 0
    %v2759 = vsel %vm2748, %v2742, 0
    %v2762 = vsel %vm2748, %v2743, 0
    %v2765 = vsel %vm2748, %v2744, 0
    %v2768 = vsel %vm2748, %v2745, 0
    %v2771 = vsel %vm2748, %v2746, 0
    %vm2773 = vcmask 1043456
    %v2775 = vsel %vm2773, %v2747, 0
    %2777 = vmatprep.subr.bf16.mxu0 0
    %2778 = vmatpush1.bf16.msra.mxu0 0
    %2779 = vmatprep.subr.bf16.mxu0 0
    %2780 = vmatpush1.bf16.msra.mxu0 0
    %2781 = vmatprep.subr.bf16.mxu0 0
    %2782 = vmatpush1.bf16.msra.mxu0 0
    %2783 = vmatprep.subr.bf16.mxu0 0
    %2784 = vmatpush1.bf16.msra.mxu0 0
    %2785 = vmatprep.subr.bf16.mxu0 0
    %2786 = vmatpush1.bf16.msra.mxu0 0
    %2787 = vmatprep.subr.bf16.mxu0 0
    %2788 = vmatpush1.bf16.msra.mxu0 0
    %2789 = vmatprep.subr.bf16.mxu0 0
    %2790 = vmatpush1.bf16.msra.mxu0 0
    %2791 = vmatprep.subr.bf16.mxu0 0
    %2792 = vmatpush1.bf16.msra.mxu0 %v2775
    %2793 = vmatprep.subr.bf16.mxu0 0
    %2794 = vmatpush2.bf16.msra.mxu0 0
    %2795 = vmatprep.subr.bf16.mxu0 0
    %2796 = vmatpush2.bf16.msra.mxu0 0
    %2797 = vmatprep.subr.bf16.mxu0 0
    %2798 = vmatpush2.bf16.msra.mxu0 0
    %2799 = vmatprep.subr.bf16.mxu0 0
    %2800 = vmatpush2.bf16.msra.mxu0 0
    %2801 = vmatprep.subr.bf16.mxu0 0
    %2802 = vmatpush2.bf16.msra.mxu0 0
    %2803 = vmatprep.subr.bf16.mxu0 0
    %2804 = vmatpush2.bf16.msra.mxu0 0
    %2805 = vmatprep.subr.bf16.mxu0 0
    %2806 = vmatpush2.bf16.msra.mxu0 0
    %2807 = vmatprep.subr.bf16.mxu0 0
    %2808 = vmatpush2.bf16.msra.mxu0 0
    %2809 = vmatprep.mubr.bf16.mxu0 0
    %2810 = vmatmul.mubr.bf16.gmra.mxu0 %v2750
    %v2811 = vpop.f32.mrf.mxu0
    %v2812 = vadd.f32 0.0, %v2811
    %v2813 = vpop.f32.mrf.mxu0
    %v2814 = vpop.f32.mrf.mxu0
    %v2815 = vadd.f32 0.0, %v2814
    %v2816 = vpop.f32.mrf.mxu0
    %2817 = vmatprep.mubr.bf16.mxu0 0
    %2818 = vmatmul.mubr.bf16.gmra.mxu0 %v2753
    %v2819 = vpop.f32.mrf.mxu0
    %v2820 = vadd.f32 0.0, %v2819
    %v2821 = vpop.f32.mrf.mxu0
    %v2822 = vpop.f32.mrf.mxu0
    %v2823 = vadd.f32 0.0, %v2822
    %v2824 = vpop.f32.mrf.mxu0
    %2825 = vmatprep.mubr.bf16.mxu0 0
    %2826 = vmatmul.mubr.bf16.gmra.mxu0 %v2756
    %v2827 = vpop.f32.mrf.mxu0
    %v2828 = vadd.f32 0.0, %v2827
    %v2829 = vpop.f32.mrf.mxu0
    %v2830 = vpop.f32.mrf.mxu0
    %v2831 = vadd.f32 0.0, %v2830
    %v2832 = vpop.f32.mrf.mxu0
    %2833 = vmatprep.mubr.bf16.mxu0 0
    %2834 = vmatmul.mubr.bf16.gmra.mxu0 %v2759
    %v2835 = vpop.f32.mrf.mxu0
    %v2836 = vadd.f32 0.0, %v2835
    %v2837 = vpop.f32.mrf.mxu0
    %v2838 = vpop.f32.mrf.mxu0
    %v2839 = vadd.f32 0.0, %v2838
    %v2840 = vpop.f32.mrf.mxu0
    %2841 = vmatprep.mubr.bf16.mxu0 0
    %2842 = vmatmul.mubr.bf16.gmra.mxu0 %v2762
    %v2843 = vpop.f32.mrf.mxu0
    %v2844 = vadd.f32 0.0, %v2843
    %v2845 = vpop.f32.mrf.mxu0
    %v2846 = vpop.f32.mrf.mxu0
    %v2847 = vadd.f32 0.0, %v2846
    %v2848 = vpop.f32.mrf.mxu0
    %2849 = vmatprep.mubr.bf16.mxu0 0
    %2850 = vmatmul.mubr.bf16.gmra.mxu0 %v2765
    %v2851 = vpop.f32.mrf.mxu0
    %v2852 = vadd.f32 0.0, %v2851
    %v2853 = vpop.f32.mrf.mxu0
    %v2854 = vpop.f32.mrf.mxu0
    %v2855 = vadd.f32 0.0, %v2854
    %v2856 = vpop.f32.mrf.mxu0
    %2857 = vmatprep.mubr.bf16.mxu0 0
    %2858 = vmatmul.mubr.bf16.gmra.mxu0 %v2768
    %v2859 = vpop.f32.mrf.mxu0
    %v2860 = vadd.f32 0.0, %v2859
    %v2861 = vpop.f32.mrf.mxu0
    %v2862 = vpop.f32.mrf.mxu0
    %v2863 = vadd.f32 0.0, %v2862
    %v2864 = vpop.f32.mrf.mxu0
    %2865 = vmatprep.mubr.bf16.mxu0 0
    %2866 = vmatmul.mubr.bf16.gmra.mxu0 %v2771
    %v2867 = vpop.f32.mrf.mxu0
    %v2868 = vadd.f32 0.0, %v2867
    %v2869 = vpop.f32.mrf.mxu0
    %v2870 = vpop.f32.mrf.mxu0
    %v2871 = vadd.f32 0.0, %v2870
    %v2872 = vpop.f32.mrf.mxu0
    %2873 = vdwg.mxu0
    %v2874 = vmul.f32 %v2812, %v2609
    %v2875 = vmul.f32 %v2815, %v2610
    %v2876 = vmul.f32 %v2820, %v2611
    %v2877 = vmul.f32 %v2823, %v2612
    %v2878 = vmul.f32 %v2828, %v2613
    %v2879 = vmul.f32 %v2831, %v2614
    %v2880 = vmul.f32 %v2836, %v2615
    %v2881 = vmul.f32 %v2839, %v2616
    %v2882 = vmul.f32 %v2844, %v2617
    %v2883 = vmul.f32 %v2847, %v2618
    %v2884 = vmul.f32 %v2852, %v2619
    %v2885 = vmul.f32 %v2855, %v2620
    %v2886 = vmul.f32 %v2860, %v2621
    %v2887 = vmul.f32 %v2863, %v2622
    %v2888 = vmul.f32 %v2868, %v2623
    %v2889 = vmul.f32 %v2871, %v2624
    %v2890 = vpack.c.bf16 %v2875, %v2874
    %v2891 = vpack.c.bf16 %v2877, %v2876
    %v2892 = vpack.c.bf16 %v2879, %v2878
    %v2893 = vpack.c.bf16 %v2881, %v2880
    %v2894 = vpack.c.bf16 %v2883, %v2882
    %v2895 = vpack.c.bf16 %v2885, %v2884
    %v2896 = vpack.c.bf16 %v2887, %v2886
    %v2897 = vpack.c.bf16 %v2889, %v2888
    %v2898 = vlaneseq
    %v2899 = vshrl.u32 %v2898, 7
    %v2900 = vld [vmem:[%s2] sm:$0x1]
    %v2901 = vlaneseq
    %v2902 = vshrl.u32 %v2901, 7
    %v2903 = vsub.s32 0, %v2902
    %v2904 = vrot.slane %v2900, %v2903
    %vm2905 = vcmp.eq.s32.totalorder %v2899, %v2904
    %v2906 = vsel %vm2905, 1, 0
    %v2907 = vcvt.s32.f32 %v2906
    %v2908 = vpack.c.bf16 %v2907, %v2907
    %v2909 = vld [vmem:[#allocation3] sm:$0xff]
    %2910 = vmatprep.subr.bf16.mxu0 0
    %2911 = vmatpush1.bf16.msra.mxu0 %v2897
    %2912 = vmatprep.subr.bf16.mxu0 0
    %2913 = vmatpush1.bf16.msra.mxu0 %v2896
    %2914 = vmatprep.subr.bf16.mxu0 0
    %2915 = vmatpush1.bf16.msra.mxu0 %v2895
    %2916 = vmatprep.subr.bf16.mxu0 0
    %2917 = vmatpush1.bf16.msra.mxu0 %v2894
    %2918 = vmatprep.subr.bf16.mxu0 0
    %2919 = vmatpush1.bf16.msra.mxu0 %v2893
    %2920 = vmatprep.subr.bf16.mxu0 0
    %2921 = vmatpush1.bf16.msra.mxu0 %v2892
    %2922 = vmatprep.subr.bf16.mxu0 0
    %2923 = vmatpush1.bf16.msra.mxu0 %v2891
    %2924 = vmatprep.subr.bf16.mxu0 0
    %2925 = vmatpush1.bf16.msra.mxu0 %v2890
    %2926 = vmatprep.subr.bf16.mxu0 0
    %2927 = vmatpush2.bf16.msra.mxu0 0
    %2928 = vmatprep.subr.bf16.mxu0 0
    %2929 = vmatpush2.bf16.msra.mxu0 0
    %2930 = vmatprep.subr.bf16.mxu0 0
    %2931 = vmatpush2.bf16.msra.mxu0 0
    %2932 = vmatprep.subr.bf16.mxu0 0
    %2933 = vmatpush2.bf16.msra.mxu0 0
    %2934 = vmatprep.subr.bf16.mxu0 0
    %2935 = vmatpush2.bf16.msra.mxu0 0
    %2936 = vmatprep.subr.bf16.mxu0 0
    %2937 = vmatpush2.bf16.msra.mxu0 0
    %2938 = vmatprep.subr.bf16.mxu0 0
    %2939 = vmatpush2.bf16.msra.mxu0 0
    %2940 = vmatprep.subr.bf16.mxu0 0
    %2941 = vmatpush2.bf16.msra.mxu0 0
    %2942 = vmatprep.mubr.bf16.mxu0 0
    %2943 = vmatmul.mubr.bf16.gmra.mxu0 %v2908
    %v2944 = vpop.f32.mrf.mxu0
    %v2945 = vadd.f32 0.0, %v2944
    %v2946 = vpop.f32.mrf.mxu0
    %v2947 = vpop.f32.mrf.mxu0
    %v2948 = vpop.f32.mrf.mxu0
    %2949 = vdwg.mxu0
    %v2950 = vadd.f32 %v2909, %v2945
    %2951 = vst [vmem:[#allocation3] sm:$0xff] %v2950
    // Predicated region
    $region82: #{tpu_custom_call.1} parent=1 // pred_check
      %p2952 = pneg %p115
    $region83: #{tpu_custom_call.1} parent=1 // pred_check_branch
      %2954 = sbr.rel (%p2952) target = $region85
    $region84: #{tpu_custom_call.1} parent=1 // pred_region
      %v2955 = vld [vmem:[#allocation3] sm:$0xff]
      %v2956 = vld [vmem:[#allocation10] sm:$0xff]
      %v2957 = vld [vmem:[#allocation10 + $0x8] sm:$0xff]
      %v2958 = vld [vmem:[#allocation10 + $0x10] sm:$0xff]
      %v2959 = vld [vmem:[#allocation10 + $0x18] sm:$0xff]
      %v2960 = vld [vmem:[#allocation10 + $0x20] sm:$0xff]
      %v2961 = vld [vmem:[#allocation10 + $0x28] sm:$0xff]
      %v2962 = vld [vmem:[#allocation10 + $0x30] sm:$0xff]
      %v2963 = vld [vmem:[#allocation10 + $0x38] sm:$0xff]
      %v2964 = vld [vmem:[#allocation10 + $0x40] sm:$0xff]
      %v2965 = vld [vmem:[#allocation10 + $0x48] sm:$0xff]
      %v2966 = vld [vmem:[#allocation10 + $0x50] sm:$0xff]
      %v2967 = vld [vmem:[#allocation10 + $0x58] sm:$0xff]
      %v2968 = vld [vmem:[#allocation10 + $0x60] sm:$0xff]
      %v2969 = vld [vmem:[#allocation10 + $0x68] sm:$0xff]
      %v2970 = vld [vmem:[#allocation10 + $0x70] sm:$0xff]
      %v2971 = vld [vmem:[#allocation10 + $0x78] sm:$0xff]
      %v2972 = vld [vmem:[%s11] sm:$0x1]
      %v2974 = vlaneseq
      %v2975 = vshrl.u32 %v2974, 7
      %v2976 = vsub.s32 0, %v2975
      %v2977 = vrot.slane %v2972, %v2976
      %2979 = vmatprep.subr.mxu0 0.0
      %2980 = vmatpush1.msra.mxu0 %v2971
      %2981 = vmatprep.subr.mxu0 0.0
      %2982 = vmatpush1.msra.mxu0 %v2970
      %2983 = vmatprep.subr.mxu0 0.0
      %2984 = vmatpush1.msra.mxu0 %v2969
      %2985 = vmatprep.subr.mxu0 0.0
      %2986 = vmatpush1.msra.mxu0 %v2968
      %2987 = vmatprep.subr.mxu0 0.0
      %2988 = vmatpush1.msra.mxu0 %v2967
      %2989 = vmatprep.subr.mxu0 0.0
      %2990 = vmatpush1.msra.mxu0 %v2966
      %2991 = vmatprep.subr.mxu0 0.0
      %2992 = vmatpush1.msra.mxu0 %v2965
      %2993 = vmatprep.subr.mxu0 0.0
      %2994 = vmatpush1.msra.mxu0 %v2964
      %2995 = vmatprep.subr.mxu0 0.0
      %2996 = vmatpush1.msra.mxu0 %v2963
      %2997 = vmatprep.subr.mxu0 0.0
      %2998 = vmatpush1.msra.mxu0 %v2962
      %2999 = vmatprep.subr.mxu0 0.0
      %3000 = vmatpush1.msra.mxu0 %v2961
      %3001 = vmatprep.subr.mxu0 0.0
      %3002 = vmatpush1.msra.mxu0 %v2960
      %3003 = vmatprep.subr.mxu0 0.0
      %3004 = vmatpush1.msra.mxu0 %v2959
      %3005 = vmatprep.subr.mxu0 0.0
      %3006 = vmatpush1.msra.mxu0 %v2958
      %3007 = vmatprep.subr.mxu0 0.0
      %3008 = vmatpush1.msra.mxu0 %v2957
      %3009 = vmatprep.subr.mxu0 0.0
      %3010 = vmatpush1.msra.mxu0 %v2956
      %3011 = vmatprep.subr.mxu0 0.0
      %3012 = vmatpush2.msra.mxu0 0.0
      %3013 = vmatprep.subr.mxu0 0.0
      %3014 = vmatpush2.msra.mxu0 0.0
      %3015 = vmatprep.subr.mxu0 0.0
      %3016 = vmatpush2.msra.mxu0 0.0
      %3017 = vmatprep.subr.mxu0 0.0
      %3018 = vmatpush2.msra.mxu0 0.0
      %3019 = vmatprep.subr.mxu0 0.0
      %3020 = vmatpush2.msra.mxu0 0.0
      %3021 = vmatprep.subr.mxu0 0.0
      %3022 = vmatpush2.msra.mxu0 0.0
      %3023 = vmatprep.subr.mxu0 0.0
      %3024 = vmatpush2.msra.mxu0 0.0
      %3025 = vmatprep.subr.mxu0 0.0
      %3026 = vmatpush2.msra.mxu0 0.0
      %3027 = vmatprep.subr.mxu0 0.0
      %3028 = vmatpush2.msra.mxu0 0.0
      %3029 = vmatprep.subr.mxu0 0.0
      %3030 = vmatpush2.msra.mxu0 0.0
      %3031 = vmatprep.subr.mxu0 0.0
      %3032 = vmatpush2.msra.mxu0 0.0
      %3033 = vmatprep.subr.mxu0 0.0
      %3034 = vmatpush2.msra.mxu0 0.0
      %3035 = vmatprep.subr.mxu0 0.0
      %3036 = vmatpush2.msra.mxu0 0.0
      %3037 = vmatprep.subr.mxu0 0.0
      %3038 = vmatpush2.msra.mxu0 0.0
      %3039 = vmatprep.subr.mxu0 0.0
      %3040 = vmatpush2.msra.mxu0 0.0
      %3041 = vmatprep.subr.mxu0 0.0
      %3042 = vmatpush2.msra.mxu0 0.0
      %3043 = vmatprep.mubr.f32.mxu0 0.0
      %3044 = vmatmul.mubr.f32.gmra.mxu0 %v2955
      %v3045 = vpop.f32.mrf.mxu0
      %v3046 = vadd.f32 %v2977, %v3045
      %v3047 = vpop.f32.mrf.mxu0
      %3048 = vdwg.mxu0
      %v3049 = vmax.f32 %v3046, 0.0
      %v3050 = vand.u32 2147483647, %v3046
      %v3051 = vsub.f32 0.0, %v3050
      %v3052 = vmul.f32 %v3051, 1.442695
      %v3053 = vpow.pop %v3052
      %v3054 = vadd.f32 %v3053, 1.0
      %v3055 = vlog2.pop %v3054
      %v3056 = vmul.f32 %v3055, 0.6931472
      %v3057 = vmul.f32 -0.5, %v3053
      %v3058 = vadd.f32 %v3057, 1.0
      %v3059 = vmul.f32 %v3058, %v3053
      %v3060 = vand.u32 2147483647, %v3053
      %vm3061 = vcmp.lt.f32.partialorder %v3060, 0.0004427343
      %v3062 = vsel %vm3061, %v3059, %v3056
      %v3063 = vadd.f32 %v3049, %v3062
      %v3064 = vsub.f32 %v3063, 0.6931472
      %v3065 = vld [vmem:[#allocation12] sm:$0xff]
      %v3066 = vld [vmem:[#allocation12 + $0x8] sm:$0xff]
      %v3067 = vld [vmem:[#allocation12 + $0x10] sm:$0xff]
      %v3068 = vld [vmem:[#allocation12 + $0x18] sm:$0xff]
      %v3069 = vld [vmem:[#allocation12 + $0x20] sm:$0xff]
      %v3070 = vld [vmem:[#allocation12 + $0x28] sm:$0xff]
      %v3071 = vld [vmem:[#allocation12 + $0x30] sm:$0xff]
      %v3072 = vld [vmem:[#allocation12 + $0x38] sm:$0xff]
      %v3073 = vld [vmem:[#allocation12 + $0x40] sm:$0xff]
      %v3074 = vld [vmem:[#allocation12 + $0x48] sm:$0xff]
      %v3075 = vld [vmem:[#allocation12 + $0x50] sm:$0xff]
      %v3076 = vld [vmem:[#allocation12 + $0x58] sm:$0xff]
      %v3077 = vld [vmem:[#allocation12 + $0x60] sm:$0xff]
      %v3078 = vld [vmem:[#allocation12 + $0x68] sm:$0xff]
      %v3079 = vld [vmem:[#allocation12 + $0x70] sm:$0xff]
      %v3080 = vld [vmem:[#allocation12 + $0x78] sm:$0xff]
      %v3081 = vld [vmem:[%s13] sm:$0x1]
      %v3083 = vlaneseq
      %v3084 = vshrl.u32 %v3083, 7
      %v3085 = vsub.s32 0, %v3084
      %v3086 = vrot.slane %v3081, %v3085
      %3088 = vmatprep.subr.mxu0 0.0
      %3089 = vmatpush1.msra.mxu0 %v3080
      %3090 = vmatprep.subr.mxu0 0.0
      %3091 = vmatpush1.msra.mxu0 %v3079
      %3092 = vmatprep.subr.mxu0 0.0
      %3093 = vmatpush1.msra.mxu0 %v3078
      %3094 = vmatprep.subr.mxu0 0.0
      %3095 = vmatpush1.msra.mxu0 %v3077
      %3096 = vmatprep.subr.mxu0 0.0
      %3097 = vmatpush1.msra.mxu0 %v3076
      %3098 = vmatprep.subr.mxu0 0.0
      %3099 = vmatpush1.msra.mxu0 %v3075
      %3100 = vmatprep.subr.mxu0 0.0
      %3101 = vmatpush1.msra.mxu0 %v3074
      %3102 = vmatprep.subr.mxu0 0.0
      %3103 = vmatpush1.msra.mxu0 %v3073
      %3104 = vmatprep.subr.mxu0 0.0
      %3105 = vmatpush1.msra.mxu0 %v3072
      %3106 = vmatprep.subr.mxu0 0.0
      %3107 = vmatpush1.msra.mxu0 %v3071
      %3108 = vmatprep.subr.mxu0 0.0
      %3109 = vmatpush1.msra.mxu0 %v3070
      %3110 = vmatprep.subr.mxu0 0.0
      %3111 = vmatpush1.msra.mxu0 %v3069
      %3112 = vmatprep.subr.mxu0 0.0
      %3113 = vmatpush1.msra.mxu0 %v3068
      %3114 = vmatprep.subr.mxu0 0.0
      %3115 = vmatpush1.msra.mxu0 %v3067
      %3116 = vmatprep.subr.mxu0 0.0
      %3117 = vmatpush1.msra.mxu0 %v3066
      %3118 = vmatprep.subr.mxu0 0.0
      %3119 = vmatpush1.msra.mxu0 %v3065
      %3120 = vmatprep.subr.mxu0 0.0
      %3121 = vmatpush2.msra.mxu0 0.0
      %3122 = vmatprep.subr.mxu0 0.0
      %3123 = vmatpush2.msra.mxu0 0.0
      %3124 = vmatprep.subr.mxu0 0.0
      %3125 = vmatpush2.msra.mxu0 0.0
      %3126 = vmatprep.subr.mxu0 0.0
      %3127 = vmatpush2.msra.mxu0 0.0
      %3128 = vmatprep.subr.mxu0 0.0
      %3129 = vmatpush2.msra.mxu0 0.0
      %3130 = vmatprep.subr.mxu0 0.0
      %3131 = vmatpush2.msra.mxu0 0.0
      %3132 = vmatprep.subr.mxu0 0.0
      %3133 = vmatpush2.msra.mxu0 0.0
      %3134 = vmatprep.subr.mxu0 0.0
      %3135 = vmatpush2.msra.mxu0 0.0
      %3136 = vmatprep.subr.mxu0 0.0
      %3137 = vmatpush2.msra.mxu0 0.0
      %3138 = vmatprep.subr.mxu0 0.0
      %3139 = vmatpush2.msra.mxu0 0.0
      %3140 = vmatprep.subr.mxu0 0.0
      %3141 = vmatpush2.msra.mxu0 0.0
      %3142 = vmatprep.subr.mxu0 0.0
      %3143 = vmatpush2.msra.mxu0 0.0
      %3144 = vmatprep.subr.mxu0 0.0
      %3145 = vmatpush2.msra.mxu0 0.0
      %3146 = vmatprep.subr.mxu0 0.0
      %3147 = vmatpush2.msra.mxu0 0.0
      %3148 = vmatprep.subr.mxu0 0.0
      %3149 = vmatpush2.msra.mxu0 0.0
      %3150 = vmatprep.subr.mxu0 0.0
      %3151 = vmatpush2.msra.mxu0 0.0
      %3152 = vmatprep.mubr.f32.mxu0 0.0
      %3153 = vmatmul.mubr.f32.gmra.mxu0 %v3064
      %v3154 = vpop.f32.mrf.mxu0
      %v3155 = vadd.f32 %v3086, %v3154
      %v3156 = vpop.f32.mrf.mxu0
      %3157 = vdwg.mxu0
      %3158 = vst [vmem:[#allocation13] sm:$0xff] %v3155
    $region85: #{tpu_custom_call.1} parent=1 // pred_fallthru
      _
    // Predicated region
    $region86: #{tpu_custom_call.1} parent=1 // pred_check
      _
    $region87: #{tpu_custom_call.1} parent=1 // pred_check_branch
      %3160 = sbr.rel (0) target = $region89
    $region88: #{tpu_custom_call.1} parent=1 // pred_region
      %s3162 = ssub.s32 128, 128
      %3163 = vsyncadd [#allocation6], %s3162
      %s3165 = sshll.u32 [#allocation13], 4
      %s3166 = int_to_ptr.vmem [resolvable:$true] %s3165
      %3168 = dma.vmem_to_hbm [thread:$0]  %s3166, 128, %s14, [#allocation6]
    $region89: #{tpu_custom_call.1} parent=1 // pred_fallthru
      _
    // Predicated region
    $region90: #{tpu_custom_call.1} parent=1 // pred_check
      _
    $region91: #{tpu_custom_call.1} parent=1 // pred_check_branch
      %3170 = sbr.rel (0) target = $region93
    $region92: #{tpu_custom_call.1} parent=1 // pred_region
      %3171 = dma.done [#allocation6], 128
    $region93: #{tpu_custom_call.1} parent=1 // pred_fallthru
      _
    %3172 = vsyncpa [#allocation5], 1
    %3173 = vsyncpa [#allocation8], 1
    %3174 = vsyncpa [#allocation11], 1
    %3175 = vsyncpa [#allocation6], 1

</llo_original>
